<compile_context>
chip_gen: v7x
topology: tpu7x:2x2x1
jax: 0.10.0
libtpu: 0.0.40
codegen_flags: <defaults>
</compile_context>

<pallas_src>
import jax
import jax.numpy as jnp
from jax.experimental import pallas as pl
from jax.experimental.pallas import tpu as pltpu

HIDDEN = 6        # Astro_Network_4 hidden_size
NUM_GATES = 4     # torch.split order: i, f, o, g
HP = 8            # channel dims zero-padded to the 8-sublane granule
BN_EPS = 1e-5


# ----------------------------------------------------------------------------- fused kernel
def _make_kernel(T, W):
    TW = T * W

    def _sigmoid(v):
        # one EUP tanh + two VALU ops (vs exp + full-precision divide)
        return 0.5 * jnp.tanh(0.5 * v) + 0.5

    def _im2col3(v, nf, nl, width):
        """v: (C, width) -> (3*C, width): rows [v[w-1]; v[w]; v[w+1]], zeroed at edges."""
        left = pltpu.roll(v, shift=1, axis=1) * nf            # value at w-1
        right = pltpu.roll(v, shift=width - 1, axis=1) * nl   # value at w+1
        return jnp.concatenate([left, v, right], axis=0)

    def kernel(x_ref, nf_ref, nl_ref, wg0_ref, wg1_ref,
               w1_ref, b1_ref, w2_ref, b2_ref, out_ref):
        # Hoisted loads: everything is resident in VMEM, read once.
        nf = nf_ref[...]            # (1, T*W) 0/1 "not left edge of its time step"
        nl = nl_ref[...]            # (1, T*W) 0/1 "not right edge of its time step"
        nf_w = nf[:, :W]            # (1, W) per-step masks (slices of the slab masks)
        nl_w = nl[:, :W]
        wg0 = wg0_ref[...]          # (4*HP, 3*2*HP) fused gate weights, layer 0
        wg1 = wg1_ref[...]          # (4*HP, 3*2*HP) fused gate weights, layer 1

        def cell(x, h, c, wg):
            comb = jnp.concatenate([x, h], axis=0)                 # (2*HP, W)
            patches = _im2col3(comb, nf_w, nl_w, W)                # (3*2*HP, W)
            gates = jnp.dot(wg, patches,
                            preferred_element_type=jnp.float32)    # (4*HP, W), one MXU push
            i_g = _sigmoid(gates[0 * HP:1 * HP])
            f_g = _sigmoid(gates[1 * HP:2 * HP])
            o_g = _sigmoid(gates[2 * HP:3 * HP])
            g_g = jnp.tanh(gates[3 * HP:4 * HP])
            c_n = f_g * c + i_g * g_g
            h_n = o_g * jnp.tanh(c_n)
            return h_n, c_n

        zero = jnp.zeros((HP, W), jnp.float32)
        h0, c0, h1, c1 = zero, zero, zero, zero
        h1_steps = []
        # T is small and static: fully-unrolled loop (== fori_loop(..., unroll=True));
        # recurrent state stays in vregs and never round-trips through VMEM.
        for t in range(T):
            x_t = x_ref[:, t * W:(t + 1) * W]                      # (HP, W), static slice
            h0, c0 = cell(x_t, h0, c0, wg0)
            h1, c1 = cell(h0, h1, c1, wg1)
            h1_steps.append(h1)

        # Time-batched classifiers: one lane-dense (HP, T*W) slab, one matmul each.
        # Edge masks prevent any 3-tap leakage across time-step boundaries.
        h1s = jnp.concatenate(h1_steps, axis=1)                    # (HP, T*W)
        p1 = _sigmoid(jnp.dot(w1_ref[...], _im2col3(h1s, nf, nl, TW),
                              preferred_element_type=jnp.float32) + b1_ref[...])
        p2 = _sigmoid(jnp.dot(w2_ref[...], _im2col3(p1, nf, nl, TW),
                              preferred_element_type=jnp.float32) + b2_ref[...])
        out_ref[...] = p2.astype(out_ref.dtype)                    # one dense slab store

    return kernel


def astro_forward_pallas(weight_avg, params):
    """Pallas forward for the i != 8 path. Returns (T, 1, 1, W) like torch's pr2."""
    W = weight_avg.shape[-1]
    T = weight_avg.size // W
    TW = T * W

    # (HP, T*W): time flattened along lanes; row 0 = data, rows 1..HP-1 zero channel pad.
    x = jnp.pad(weight_avg.reshape(1, TW).astype(jnp.float32), ((0, HP - 1), (0, 0)))

    # 0/1 edge masks (left / right edge of each time-step window), built once on host.
    lane = jnp.arange(TW) % W
    nf = (lane != 0).astype(jnp.float32).reshape(1, TW)
    nl = (lane != W - 1).astype(jnp.float32).reshape(1, TW)

    p = params
    inputs = (x, nf, nl, p["lstm0_wg"], p["lstm1_wg"],
              p["c1_w"], p["c1_shift"], p["c2_w"], p["c2_shift"])

    flops = (T * 2 * 2 * (NUM_GATES * HP) * (3 * 2 * HP) * W     # 2 ConvLSTM cells / step
             + 2 * 2 * HP * (3 * HP) * TW)                       # 2 batched classifiers
    transcendentals = T * 2 * 5 * HP * W + 2 * HP * TW
    bytes_accessed = 4 * (sum(int(a.size) for a in inputs) + HP * TW)

    out = pl.pallas_call(
        _make_kernel(T, W),
        out_shape=jax.ShapeDtypeStruct((HP, TW), jnp.float32),
        in_specs=[pl.BlockSpec(memory_space=pltpu.MemorySpace.VMEM) for _ in inputs],
        out_specs=pl.BlockSpec(memory_space=pltpu.MemorySpace.VMEM),
        cost_estimate=pl.CostEstimate(flops=int(flops),
                                      transcendentals=int(transcendentals),
                                      bytes_accessed=int(bytes_accessed)),
    )(*inputs)
    # row 0 is the real (1-channel) classifier2 output; rows 1..HP-1 are padding junk.
    return out[0].reshape(T, 1, 1, W)


def astro_network_4_forward(weight_avg, i, params):
    """Mirrors Astro_Network_4.forward(weight_avg, i) for the i != 8 path."""
    if i == 8:
        # TODO(synk): i == 8 branch not implemented in Pallas (see header).
        raise NotImplementedError("Pallas implementation covers the i != 8 path only")
    return astro_forward_pallas(weight_avg, params)


# ----------------------------------------------------------------------------- param packing
def _lstm_gate_weights(w, c_in):
    """torch ConvLSTMCell conv weight (4*Hd, c_in+Hd, 3, 3) -> fused (4*HP, 3*2*HP).

    Only kernel row 1 ever touches data (H == 1 with padding 1).  Columns are tap-major
    (kw * 2*HP + channel) with channel block [x(0..HP-1); h(0..HP-1)], matching the
    in-kernel concat/im2col.  Rows are gate-major blocks of HP (torch split order
    i, f, o, g), input/output channels zero-padded to HP.
    """
    w_mid = w[:, :, 1, :]                                                   # (4*Hd, c_in+Hd, 3)
    wx = jnp.pad(w_mid[:, :c_in, :], ((0, 0), (0, HP - c_in), (0, 0)))      # (4*Hd, HP, 3)
    wh = jnp.pad(w_mid[:, c_in:, :], ((0, 0), (0, HP - HIDDEN), (0, 0)))    # (4*Hd, HP, 3)
    wc = jnp.concatenate([wx, wh], axis=1)                                  # (4*Hd, 2*HP, 3)
    wc = jnp.transpose(wc, (0, 2, 1)).reshape(4 * HIDDEN, 3 * 2 * HP)       # tap-major columns
    wc = wc.reshape(NUM_GATES, HIDDEN, 3 * 2 * HP)
    wc = jnp.pad(wc, ((0, 0), (0, HP - HIDDEN), (0, 0)))                    # (4, HP, K)
    return wc.reshape(NUM_GATES * HP, 3 * 2 * HP).astype(jnp.float32)       # (32, 48)


def _classifier_params(conv_w, gamma, beta, mean, var):
    """torch Conv2d (OC, C, 3, 3) + eval-mode BN -> (HP, 3*HP) weight (BN scale folded)
    and (HP, 1) shift.  Output channels padded to HP (padded rows discarded later)."""
    oc, ci = conv_w.shape[0], conv_w.shape[1]
    taps = jnp.pad(conv_w[:, :, 1, :], ((0, 0), (0, HP - ci), (0, 0)))      # (OC, HP, 3)
    taps = jnp.transpose(taps, (0, 2, 1)).reshape(oc, 3 * HP)               # tap-major columns
    scale = gamma / jnp.sqrt(var + BN_EPS)
    shift = beta - mean * scale
    w = jnp.pad((taps * scale[:, None]).astype(jnp.float32), ((0, HP - oc), (0, 0)))
    shift = jnp.pad(shift, (0, HP - oc))
    return w, shift[:, None].astype(jnp.float32)


# ----------------------------------------------------------------------------- pure-JAX reference
def _sigmoid_ref(x):
    return 1.0 / (1.0 + jnp.exp(-x))


def _conv2d_nchw(x, w):
    return jax.lax.conv_general_dilated(
        x, w, window_strides=(1, 1), padding=((1, 1), (1, 1)),
        dimension_numbers=("NCHW", "OIHW", "NCHW"),
        precision=jax.lax.Precision.HIGHEST)


def reference_forward(weight_avg, raw):
    """XLA reference mirroring the torch math for the i != 8 path (eval-mode BN)."""
    W = weight_avg.shape[-1]
    T = weight_avg.size // W
    x = weight_avg.reshape(T, 1, 1, 1, W).astype(jnp.float32)
    seq = jnp.transpose(x, (1, 0, 2, 3, 4))                 # batch_first: (1, T, 1, 1, W)
    for layer in range(2):
        w = raw[f"lstm{layer}_conv_w"]
        h = jnp.zeros((1, HIDDEN, 1, W), jnp.float32)
        c = jnp.zeros((1, HIDDEN, 1, W), jnp.float32)
        outs = []
        for t in range(T):
            comb = jnp.concatenate([seq[:, t], h], axis=1)
            cc = _conv2d_nchw(comb, w)
            ci, cf, co, cg = jnp.split(cc, NUM_GATES, axis=1)
            ig, fg, og, gg = _sigmoid_ref(ci), _sigmoid_ref(cf), _sigmoid_ref(co), jnp.tanh(cg)
            c = fg * c + ig * gg
            h = og * jnp.tanh(c)
            outs.append(h)
        seq = jnp.stack(outs, axis=1)
    pr = seq[0]                                             # (T, Hd, 1, W)

    def sepconv_sigmoid(xx, w, gamma, beta, mean, var):
        y = _conv2d_nchw(xx, w)
        y = (y - mean[None, :, None, None]) / jnp.sqrt(var[None, :, None, None] + BN_EPS)
        y = y * gamma[None, :, None, None] + beta[None, :, None, None]
        return _sigmoid_ref(y)

    p1 = sepconv_sigmoid(pr, raw["c1_conv_w"], raw["c1_gamma"], raw["c1_beta"],
                         raw["c1_mean"], raw["c1_var"])
    p2 = sepconv_sigmoid(p1, raw["c2_conv_w"], raw["c2_gamma"], raw["c2_beta"],
                         raw["c2_mean"], raw["c2_var"])
    return p2                                               # (T, 1, 1, W)


# ----------------------------------------------------------------------------- demo
if __name__ == "__main__":
    key = jax.random.PRNGKey(0)
    ks = jax.random.split(key, 16)

    T, W = 8, 128                                   # seq_len=8, lane-dense row width
    weight_avg = jax.random.normal(ks[0], (T, W), jnp.float32)

    def u(k, shape, scale=0.3):
        return jax.random.uniform(k, shape, jnp.float32, minval=-scale, maxval=scale)

    # raw parameters in torch layout
    raw = {
        "lstm0_conv_w": u(ks[1], (NUM_GATES * HIDDEN, 1 + HIDDEN, 3, 3)),
        "lstm1_conv_w": u(ks[2], (NUM_GATES * HIDDEN, HIDDEN + HIDDEN, 3, 3)),
        "c1_conv_w": u(ks[3], (HIDDEN, HIDDEN, 3, 3)),
        "c1_gamma": jax.random.uniform(ks[4], (HIDDEN,), jnp.float32, minval=0.5, maxval=1.5),
        "c1_beta": u(ks[5], (HIDDEN,), 0.1),
        "c1_mean": u(ks[6], (HIDDEN,), 0.1),
        "c1_var": jax.random.uniform(ks[7], (HIDDEN,), jnp.float32, minval=0.5, maxval=1.5),
        "c2_conv_w": u(ks[8], (1, HIDDEN, 3, 3)),
        "c2_gamma": jax.random.uniform(ks[9], (1,), jnp.float32, minval=0.5, maxval=1.5),
        "c2_beta": u(ks[10], (1,), 0.1),
        "c2_mean": u(ks[11], (1,), 0.1),
        "c2_var": jax.random.uniform(ks[12], (1,), jnp.float32, minval=0.5, maxval=1.5),
    }

    params = {
        "lstm0_wg": _lstm_gate_weights(raw["lstm0_conv_w"], c_in=1),
        "lstm1_wg": _lstm_gate_weights(raw["lstm1_conv_w"], c_in=HIDDEN),
    }
    params["c1_w"], params["c1_shift"] = _classifier_params(
        raw["c1_conv_w"], raw["c1_gamma"], raw["c1_beta"], raw["c1_mean"], raw["c1_var"])
    params["c2_w"], params["c2_shift"] = _classifier_params(
        raw["c2_conv_w"], raw["c2_gamma"], raw["c2_beta"], raw["c2_mean"], raw["c2_var"])

    out = astro_network_4_forward(weight_avg, 0, params)
    out = jax.block_until_ready(out)
    assert out.shape == (T, 1, 1, W), out.shape

    ref = reference_forward(weight_avg, raw)
    max_diff = float(jnp.max(jnp.abs(out - ref)))
    assert jnp.allclose(out, ref, atol=1e-3, rtol=1e-3), f"max diff {max_diff}"

    print("KERNEL_OK")
</pallas_src>

<mosaic_0001>
module attributes {stable_mosaic.version = 11 : i64} {
  func.func @kernel(%arg0: memref<8x1024xf32, #tpu.memory_space<vmem>>, %arg1: memref<1x1024xf32, #tpu.memory_space<vmem>>, %arg2: memref<1x1024xf32, #tpu.memory_space<vmem>>, %arg3: memref<32x48xf32, #tpu.memory_space<vmem>>, %arg4: memref<32x48xf32, #tpu.memory_space<vmem>>, %arg5: memref<8x24xf32, #tpu.memory_space<vmem>>, %arg6: memref<8x1xf32, #tpu.memory_space<vmem>>, %arg7: memref<8x24xf32, #tpu.memory_space<vmem>>, %arg8: memref<8x1xf32, #tpu.memory_space<vmem>>, %arg9: memref<8x1024xf32, #tpu.memory_space<vmem>>) attributes {dimension_semantics = [], scalar_prefetch = 0 : i64, scratch_operands = 0 : i64, tpu.core_type = #tpu.core_type<tc>} {
    %c0 = arith.constant 0 : index
    %c0_0 = arith.constant 0 : index
    %0 = vector.load %arg1[%c0, %c0_0] : memref<1x1024xf32, #tpu.memory_space<vmem>>, vector<1x1024xf32>
    %c0_1 = arith.constant 0 : index
    %c0_2 = arith.constant 0 : index
    %1 = vector.load %arg2[%c0_1, %c0_2] : memref<1x1024xf32, #tpu.memory_space<vmem>>, vector<1x1024xf32>
    %2 = vector.extract_strided_slice %0 {offsets = [0, 0], sizes = [1, 128], strides = [1, 1]} : vector<1x1024xf32> to vector<1x128xf32>
    %3 = vector.extract_strided_slice %1 {offsets = [0, 0], sizes = [1, 128], strides = [1, 1]} : vector<1x1024xf32> to vector<1x128xf32>
    %c0_3 = arith.constant 0 : index
    %c0_4 = arith.constant 0 : index
    %4 = vector.load %arg3[%c0_3, %c0_4] : memref<32x48xf32, #tpu.memory_space<vmem>>, vector<32x48xf32>
    %c0_5 = arith.constant 0 : index
    %c0_6 = arith.constant 0 : index
    %5 = vector.load %arg4[%c0_5, %c0_6] : memref<32x48xf32, #tpu.memory_space<vmem>>, vector<32x48xf32>
    %cst = arith.constant 0.000000e+00 : f32
    %6 = vector.broadcast %cst : f32 to vector<8x128xf32>
    %c0_7 = arith.constant 0 : index
    %c0_8 = arith.constant 0 : index
    %7 = vector.load %arg0[%c0_7, %c0_8] : memref<8x1024xf32, #tpu.memory_space<vmem>>, vector<8x128xf32>
    %8 = tpu.concatenate %7, %6 in 0 : vector<8x128xf32>, vector<8x128xf32> -> vector<16x128xf32>
    %c1_i32 = arith.constant 1 : i32
    %9 = tpu.dynamic_rotate %8 by %c1_i32 dim 1 : vector<16x128xf32>, i32 -> vector<16x128xf32>
    %10 = vector.broadcast %2 : vector<1x128xf32> to vector<16x128xf32>
    %11 = arith.mulf %9, %10 : vector<16x128xf32>
    %c127_i32 = arith.constant 127 : i32
    %12 = tpu.dynamic_rotate %8 by %c127_i32 dim 1 : vector<16x128xf32>, i32 -> vector<16x128xf32>
    %13 = vector.broadcast %3 : vector<1x128xf32> to vector<16x128xf32>
    %14 = arith.mulf %12, %13 : vector<16x128xf32>
    %15 = tpu.concatenate %11, %8, %14 in 0 : vector<16x128xf32>, vector<16x128xf32>, vector<16x128xf32> -> vector<48x128xf32>
    %cst_9 = arith.constant dense<0.000000e+00> : vector<32x128xf32>
    %16 = tpu.matmul %4, %15, %cst_9 {dimension_numbers = #tpu.dot_dimension_numbers<[1], [0], [0], [1], [0, 0, 1, 1], [], []>} : vector<32x48xf32>, vector<48x128xf32>, vector<32x128xf32> -> vector<32x128xf32>
    %17 = vector.extract_strided_slice %16 {offsets = [0, 0], sizes = [8, 128], strides = [1, 1]} : vector<32x128xf32> to vector<8x128xf32>
    %cst_10 = arith.constant 5.000000e-01 : f32
    %18 = vector.broadcast %cst_10 : f32 to vector<8x128xf32>
    %19 = arith.mulf %18, %17 : vector<8x128xf32>
    %20 = math.tanh %19 : vector<8x128xf32>
    %cst_11 = arith.constant 5.000000e-01 : f32
    %21 = vector.broadcast %cst_11 : f32 to vector<8x128xf32>
    %22 = arith.mulf %21, %20 : vector<8x128xf32>
    %cst_12 = arith.constant 5.000000e-01 : f32
    %23 = vector.broadcast %cst_12 : f32 to vector<8x128xf32>
    %24 = arith.addf %22, %23 : vector<8x128xf32>
    %25 = vector.extract_strided_slice %16 {offsets = [8, 0], sizes = [8, 128], strides = [1, 1]} : vector<32x128xf32> to vector<8x128xf32>
    %cst_13 = arith.constant 5.000000e-01 : f32
    %26 = vector.broadcast %cst_13 : f32 to vector<8x128xf32>
    %27 = arith.mulf %26, %25 : vector<8x128xf32>
    %28 = math.tanh %27 : vector<8x128xf32>
    %cst_14 = arith.constant 5.000000e-01 : f32
    %29 = vector.broadcast %cst_14 : f32 to vector<8x128xf32>
    %30 = arith.mulf %29, %28 : vector<8x128xf32>
    %cst_15 = arith.constant 5.000000e-01 : f32
    %31 = vector.broadcast %cst_15 : f32 to vector<8x128xf32>
    %32 = arith.addf %30, %31 : vector<8x128xf32>
    %33 = vector.extract_strided_slice %16 {offsets = [16, 0], sizes = [8, 128], strides = [1, 1]} : vector<32x128xf32> to vector<8x128xf32>
    %cst_16 = arith.constant 5.000000e-01 : f32
    %34 = vector.broadcast %cst_16 : f32 to vector<8x128xf32>
    %35 = arith.mulf %34, %33 : vector<8x128xf32>
    %36 = math.tanh %35 : vector<8x128xf32>
    %cst_17 = arith.constant 5.000000e-01 : f32
    %37 = vector.broadcast %cst_17 : f32 to vector<8x128xf32>
    %38 = arith.mulf %37, %36 : vector<8x128xf32>
    %cst_18 = arith.constant 5.000000e-01 : f32
    %39 = vector.broadcast %cst_18 : f32 to vector<8x128xf32>
    %40 = arith.addf %38, %39 : vector<8x128xf32>
    %41 = vector.extract_strided_slice %16 {offsets = [24, 0], sizes = [8, 128], strides = [1, 1]} : vector<32x128xf32> to vector<8x128xf32>
    %42 = math.tanh %41 : vector<8x128xf32>
    %43 = arith.mulf %32, %6 : vector<8x128xf32>
    %44 = arith.mulf %24, %42 : vector<8x128xf32>
    %45 = arith.addf %43, %44 : vector<8x128xf32>
    %46 = math.tanh %45 : vector<8x128xf32>
    %47 = arith.mulf %40, %46 : vector<8x128xf32>
    %48 = tpu.concatenate %47, %6 in 0 : vector<8x128xf32>, vector<8x128xf32> -> vector<16x128xf32>
    %c1_i32_19 = arith.constant 1 : i32
    %49 = tpu.dynamic_rotate %48 by %c1_i32_19 dim 1 : vector<16x128xf32>, i32 -> vector<16x128xf32>
    %50 = vector.broadcast %2 : vector<1x128xf32> to vector<16x128xf32>
    %51 = arith.mulf %49, %50 : vector<16x128xf32>
    %c127_i32_20 = arith.constant 127 : i32
    %52 = tpu.dynamic_rotate %48 by %c127_i32_20 dim 1 : vector<16x128xf32>, i32 -> vector<16x128xf32>
    %53 = vector.broadcast %3 : vector<1x128xf32> to vector<16x128xf32>
    %54 = arith.mulf %52, %53 : vector<16x128xf32>
    %55 = tpu.concatenate %51, %48, %54 in 0 : vector<16x128xf32>, vector<16x128xf32>, vector<16x128xf32> -> vector<48x128xf32>
    %cst_21 = arith.constant dense<0.000000e+00> : vector<32x128xf32>
    %56 = tpu.matmul %5, %55, %cst_21 {dimension_numbers = #tpu.dot_dimension_numbers<[1], [0], [0], [1], [0, 0, 1, 1], [], []>} : vector<32x48xf32>, vector<48x128xf32>, vector<32x128xf32> -> vector<32x128xf32>
    %57 = vector.extract_strided_slice %56 {offsets = [0, 0], sizes = [8, 128], strides = [1, 1]} : vector<32x128xf32> to vector<8x128xf32>
    %cst_22 = arith.constant 5.000000e-01 : f32
    %58 = vector.broadcast %cst_22 : f32 to vector<8x128xf32>
    %59 = arith.mulf %58, %57 : vector<8x128xf32>
    %60 = math.tanh %59 : vector<8x128xf32>
    %cst_23 = arith.constant 5.000000e-01 : f32
    %61 = vector.broadcast %cst_23 : f32 to vector<8x128xf32>
    %62 = arith.mulf %61, %60 : vector<8x128xf32>
    %cst_24 = arith.constant 5.000000e-01 : f32
    %63 = vector.broadcast %cst_24 : f32 to vector<8x128xf32>
    %64 = arith.addf %62, %63 : vector<8x128xf32>
    %65 = vector.extract_strided_slice %56 {offsets = [8, 0], sizes = [8, 128], strides = [1, 1]} : vector<32x128xf32> to vector<8x128xf32>
    %cst_25 = arith.constant 5.000000e-01 : f32
    %66 = vector.broadcast %cst_25 : f32 to vector<8x128xf32>
    %67 = arith.mulf %66, %65 : vector<8x128xf32>
    %68 = math.tanh %67 : vector<8x128xf32>
    %cst_26 = arith.constant 5.000000e-01 : f32
    %69 = vector.broadcast %cst_26 : f32 to vector<8x128xf32>
    %70 = arith.mulf %69, %68 : vector<8x128xf32>
    %cst_27 = arith.constant 5.000000e-01 : f32
    %71 = vector.broadcast %cst_27 : f32 to vector<8x128xf32>
    %72 = arith.addf %70, %71 : vector<8x128xf32>
    %73 = vector.extract_strided_slice %56 {offsets = [16, 0], sizes = [8, 128], strides = [1, 1]} : vector<32x128xf32> to vector<8x128xf32>
    %cst_28 = arith.constant 5.000000e-01 : f32
    %74 = vector.broadcast %cst_28 : f32 to vector<8x128xf32>
    %75 = arith.mulf %74, %73 : vector<8x128xf32>
    %76 = math.tanh %75 : vector<8x128xf32>
    %cst_29 = arith.constant 5.000000e-01 : f32
    %77 = vector.broadcast %cst_29 : f32 to vector<8x128xf32>
    %78 = arith.mulf %77, %76 : vector<8x128xf32>
    %cst_30 = arith.constant 5.000000e-01 : f32
    %79 = vector.broadcast %cst_30 : f32 to vector<8x128xf32>
    %80 = arith.addf %78, %79 : vector<8x128xf32>
    %81 = vector.extract_strided_slice %56 {offsets = [24, 0], sizes = [8, 128], strides = [1, 1]} : vector<32x128xf32> to vector<8x128xf32>
    %82 = math.tanh %81 : vector<8x128xf32>
    %83 = arith.mulf %72, %6 : vector<8x128xf32>
    %84 = arith.mulf %64, %82 : vector<8x128xf32>
    %85 = arith.addf %83, %84 : vector<8x128xf32>
    %86 = math.tanh %85 : vector<8x128xf32>
    %87 = arith.mulf %80, %86 : vector<8x128xf32>
    %c0_31 = arith.constant 0 : index
    %c128 = arith.constant 128 : index
    %88 = vector.load %arg0[%c0_31, %c128] : memref<8x1024xf32, #tpu.memory_space<vmem>>, vector<8x128xf32>
    %89 = tpu.concatenate %88, %47 in 0 : vector<8x128xf32>, vector<8x128xf32> -> vector<16x128xf32>
    %c1_i32_32 = arith.constant 1 : i32
    %90 = tpu.dynamic_rotate %89 by %c1_i32_32 dim 1 : vector<16x128xf32>, i32 -> vector<16x128xf32>
    %91 = vector.broadcast %2 : vector<1x128xf32> to vector<16x128xf32>
    %92 = arith.mulf %90, %91 : vector<16x128xf32>
    %c127_i32_33 = arith.constant 127 : i32
    %93 = tpu.dynamic_rotate %89 by %c127_i32_33 dim 1 : vector<16x128xf32>, i32 -> vector<16x128xf32>
    %94 = vector.broadcast %3 : vector<1x128xf32> to vector<16x128xf32>
    %95 = arith.mulf %93, %94 : vector<16x128xf32>
    %96 = tpu.concatenate %92, %89, %95 in 0 : vector<16x128xf32>, vector<16x128xf32>, vector<16x128xf32> -> vector<48x128xf32>
    %cst_34 = arith.constant dense<0.000000e+00> : vector<32x128xf32>
    %97 = tpu.matmul %4, %96, %cst_34 {dimension_numbers = #tpu.dot_dimension_numbers<[1], [0], [0], [1], [0, 0, 1, 1], [], []>} : vector<32x48xf32>, vector<48x128xf32>, vector<32x128xf32> -> vector<32x128xf32>
    %98 = vector.extract_strided_slice %97 {offsets = [0, 0], sizes = [8, 128], strides = [1, 1]} : vector<32x128xf32> to vector<8x128xf32>
    %cst_35 = arith.constant 5.000000e-01 : f32
    %99 = vector.broadcast %cst_35 : f32 to vector<8x128xf32>
    %100 = arith.mulf %99, %98 : vector<8x128xf32>
    %101 = math.tanh %100 : vector<8x128xf32>
    %cst_36 = arith.constant 5.000000e-01 : f32
    %102 = vector.broadcast %cst_36 : f32 to vector<8x128xf32>
    %103 = arith.mulf %102, %101 : vector<8x128xf32>
    %cst_37 = arith.constant 5.000000e-01 : f32
    %104 = vector.broadcast %cst_37 : f32 to vector<8x128xf32>
    %105 = arith.addf %103, %104 : vector<8x128xf32>
    %106 = vector.extract_strided_slice %97 {offsets = [8, 0], sizes = [8, 128], strides = [1, 1]} : vector<32x128xf32> to vector<8x128xf32>
    %cst_38 = arith.constant 5.000000e-01 : f32
    %107 = vector.broadcast %cst_38 : f32 to vector<8x128xf32>
    %108 = arith.mulf %107, %106 : vector<8x128xf32>
    %109 = math.tanh %108 : vector<8x128xf32>
    %cst_39 = arith.constant 5.000000e-01 : f32
    %110 = vector.broadcast %cst_39 : f32 to vector<8x128xf32>
    %111 = arith.mulf %110, %109 : vector<8x128xf32>
    %cst_40 = arith.constant 5.000000e-01 : f32
    %112 = vector.broadcast %cst_40 : f32 to vector<8x128xf32>
    %113 = arith.addf %111, %112 : vector<8x128xf32>
    %114 = vector.extract_strided_slice %97 {offsets = [16, 0], sizes = [8, 128], strides = [1, 1]} : vector<32x128xf32> to vector<8x128xf32>
    %cst_41 = arith.constant 5.000000e-01 : f32
    %115 = vector.broadcast %cst_41 : f32 to vector<8x128xf32>
    %116 = arith.mulf %115, %114 : vector<8x128xf32>
    %117 = math.tanh %116 : vector<8x128xf32>
    %cst_42 = arith.constant 5.000000e-01 : f32
    %118 = vector.broadcast %cst_42 : f32 to vector<8x128xf32>
    %119 = arith.mulf %118, %117 : vector<8x128xf32>
    %cst_43 = arith.constant 5.000000e-01 : f32
    %120 = vector.broadcast %cst_43 : f32 to vector<8x128xf32>
    %121 = arith.addf %119, %120 : vector<8x128xf32>
    %122 = vector.extract_strided_slice %97 {offsets = [24, 0], sizes = [8, 128], strides = [1, 1]} : vector<32x128xf32> to vector<8x128xf32>
    %123 = math.tanh %122 : vector<8x128xf32>
    %124 = arith.mulf %113, %45 : vector<8x128xf32>
    %125 = arith.mulf %105, %123 : vector<8x128xf32>
    %126 = arith.addf %124, %125 : vector<8x128xf32>
    %127 = math.tanh %126 : vector<8x128xf32>
    %128 = arith.mulf %121, %127 : vector<8x128xf32>
    %129 = tpu.concatenate %128, %87 in 0 : vector<8x128xf32>, vector<8x128xf32> -> vector<16x128xf32>
    %c1_i32_44 = arith.constant 1 : i32
    %130 = tpu.dynamic_rotate %129 by %c1_i32_44 dim 1 : vector<16x128xf32>, i32 -> vector<16x128xf32>
    %131 = vector.broadcast %2 : vector<1x128xf32> to vector<16x128xf32>
    %132 = arith.mulf %130, %131 : vector<16x128xf32>
    %c127_i32_45 = arith.constant 127 : i32
    %133 = tpu.dynamic_rotate %129 by %c127_i32_45 dim 1 : vector<16x128xf32>, i32 -> vector<16x128xf32>
    %134 = vector.broadcast %3 : vector<1x128xf32> to vector<16x128xf32>
    %135 = arith.mulf %133, %134 : vector<16x128xf32>
    %136 = tpu.concatenate %132, %129, %135 in 0 : vector<16x128xf32>, vector<16x128xf32>, vector<16x128xf32> -> vector<48x128xf32>
    %cst_46 = arith.constant dense<0.000000e+00> : vector<32x128xf32>
    %137 = tpu.matmul %5, %136, %cst_46 {dimension_numbers = #tpu.dot_dimension_numbers<[1], [0], [0], [1], [0, 0, 1, 1], [], []>} : vector<32x48xf32>, vector<48x128xf32>, vector<32x128xf32> -> vector<32x128xf32>
    %138 = vector.extract_strided_slice %137 {offsets = [0, 0], sizes = [8, 128], strides = [1, 1]} : vector<32x128xf32> to vector<8x128xf32>
    %cst_47 = arith.constant 5.000000e-01 : f32
    %139 = vector.broadcast %cst_47 : f32 to vector<8x128xf32>
    %140 = arith.mulf %139, %138 : vector<8x128xf32>
    %141 = math.tanh %140 : vector<8x128xf32>
    %cst_48 = arith.constant 5.000000e-01 : f32
    %142 = vector.broadcast %cst_48 : f32 to vector<8x128xf32>
    %143 = arith.mulf %142, %141 : vector<8x128xf32>
    %cst_49 = arith.constant 5.000000e-01 : f32
    %144 = vector.broadcast %cst_49 : f32 to vector<8x128xf32>
    %145 = arith.addf %143, %144 : vector<8x128xf32>
    %146 = vector.extract_strided_slice %137 {offsets = [8, 0], sizes = [8, 128], strides = [1, 1]} : vector<32x128xf32> to vector<8x128xf32>
    %cst_50 = arith.constant 5.000000e-01 : f32
    %147 = vector.broadcast %cst_50 : f32 to vector<8x128xf32>
    %148 = arith.mulf %147, %146 : vector<8x128xf32>
    %149 = math.tanh %148 : vector<8x128xf32>
    %cst_51 = arith.constant 5.000000e-01 : f32
    %150 = vector.broadcast %cst_51 : f32 to vector<8x128xf32>
    %151 = arith.mulf %150, %149 : vector<8x128xf32>
    %cst_52 = arith.constant 5.000000e-01 : f32
    %152 = vector.broadcast %cst_52 : f32 to vector<8x128xf32>
    %153 = arith.addf %151, %152 : vector<8x128xf32>
    %154 = vector.extract_strided_slice %137 {offsets = [16, 0], sizes = [8, 128], strides = [1, 1]} : vector<32x128xf32> to vector<8x128xf32>
    %cst_53 = arith.constant 5.000000e-01 : f32
    %155 = vector.broadcast %cst_53 : f32 to vector<8x128xf32>
    %156 = arith.mulf %155, %154 : vector<8x128xf32>
    %157 = math.tanh %156 : vector<8x128xf32>
    %cst_54 = arith.constant 5.000000e-01 : f32
    %158 = vector.broadcast %cst_54 : f32 to vector<8x128xf32>
    %159 = arith.mulf %158, %157 : vector<8x128xf32>
    %cst_55 = arith.constant 5.000000e-01 : f32
    %160 = vector.broadcast %cst_55 : f32 to vector<8x128xf32>
    %161 = arith.addf %159, %160 : vector<8x128xf32>
    %162 = vector.extract_strided_slice %137 {offsets = [24, 0], sizes = [8, 128], strides = [1, 1]} : vector<32x128xf32> to vector<8x128xf32>
    %163 = math.tanh %162 : vector<8x128xf32>
    %164 = arith.mulf %153, %85 : vector<8x128xf32>
    %165 = arith.mulf %145, %163 : vector<8x128xf32>
    %166 = arith.addf %164, %165 : vector<8x128xf32>
    %167 = math.tanh %166 : vector<8x128xf32>
    %168 = arith.mulf %161, %167 : vector<8x128xf32>
    %c0_56 = arith.constant 0 : index
    %c256 = arith.constant 256 : index
    %169 = vector.load %arg0[%c0_56, %c256] : memref<8x1024xf32, #tpu.memory_space<vmem>>, vector<8x128xf32>
    %170 = tpu.concatenate %169, %128 in 0 : vector<8x128xf32>, vector<8x128xf32> -> vector<16x128xf32>
    %c1_i32_57 = arith.constant 1 : i32
    %171 = tpu.dynamic_rotate %170 by %c1_i32_57 dim 1 : vector<16x128xf32>, i32 -> vector<16x128xf32>
    %172 = vector.broadcast %2 : vector<1x128xf32> to vector<16x128xf32>
    %173 = arith.mulf %171, %172 : vector<16x128xf32>
    %c127_i32_58 = arith.constant 127 : i32
    %174 = tpu.dynamic_rotate %170 by %c127_i32_58 dim 1 : vector<16x128xf32>, i32 -> vector<16x128xf32>
    %175 = vector.broadcast %3 : vector<1x128xf32> to vector<16x128xf32>
    %176 = arith.mulf %174, %175 : vector<16x128xf32>
    %177 = tpu.concatenate %173, %170, %176 in 0 : vector<16x128xf32>, vector<16x128xf32>, vector<16x128xf32> -> vector<48x128xf32>
    %cst_59 = arith.constant dense<0.000000e+00> : vector<32x128xf32>
    %178 = tpu.matmul %4, %177, %cst_59 {dimension_numbers = #tpu.dot_dimension_numbers<[1], [0], [0], [1], [0, 0, 1, 1], [], []>} : vector<32x48xf32>, vector<48x128xf32>, vector<32x128xf32> -> vector<32x128xf32>
    %179 = vector.extract_strided_slice %178 {offsets = [0, 0], sizes = [8, 128], strides = [1, 1]} : vector<32x128xf32> to vector<8x128xf32>
    %cst_60 = arith.constant 5.000000e-01 : f32
    %180 = vector.broadcast %cst_60 : f32 to vector<8x128xf32>
    %181 = arith.mulf %180, %179 : vector<8x128xf32>
    %182 = math.tanh %181 : vector<8x128xf32>
    %cst_61 = arith.constant 5.000000e-01 : f32
    %183 = vector.broadcast %cst_61 : f32 to vector<8x128xf32>
    %184 = arith.mulf %183, %182 : vector<8x128xf32>
    %cst_62 = arith.constant 5.000000e-01 : f32
    %185 = vector.broadcast %cst_62 : f32 to vector<8x128xf32>
    %186 = arith.addf %184, %185 : vector<8x128xf32>
    %187 = vector.extract_strided_slice %178 {offsets = [8, 0], sizes = [8, 128], strides = [1, 1]} : vector<32x128xf32> to vector<8x128xf32>
    %cst_63 = arith.constant 5.000000e-01 : f32
    %188 = vector.broadcast %cst_63 : f32 to vector<8x128xf32>
    %189 = arith.mulf %188, %187 : vector<8x128xf32>
    %190 = math.tanh %189 : vector<8x128xf32>
    %cst_64 = arith.constant 5.000000e-01 : f32
    %191 = vector.broadcast %cst_64 : f32 to vector<8x128xf32>
    %192 = arith.mulf %191, %190 : vector<8x128xf32>
    %cst_65 = arith.constant 5.000000e-01 : f32
    %193 = vector.broadcast %cst_65 : f32 to vector<8x128xf32>
    %194 = arith.addf %192, %193 : vector<8x128xf32>
    %195 = vector.extract_strided_slice %178 {offsets = [16, 0], sizes = [8, 128], strides = [1, 1]} : vector<32x128xf32> to vector<8x128xf32>
    %cst_66 = arith.constant 5.000000e-01 : f32
    %196 = vector.broadcast %cst_66 : f32 to vector<8x128xf32>
    %197 = arith.mulf %196, %195 : vector<8x128xf32>
    %198 = math.tanh %197 : vector<8x128xf32>
    %cst_67 = arith.constant 5.000000e-01 : f32
    %199 = vector.broadcast %cst_67 : f32 to vector<8x128xf32>
    %200 = arith.mulf %199, %198 : vector<8x128xf32>
    %cst_68 = arith.constant 5.000000e-01 : f32
    %201 = vector.broadcast %cst_68 : f32 to vector<8x128xf32>
    %202 = arith.addf %200, %201 : vector<8x128xf32>
    %203 = vector.extract_strided_slice %178 {offsets = [24, 0], sizes = [8, 128], strides = [1, 1]} : vector<32x128xf32> to vector<8x128xf32>
    %204 = math.tanh %203 : vector<8x128xf32>
    %205 = arith.mulf %194, %126 : vector<8x128xf32>
    %206 = arith.mulf %186, %204 : vector<8x128xf32>
    %207 = arith.addf %205, %206 : vector<8x128xf32>
    %208 = math.tanh %207 : vector<8x128xf32>
    %209 = arith.mulf %202, %208 : vector<8x128xf32>
    %210 = tpu.concatenate %209, %168 in 0 : vector<8x128xf32>, vector<8x128xf32> -> vector<16x128xf32>
    %c1_i32_69 = arith.constant 1 : i32
    %211 = tpu.dynamic_rotate %210 by %c1_i32_69 dim 1 : vector<16x128xf32>, i32 -> vector<16x128xf32>
    %212 = vector.broadcast %2 : vector<1x128xf32> to vector<16x128xf32>
    %213 = arith.mulf %211, %212 : vector<16x128xf32>
    %c127_i32_70 = arith.constant 127 : i32
    %214 = tpu.dynamic_rotate %210 by %c127_i32_70 dim 1 : vector<16x128xf32>, i32 -> vector<16x128xf32>
    %215 = vector.broadcast %3 : vector<1x128xf32> to vector<16x128xf32>
    %216 = arith.mulf %214, %215 : vector<16x128xf32>
    %217 = tpu.concatenate %213, %210, %216 in 0 : vector<16x128xf32>, vector<16x128xf32>, vector<16x128xf32> -> vector<48x128xf32>
    %cst_71 = arith.constant dense<0.000000e+00> : vector<32x128xf32>
    %218 = tpu.matmul %5, %217, %cst_71 {dimension_numbers = #tpu.dot_dimension_numbers<[1], [0], [0], [1], [0, 0, 1, 1], [], []>} : vector<32x48xf32>, vector<48x128xf32>, vector<32x128xf32> -> vector<32x128xf32>
    %219 = vector.extract_strided_slice %218 {offsets = [0, 0], sizes = [8, 128], strides = [1, 1]} : vector<32x128xf32> to vector<8x128xf32>
    %cst_72 = arith.constant 5.000000e-01 : f32
    %220 = vector.broadcast %cst_72 : f32 to vector<8x128xf32>
    %221 = arith.mulf %220, %219 : vector<8x128xf32>
    %222 = math.tanh %221 : vector<8x128xf32>
    %cst_73 = arith.constant 5.000000e-01 : f32
    %223 = vector.broadcast %cst_73 : f32 to vector<8x128xf32>
    %224 = arith.mulf %223, %222 : vector<8x128xf32>
    %cst_74 = arith.constant 5.000000e-01 : f32
    %225 = vector.broadcast %cst_74 : f32 to vector<8x128xf32>
    %226 = arith.addf %224, %225 : vector<8x128xf32>
    %227 = vector.extract_strided_slice %218 {offsets = [8, 0], sizes = [8, 128], strides = [1, 1]} : vector<32x128xf32> to vector<8x128xf32>
    %cst_75 = arith.constant 5.000000e-01 : f32
    %228 = vector.broadcast %cst_75 : f32 to vector<8x128xf32>
    %229 = arith.mulf %228, %227 : vector<8x128xf32>
    %230 = math.tanh %229 : vector<8x128xf32>
    %cst_76 = arith.constant 5.000000e-01 : f32
    %231 = vector.broadcast %cst_76 : f32 to vector<8x128xf32>
    %232 = arith.mulf %231, %230 : vector<8x128xf32>
    %cst_77 = arith.constant 5.000000e-01 : f32
    %233 = vector.broadcast %cst_77 : f32 to vector<8x128xf32>
    %234 = arith.addf %232, %233 : vector<8x128xf32>
    %235 = vector.extract_strided_slice %218 {offsets = [16, 0], sizes = [8, 128], strides = [1, 1]} : vector<32x128xf32> to vector<8x128xf32>
    %cst_78 = arith.constant 5.000000e-01 : f32
    %236 = vector.broadcast %cst_78 : f32 to vector<8x128xf32>
    %237 = arith.mulf %236, %235 : vector<8x128xf32>
    %238 = math.tanh %237 : vector<8x128xf32>
    %cst_79 = arith.constant 5.000000e-01 : f32
    %239 = vector.broadcast %cst_79 : f32 to vector<8x128xf32>
    %240 = arith.mulf %239, %238 : vector<8x128xf32>
    %cst_80 = arith.constant 5.000000e-01 : f32
    %241 = vector.broadcast %cst_80 : f32 to vector<8x128xf32>
    %242 = arith.addf %240, %241 : vector<8x128xf32>
    %243 = vector.extract_strided_slice %218 {offsets = [24, 0], sizes = [8, 128], strides = [1, 1]} : vector<32x128xf32> to vector<8x128xf32>
    %244 = math.tanh %243 : vector<8x128xf32>
    %245 = arith.mulf %234, %166 : vector<8x128xf32>
    %246 = arith.mulf %226, %244 : vector<8x128xf32>
    %247 = arith.addf %245, %246 : vector<8x128xf32>
    %248 = math.tanh %247 : vector<8x128xf32>
    %249 = arith.mulf %242, %248 : vector<8x128xf32>
    %c0_81 = arith.constant 0 : index
    %c384 = arith.constant 384 : index
    %250 = vector.load %arg0[%c0_81, %c384] : memref<8x1024xf32, #tpu.memory_space<vmem>>, vector<8x128xf32>
    %251 = tpu.concatenate %250, %209 in 0 : vector<8x128xf32>, vector<8x128xf32> -> vector<16x128xf32>
    %c1_i32_82 = arith.constant 1 : i32
    %252 = tpu.dynamic_rotate %251 by %c1_i32_82 dim 1 : vector<16x128xf32>, i32 -> vector<16x128xf32>
    %253 = vector.broadcast %2 : vector<1x128xf32> to vector<16x128xf32>
    %254 = arith.mulf %252, %253 : vector<16x128xf32>
    %c127_i32_83 = arith.constant 127 : i32
    %255 = tpu.dynamic_rotate %251 by %c127_i32_83 dim 1 : vector<16x128xf32>, i32 -> vector<16x128xf32>
    %256 = vector.broadcast %3 : vector<1x128xf32> to vector<16x128xf32>
    %257 = arith.mulf %255, %256 : vector<16x128xf32>
    %258 = tpu.concatenate %254, %251, %257 in 0 : vector<16x128xf32>, vector<16x128xf32>, vector<16x128xf32> -> vector<48x128xf32>
    %cst_84 = arith.constant dense<0.000000e+00> : vector<32x128xf32>
    %259 = tpu.matmul %4, %258, %cst_84 {dimension_numbers = #tpu.dot_dimension_numbers<[1], [0], [0], [1], [0, 0, 1, 1], [], []>} : vector<32x48xf32>, vector<48x128xf32>, vector<32x128xf32> -> vector<32x128xf32>
    %260 = vector.extract_strided_slice %259 {offsets = [0, 0], sizes = [8, 128], strides = [1, 1]} : vector<32x128xf32> to vector<8x128xf32>
    %cst_85 = arith.constant 5.000000e-01 : f32
    %261 = vector.broadcast %cst_85 : f32 to vector<8x128xf32>
    %262 = arith.mulf %261, %260 : vector<8x128xf32>
    %263 = math.tanh %262 : vector<8x128xf32>
    %cst_86 = arith.constant 5.000000e-01 : f32
    %264 = vector.broadcast %cst_86 : f32 to vector<8x128xf32>
    %265 = arith.mulf %264, %263 : vector<8x128xf32>
    %cst_87 = arith.constant 5.000000e-01 : f32
    %266 = vector.broadcast %cst_87 : f32 to vector<8x128xf32>
    %267 = arith.addf %265, %266 : vector<8x128xf32>
    %268 = vector.extract_strided_slice %259 {offsets = [8, 0], sizes = [8, 128], strides = [1, 1]} : vector<32x128xf32> to vector<8x128xf32>
    %cst_88 = arith.constant 5.000000e-01 : f32
    %269 = vector.broadcast %cst_88 : f32 to vector<8x128xf32>
    %270 = arith.mulf %269, %268 : vector<8x128xf32>
    %271 = math.tanh %270 : vector<8x128xf32>
    %cst_89 = arith.constant 5.000000e-01 : f32
    %272 = vector.broadcast %cst_89 : f32 to vector<8x128xf32>
    %273 = arith.mulf %272, %271 : vector<8x128xf32>
    %cst_90 = arith.constant 5.000000e-01 : f32
    %274 = vector.broadcast %cst_90 : f32 to vector<8x128xf32>
    %275 = arith.addf %273, %274 : vector<8x128xf32>
    %276 = vector.extract_strided_slice %259 {offsets = [16, 0], sizes = [8, 128], strides = [1, 1]} : vector<32x128xf32> to vector<8x128xf32>
    %cst_91 = arith.constant 5.000000e-01 : f32
    %277 = vector.broadcast %cst_91 : f32 to vector<8x128xf32>
    %278 = arith.mulf %277, %276 : vector<8x128xf32>
    %279 = math.tanh %278 : vector<8x128xf32>
    %cst_92 = arith.constant 5.000000e-01 : f32
    %280 = vector.broadcast %cst_92 : f32 to vector<8x128xf32>
    %281 = arith.mulf %280, %279 : vector<8x128xf32>
    %cst_93 = arith.constant 5.000000e-01 : f32
    %282 = vector.broadcast %cst_93 : f32 to vector<8x128xf32>
    %283 = arith.addf %281, %282 : vector<8x128xf32>
    %284 = vector.extract_strided_slice %259 {offsets = [24, 0], sizes = [8, 128], strides = [1, 1]} : vector<32x128xf32> to vector<8x128xf32>
    %285 = math.tanh %284 : vector<8x128xf32>
    %286 = arith.mulf %275, %207 : vector<8x128xf32>
    %287 = arith.mulf %267, %285 : vector<8x128xf32>
    %288 = arith.addf %286, %287 : vector<8x128xf32>
    %289 = math.tanh %288 : vector<8x128xf32>
    %290 = arith.mulf %283, %289 : vector<8x128xf32>
    %291 = tpu.concatenate %290, %249 in 0 : vector<8x128xf32>, vector<8x128xf32> -> vector<16x128xf32>
    %c1_i32_94 = arith.constant 1 : i32
    %292 = tpu.dynamic_rotate %291 by %c1_i32_94 dim 1 : vector<16x128xf32>, i32 -> vector<16x128xf32>
    %293 = vector.broadcast %2 : vector<1x128xf32> to vector<16x128xf32>
    %294 = arith.mulf %292, %293 : vector<16x128xf32>
    %c127_i32_95 = arith.constant 127 : i32
    %295 = tpu.dynamic_rotate %291 by %c127_i32_95 dim 1 : vector<16x128xf32>, i32 -> vector<16x128xf32>
    %296 = vector.broadcast %3 : vector<1x128xf32> to vector<16x128xf32>
    %297 = arith.mulf %295, %296 : vector<16x128xf32>
    %298 = tpu.concatenate %294, %291, %297 in 0 : vector<16x128xf32>, vector<16x128xf32>, vector<16x128xf32> -> vector<48x128xf32>
    %cst_96 = arith.constant dense<0.000000e+00> : vector<32x128xf32>
    %299 = tpu.matmul %5, %298, %cst_96 {dimension_numbers = #tpu.dot_dimension_numbers<[1], [0], [0], [1], [0, 0, 1, 1], [], []>} : vector<32x48xf32>, vector<48x128xf32>, vector<32x128xf32> -> vector<32x128xf32>
    %300 = vector.extract_strided_slice %299 {offsets = [0, 0], sizes = [8, 128], strides = [1, 1]} : vector<32x128xf32> to vector<8x128xf32>
    %cst_97 = arith.constant 5.000000e-01 : f32
    %301 = vector.broadcast %cst_97 : f32 to vector<8x128xf32>
    %302 = arith.mulf %301, %300 : vector<8x128xf32>
    %303 = math.tanh %302 : vector<8x128xf32>
    %cst_98 = arith.constant 5.000000e-01 : f32
    %304 = vector.broadcast %cst_98 : f32 to vector<8x128xf32>
    %305 = arith.mulf %304, %303 : vector<8x128xf32>
    %cst_99 = arith.constant 5.000000e-01 : f32
    %306 = vector.broadcast %cst_99 : f32 to vector<8x128xf32>
    %307 = arith.addf %305, %306 : vector<8x128xf32>
    %308 = vector.extract_strided_slice %299 {offsets = [8, 0], sizes = [8, 128], strides = [1, 1]} : vector<32x128xf32> to vector<8x128xf32>
    %cst_100 = arith.constant 5.000000e-01 : f32
    %309 = vector.broadcast %cst_100 : f32 to vector<8x128xf32>
    %310 = arith.mulf %309, %308 : vector<8x128xf32>
    %311 = math.tanh %310 : vector<8x128xf32>
    %cst_101 = arith.constant 5.000000e-01 : f32
    %312 = vector.broadcast %cst_101 : f32 to vector<8x128xf32>
    %313 = arith.mulf %312, %311 : vector<8x128xf32>
    %cst_102 = arith.constant 5.000000e-01 : f32
    %314 = vector.broadcast %cst_102 : f32 to vector<8x128xf32>
    %315 = arith.addf %313, %314 : vector<8x128xf32>
    %316 = vector.extract_strided_slice %299 {offsets = [16, 0], sizes = [8, 128], strides = [1, 1]} : vector<32x128xf32> to vector<8x128xf32>
    %cst_103 = arith.constant 5.000000e-01 : f32
    %317 = vector.broadcast %cst_103 : f32 to vector<8x128xf32>
    %318 = arith.mulf %317, %316 : vector<8x128xf32>
    %319 = math.tanh %318 : vector<8x128xf32>
    %cst_104 = arith.constant 5.000000e-01 : f32
    %320 = vector.broadcast %cst_104 : f32 to vector<8x128xf32>
    %321 = arith.mulf %320, %319 : vector<8x128xf32>
    %cst_105 = arith.constant 5.000000e-01 : f32
    %322 = vector.broadcast %cst_105 : f32 to vector<8x128xf32>
    %323 = arith.addf %321, %322 : vector<8x128xf32>
    %324 = vector.extract_strided_slice %299 {offsets = [24, 0], sizes = [8, 128], strides = [1, 1]} : vector<32x128xf32> to vector<8x128xf32>
    %325 = math.tanh %324 : vector<8x128xf32>
    %326 = arith.mulf %315, %247 : vector<8x128xf32>
    %327 = arith.mulf %307, %325 : vector<8x128xf32>
    %328 = arith.addf %326, %327 : vector<8x128xf32>
    %329 = math.tanh %328 : vector<8x128xf32>
    %330 = arith.mulf %323, %329 : vector<8x128xf32>
    %c0_106 = arith.constant 0 : index
    %c512 = arith.constant 512 : index
    %331 = vector.load %arg0[%c0_106, %c512] : memref<8x1024xf32, #tpu.memory_space<vmem>>, vector<8x128xf32>
    %332 = tpu.concatenate %331, %290 in 0 : vector<8x128xf32>, vector<8x128xf32> -> vector<16x128xf32>
    %c1_i32_107 = arith.constant 1 : i32
    %333 = tpu.dynamic_rotate %332 by %c1_i32_107 dim 1 : vector<16x128xf32>, i32 -> vector<16x128xf32>
    %334 = vector.broadcast %2 : vector<1x128xf32> to vector<16x128xf32>
    %335 = arith.mulf %333, %334 : vector<16x128xf32>
    %c127_i32_108 = arith.constant 127 : i32
    %336 = tpu.dynamic_rotate %332 by %c127_i32_108 dim 1 : vector<16x128xf32>, i32 -> vector<16x128xf32>
    %337 = vector.broadcast %3 : vector<1x128xf32> to vector<16x128xf32>
    %338 = arith.mulf %336, %337 : vector<16x128xf32>
    %339 = tpu.concatenate %335, %332, %338 in 0 : vector<16x128xf32>, vector<16x128xf32>, vector<16x128xf32> -> vector<48x128xf32>
    %cst_109 = arith.constant dense<0.000000e+00> : vector<32x128xf32>
    %340 = tpu.matmul %4, %339, %cst_109 {dimension_numbers = #tpu.dot_dimension_numbers<[1], [0], [0], [1], [0, 0, 1, 1], [], []>} : vector<32x48xf32>, vector<48x128xf32>, vector<32x128xf32> -> vector<32x128xf32>
    %341 = vector.extract_strided_slice %340 {offsets = [0, 0], sizes = [8, 128], strides = [1, 1]} : vector<32x128xf32> to vector<8x128xf32>
    %cst_110 = arith.constant 5.000000e-01 : f32
    %342 = vector.broadcast %cst_110 : f32 to vector<8x128xf32>
    %343 = arith.mulf %342, %341 : vector<8x128xf32>
    %344 = math.tanh %343 : vector<8x128xf32>
    %cst_111 = arith.constant 5.000000e-01 : f32
    %345 = vector.broadcast %cst_111 : f32 to vector<8x128xf32>
    %346 = arith.mulf %345, %344 : vector<8x128xf32>
    %cst_112 = arith.constant 5.000000e-01 : f32
    %347 = vector.broadcast %cst_112 : f32 to vector<8x128xf32>
    %348 = arith.addf %346, %347 : vector<8x128xf32>
    %349 = vector.extract_strided_slice %340 {offsets = [8, 0], sizes = [8, 128], strides = [1, 1]} : vector<32x128xf32> to vector<8x128xf32>
    %cst_113 = arith.constant 5.000000e-01 : f32
    %350 = vector.broadcast %cst_113 : f32 to vector<8x128xf32>
    %351 = arith.mulf %350, %349 : vector<8x128xf32>
    %352 = math.tanh %351 : vector<8x128xf32>
    %cst_114 = arith.constant 5.000000e-01 : f32
    %353 = vector.broadcast %cst_114 : f32 to vector<8x128xf32>
    %354 = arith.mulf %353, %352 : vector<8x128xf32>
    %cst_115 = arith.constant 5.000000e-01 : f32
    %355 = vector.broadcast %cst_115 : f32 to vector<8x128xf32>
    %356 = arith.addf %354, %355 : vector<8x128xf32>
    %357 = vector.extract_strided_slice %340 {offsets = [16, 0], sizes = [8, 128], strides = [1, 1]} : vector<32x128xf32> to vector<8x128xf32>
    %cst_116 = arith.constant 5.000000e-01 : f32
    %358 = vector.broadcast %cst_116 : f32 to vector<8x128xf32>
    %359 = arith.mulf %358, %357 : vector<8x128xf32>
    %360 = math.tanh %359 : vector<8x128xf32>
    %cst_117 = arith.constant 5.000000e-01 : f32
    %361 = vector.broadcast %cst_117 : f32 to vector<8x128xf32>
    %362 = arith.mulf %361, %360 : vector<8x128xf32>
    %cst_118 = arith.constant 5.000000e-01 : f32
    %363 = vector.broadcast %cst_118 : f32 to vector<8x128xf32>
    %364 = arith.addf %362, %363 : vector<8x128xf32>
    %365 = vector.extract_strided_slice %340 {offsets = [24, 0], sizes = [8, 128], strides = [1, 1]} : vector<32x128xf32> to vector<8x128xf32>
    %366 = math.tanh %365 : vector<8x128xf32>
    %367 = arith.mulf %356, %288 : vector<8x128xf32>
    %368 = arith.mulf %348, %366 : vector<8x128xf32>
    %369 = arith.addf %367, %368 : vector<8x128xf32>
    %370 = math.tanh %369 : vector<8x128xf32>
    %371 = arith.mulf %364, %370 : vector<8x128xf32>
    %372 = tpu.concatenate %371, %330 in 0 : vector<8x128xf32>, vector<8x128xf32> -> vector<16x128xf32>
    %c1_i32_119 = arith.constant 1 : i32
    %373 = tpu.dynamic_rotate %372 by %c1_i32_119 dim 1 : vector<16x128xf32>, i32 -> vector<16x128xf32>
    %374 = vector.broadcast %2 : vector<1x128xf32> to vector<16x128xf32>
    %375 = arith.mulf %373, %374 : vector<16x128xf32>
    %c127_i32_120 = arith.constant 127 : i32
    %376 = tpu.dynamic_rotate %372 by %c127_i32_120 dim 1 : vector<16x128xf32>, i32 -> vector<16x128xf32>
    %377 = vector.broadcast %3 : vector<1x128xf32> to vector<16x128xf32>
    %378 = arith.mulf %376, %377 : vector<16x128xf32>
    %379 = tpu.concatenate %375, %372, %378 in 0 : vector<16x128xf32>, vector<16x128xf32>, vector<16x128xf32> -> vector<48x128xf32>
    %cst_121 = arith.constant dense<0.000000e+00> : vector<32x128xf32>
    %380 = tpu.matmul %5, %379, %cst_121 {dimension_numbers = #tpu.dot_dimension_numbers<[1], [0], [0], [1], [0, 0, 1, 1], [], []>} : vector<32x48xf32>, vector<48x128xf32>, vector<32x128xf32> -> vector<32x128xf32>
    %381 = vector.extract_strided_slice %380 {offsets = [0, 0], sizes = [8, 128], strides = [1, 1]} : vector<32x128xf32> to vector<8x128xf32>
    %cst_122 = arith.constant 5.000000e-01 : f32
    %382 = vector.broadcast %cst_122 : f32 to vector<8x128xf32>
    %383 = arith.mulf %382, %381 : vector<8x128xf32>
    %384 = math.tanh %383 : vector<8x128xf32>
    %cst_123 = arith.constant 5.000000e-01 : f32
    %385 = vector.broadcast %cst_123 : f32 to vector<8x128xf32>
    %386 = arith.mulf %385, %384 : vector<8x128xf32>
    %cst_124 = arith.constant 5.000000e-01 : f32
    %387 = vector.broadcast %cst_124 : f32 to vector<8x128xf32>
    %388 = arith.addf %386, %387 : vector<8x128xf32>
    %389 = vector.extract_strided_slice %380 {offsets = [8, 0], sizes = [8, 128], strides = [1, 1]} : vector<32x128xf32> to vector<8x128xf32>
    %cst_125 = arith.constant 5.000000e-01 : f32
    %390 = vector.broadcast %cst_125 : f32 to vector<8x128xf32>
    %391 = arith.mulf %390, %389 : vector<8x128xf32>
    %392 = math.tanh %391 : vector<8x128xf32>
    %cst_126 = arith.constant 5.000000e-01 : f32
    %393 = vector.broadcast %cst_126 : f32 to vector<8x128xf32>
    %394 = arith.mulf %393, %392 : vector<8x128xf32>
    %cst_127 = arith.constant 5.000000e-01 : f32
    %395 = vector.broadcast %cst_127 : f32 to vector<8x128xf32>
    %396 = arith.addf %394, %395 : vector<8x128xf32>
    %397 = vector.extract_strided_slice %380 {offsets = [16, 0], sizes = [8, 128], strides = [1, 1]} : vector<32x128xf32> to vector<8x128xf32>
    %cst_128 = arith.constant 5.000000e-01 : f32
    %398 = vector.broadcast %cst_128 : f32 to vector<8x128xf32>
    %399 = arith.mulf %398, %397 : vector<8x128xf32>
    %400 = math.tanh %399 : vector<8x128xf32>
    %cst_129 = arith.constant 5.000000e-01 : f32
    %401 = vector.broadcast %cst_129 : f32 to vector<8x128xf32>
    %402 = arith.mulf %401, %400 : vector<8x128xf32>
    %cst_130 = arith.constant 5.000000e-01 : f32
    %403 = vector.broadcast %cst_130 : f32 to vector<8x128xf32>
    %404 = arith.addf %402, %403 : vector<8x128xf32>
    %405 = vector.extract_strided_slice %380 {offsets = [24, 0], sizes = [8, 128], strides = [1, 1]} : vector<32x128xf32> to vector<8x128xf32>
    %406 = math.tanh %405 : vector<8x128xf32>
    %407 = arith.mulf %396, %328 : vector<8x128xf32>
    %408 = arith.mulf %388, %406 : vector<8x128xf32>
    %409 = arith.addf %407, %408 : vector<8x128xf32>
    %410 = math.tanh %409 : vector<8x128xf32>
    %411 = arith.mulf %404, %410 : vector<8x128xf32>
    %c0_131 = arith.constant 0 : index
    %c640 = arith.constant 640 : index
    %412 = vector.load %arg0[%c0_131, %c640] : memref<8x1024xf32, #tpu.memory_space<vmem>>, vector<8x128xf32>
    %413 = tpu.concatenate %412, %371 in 0 : vector<8x128xf32>, vector<8x128xf32> -> vector<16x128xf32>
    %c1_i32_132 = arith.constant 1 : i32
    %414 = tpu.dynamic_rotate %413 by %c1_i32_132 dim 1 : vector<16x128xf32>, i32 -> vector<16x128xf32>
    %415 = vector.broadcast %2 : vector<1x128xf32> to vector<16x128xf32>
    %416 = arith.mulf %414, %415 : vector<16x128xf32>
    %c127_i32_133 = arith.constant 127 : i32
    %417 = tpu.dynamic_rotate %413 by %c127_i32_133 dim 1 : vector<16x128xf32>, i32 -> vector<16x128xf32>
    %418 = vector.broadcast %3 : vector<1x128xf32> to vector<16x128xf32>
    %419 = arith.mulf %417, %418 : vector<16x128xf32>
    %420 = tpu.concatenate %416, %413, %419 in 0 : vector<16x128xf32>, vector<16x128xf32>, vector<16x128xf32> -> vector<48x128xf32>
    %cst_134 = arith.constant dense<0.000000e+00> : vector<32x128xf32>
    %421 = tpu.matmul %4, %420, %cst_134 {dimension_numbers = #tpu.dot_dimension_numbers<[1], [0], [0], [1], [0, 0, 1, 1], [], []>} : vector<32x48xf32>, vector<48x128xf32>, vector<32x128xf32> -> vector<32x128xf32>
    %422 = vector.extract_strided_slice %421 {offsets = [0, 0], sizes = [8, 128], strides = [1, 1]} : vector<32x128xf32> to vector<8x128xf32>
    %cst_135 = arith.constant 5.000000e-01 : f32
    %423 = vector.broadcast %cst_135 : f32 to vector<8x128xf32>
    %424 = arith.mulf %423, %422 : vector<8x128xf32>
    %425 = math.tanh %424 : vector<8x128xf32>
    %cst_136 = arith.constant 5.000000e-01 : f32
    %426 = vector.broadcast %cst_136 : f32 to vector<8x128xf32>
    %427 = arith.mulf %426, %425 : vector<8x128xf32>
    %cst_137 = arith.constant 5.000000e-01 : f32
    %428 = vector.broadcast %cst_137 : f32 to vector<8x128xf32>
    %429 = arith.addf %427, %428 : vector<8x128xf32>
    %430 = vector.extract_strided_slice %421 {offsets = [8, 0], sizes = [8, 128], strides = [1, 1]} : vector<32x128xf32> to vector<8x128xf32>
    %cst_138 = arith.constant 5.000000e-01 : f32
    %431 = vector.broadcast %cst_138 : f32 to vector<8x128xf32>
    %432 = arith.mulf %431, %430 : vector<8x128xf32>
    %433 = math.tanh %432 : vector<8x128xf32>
    %cst_139 = arith.constant 5.000000e-01 : f32
    %434 = vector.broadcast %cst_139 : f32 to vector<8x128xf32>
    %435 = arith.mulf %434, %433 : vector<8x128xf32>
    %cst_140 = arith.constant 5.000000e-01 : f32
    %436 = vector.broadcast %cst_140 : f32 to vector<8x128xf32>
    %437 = arith.addf %435, %436 : vector<8x128xf32>
    %438 = vector.extract_strided_slice %421 {offsets = [16, 0], sizes = [8, 128], strides = [1, 1]} : vector<32x128xf32> to vector<8x128xf32>
    %cst_141 = arith.constant 5.000000e-01 : f32
    %439 = vector.broadcast %cst_141 : f32 to vector<8x128xf32>
    %440 = arith.mulf %439, %438 : vector<8x128xf32>
    %441 = math.tanh %440 : vector<8x128xf32>
    %cst_142 = arith.constant 5.000000e-01 : f32
    %442 = vector.broadcast %cst_142 : f32 to vector<8x128xf32>
    %443 = arith.mulf %442, %441 : vector<8x128xf32>
    %cst_143 = arith.constant 5.000000e-01 : f32
    %444 = vector.broadcast %cst_143 : f32 to vector<8x128xf32>
    %445 = arith.addf %443, %444 : vector<8x128xf32>
    %446 = vector.extract_strided_slice %421 {offsets = [24, 0], sizes = [8, 128], strides = [1, 1]} : vector<32x128xf32> to vector<8x128xf32>
    %447 = math.tanh %446 : vector<8x128xf32>
    %448 = arith.mulf %437, %369 : vector<8x128xf32>
    %449 = arith.mulf %429, %447 : vector<8x128xf32>
    %450 = arith.addf %448, %449 : vector<8x128xf32>
    %451 = math.tanh %450 : vector<8x128xf32>
    %452 = arith.mulf %445, %451 : vector<8x128xf32>
    %453 = tpu.concatenate %452, %411 in 0 : vector<8x128xf32>, vector<8x128xf32> -> vector<16x128xf32>
    %c1_i32_144 = arith.constant 1 : i32
    %454 = tpu.dynamic_rotate %453 by %c1_i32_144 dim 1 : vector<16x128xf32>, i32 -> vector<16x128xf32>
    %455 = vector.broadcast %2 : vector<1x128xf32> to vector<16x128xf32>
    %456 = arith.mulf %454, %455 : vector<16x128xf32>
    %c127_i32_145 = arith.constant 127 : i32
    %457 = tpu.dynamic_rotate %453 by %c127_i32_145 dim 1 : vector<16x128xf32>, i32 -> vector<16x128xf32>
    %458 = vector.broadcast %3 : vector<1x128xf32> to vector<16x128xf32>
    %459 = arith.mulf %457, %458 : vector<16x128xf32>
    %460 = tpu.concatenate %456, %453, %459 in 0 : vector<16x128xf32>, vector<16x128xf32>, vector<16x128xf32> -> vector<48x128xf32>
    %cst_146 = arith.constant dense<0.000000e+00> : vector<32x128xf32>
    %461 = tpu.matmul %5, %460, %cst_146 {dimension_numbers = #tpu.dot_dimension_numbers<[1], [0], [0], [1], [0, 0, 1, 1], [], []>} : vector<32x48xf32>, vector<48x128xf32>, vector<32x128xf32> -> vector<32x128xf32>
    %462 = vector.extract_strided_slice %461 {offsets = [0, 0], sizes = [8, 128], strides = [1, 1]} : vector<32x128xf32> to vector<8x128xf32>
    %cst_147 = arith.constant 5.000000e-01 : f32
    %463 = vector.broadcast %cst_147 : f32 to vector<8x128xf32>
    %464 = arith.mulf %463, %462 : vector<8x128xf32>
    %465 = math.tanh %464 : vector<8x128xf32>
    %cst_148 = arith.constant 5.000000e-01 : f32
    %466 = vector.broadcast %cst_148 : f32 to vector<8x128xf32>
    %467 = arith.mulf %466, %465 : vector<8x128xf32>
    %cst_149 = arith.constant 5.000000e-01 : f32
    %468 = vector.broadcast %cst_149 : f32 to vector<8x128xf32>
    %469 = arith.addf %467, %468 : vector<8x128xf32>
    %470 = vector.extract_strided_slice %461 {offsets = [8, 0], sizes = [8, 128], strides = [1, 1]} : vector<32x128xf32> to vector<8x128xf32>
    %cst_150 = arith.constant 5.000000e-01 : f32
    %471 = vector.broadcast %cst_150 : f32 to vector<8x128xf32>
    %472 = arith.mulf %471, %470 : vector<8x128xf32>
    %473 = math.tanh %472 : vector<8x128xf32>
    %cst_151 = arith.constant 5.000000e-01 : f32
    %474 = vector.broadcast %cst_151 : f32 to vector<8x128xf32>
    %475 = arith.mulf %474, %473 : vector<8x128xf32>
    %cst_152 = arith.constant 5.000000e-01 : f32
    %476 = vector.broadcast %cst_152 : f32 to vector<8x128xf32>
    %477 = arith.addf %475, %476 : vector<8x128xf32>
    %478 = vector.extract_strided_slice %461 {offsets = [16, 0], sizes = [8, 128], strides = [1, 1]} : vector<32x128xf32> to vector<8x128xf32>
    %cst_153 = arith.constant 5.000000e-01 : f32
    %479 = vector.broadcast %cst_153 : f32 to vector<8x128xf32>
    %480 = arith.mulf %479, %478 : vector<8x128xf32>
    %481 = math.tanh %480 : vector<8x128xf32>
    %cst_154 = arith.constant 5.000000e-01 : f32
    %482 = vector.broadcast %cst_154 : f32 to vector<8x128xf32>
    %483 = arith.mulf %482, %481 : vector<8x128xf32>
    %cst_155 = arith.constant 5.000000e-01 : f32
    %484 = vector.broadcast %cst_155 : f32 to vector<8x128xf32>
    %485 = arith.addf %483, %484 : vector<8x128xf32>
    %486 = vector.extract_strided_slice %461 {offsets = [24, 0], sizes = [8, 128], strides = [1, 1]} : vector<32x128xf32> to vector<8x128xf32>
    %487 = math.tanh %486 : vector<8x128xf32>
    %488 = arith.mulf %477, %409 : vector<8x128xf32>
    %489 = arith.mulf %469, %487 : vector<8x128xf32>
    %490 = arith.addf %488, %489 : vector<8x128xf32>
    %491 = math.tanh %490 : vector<8x128xf32>
    %492 = arith.mulf %485, %491 : vector<8x128xf32>
    %c0_156 = arith.constant 0 : index
    %c768 = arith.constant 768 : index
    %493 = vector.load %arg0[%c0_156, %c768] : memref<8x1024xf32, #tpu.memory_space<vmem>>, vector<8x128xf32>
    %494 = tpu.concatenate %493, %452 in 0 : vector<8x128xf32>, vector<8x128xf32> -> vector<16x128xf32>
    %c1_i32_157 = arith.constant 1 : i32
    %495 = tpu.dynamic_rotate %494 by %c1_i32_157 dim 1 : vector<16x128xf32>, i32 -> vector<16x128xf32>
    %496 = vector.broadcast %2 : vector<1x128xf32> to vector<16x128xf32>
    %497 = arith.mulf %495, %496 : vector<16x128xf32>
    %c127_i32_158 = arith.constant 127 : i32
    %498 = tpu.dynamic_rotate %494 by %c127_i32_158 dim 1 : vector<16x128xf32>, i32 -> vector<16x128xf32>
    %499 = vector.broadcast %3 : vector<1x128xf32> to vector<16x128xf32>
    %500 = arith.mulf %498, %499 : vector<16x128xf32>
    %501 = tpu.concatenate %497, %494, %500 in 0 : vector<16x128xf32>, vector<16x128xf32>, vector<16x128xf32> -> vector<48x128xf32>
    %cst_159 = arith.constant dense<0.000000e+00> : vector<32x128xf32>
    %502 = tpu.matmul %4, %501, %cst_159 {dimension_numbers = #tpu.dot_dimension_numbers<[1], [0], [0], [1], [0, 0, 1, 1], [], []>} : vector<32x48xf32>, vector<48x128xf32>, vector<32x128xf32> -> vector<32x128xf32>
    %503 = vector.extract_strided_slice %502 {offsets = [0, 0], sizes = [8, 128], strides = [1, 1]} : vector<32x128xf32> to vector<8x128xf32>
    %cst_160 = arith.constant 5.000000e-01 : f32
    %504 = vector.broadcast %cst_160 : f32 to vector<8x128xf32>
    %505 = arith.mulf %504, %503 : vector<8x128xf32>
    %506 = math.tanh %505 : vector<8x128xf32>
    %cst_161 = arith.constant 5.000000e-01 : f32
    %507 = vector.broadcast %cst_161 : f32 to vector<8x128xf32>
    %508 = arith.mulf %507, %506 : vector<8x128xf32>
    %cst_162 = arith.constant 5.000000e-01 : f32
    %509 = vector.broadcast %cst_162 : f32 to vector<8x128xf32>
    %510 = arith.addf %508, %509 : vector<8x128xf32>
    %511 = vector.extract_strided_slice %502 {offsets = [8, 0], sizes = [8, 128], strides = [1, 1]} : vector<32x128xf32> to vector<8x128xf32>
    %cst_163 = arith.constant 5.000000e-01 : f32
    %512 = vector.broadcast %cst_163 : f32 to vector<8x128xf32>
    %513 = arith.mulf %512, %511 : vector<8x128xf32>
    %514 = math.tanh %513 : vector<8x128xf32>
    %cst_164 = arith.constant 5.000000e-01 : f32
    %515 = vector.broadcast %cst_164 : f32 to vector<8x128xf32>
    %516 = arith.mulf %515, %514 : vector<8x128xf32>
    %cst_165 = arith.constant 5.000000e-01 : f32
    %517 = vector.broadcast %cst_165 : f32 to vector<8x128xf32>
    %518 = arith.addf %516, %517 : vector<8x128xf32>
    %519 = vector.extract_strided_slice %502 {offsets = [16, 0], sizes = [8, 128], strides = [1, 1]} : vector<32x128xf32> to vector<8x128xf32>
    %cst_166 = arith.constant 5.000000e-01 : f32
    %520 = vector.broadcast %cst_166 : f32 to vector<8x128xf32>
    %521 = arith.mulf %520, %519 : vector<8x128xf32>
    %522 = math.tanh %521 : vector<8x128xf32>
    %cst_167 = arith.constant 5.000000e-01 : f32
    %523 = vector.broadcast %cst_167 : f32 to vector<8x128xf32>
    %524 = arith.mulf %523, %522 : vector<8x128xf32>
    %cst_168 = arith.constant 5.000000e-01 : f32
    %525 = vector.broadcast %cst_168 : f32 to vector<8x128xf32>
    %526 = arith.addf %524, %525 : vector<8x128xf32>
    %527 = vector.extract_strided_slice %502 {offsets = [24, 0], sizes = [8, 128], strides = [1, 1]} : vector<32x128xf32> to vector<8x128xf32>
    %528 = math.tanh %527 : vector<8x128xf32>
    %529 = arith.mulf %518, %450 : vector<8x128xf32>
    %530 = arith.mulf %510, %528 : vector<8x128xf32>
    %531 = arith.addf %529, %530 : vector<8x128xf32>
    %532 = math.tanh %531 : vector<8x128xf32>
    %533 = arith.mulf %526, %532 : vector<8x128xf32>
    %534 = tpu.concatenate %533, %492 in 0 : vector<8x128xf32>, vector<8x128xf32> -> vector<16x128xf32>
    %c1_i32_169 = arith.constant 1 : i32
    %535 = tpu.dynamic_rotate %534 by %c1_i32_169 dim 1 : vector<16x128xf32>, i32 -> vector<16x128xf32>
    %536 = vector.broadcast %2 : vector<1x128xf32> to vector<16x128xf32>
    %537 = arith.mulf %535, %536 : vector<16x128xf32>
    %c127_i32_170 = arith.constant 127 : i32
    %538 = tpu.dynamic_rotate %534 by %c127_i32_170 dim 1 : vector<16x128xf32>, i32 -> vector<16x128xf32>
    %539 = vector.broadcast %3 : vector<1x128xf32> to vector<16x128xf32>
    %540 = arith.mulf %538, %539 : vector<16x128xf32>
    %541 = tpu.concatenate %537, %534, %540 in 0 : vector<16x128xf32>, vector<16x128xf32>, vector<16x128xf32> -> vector<48x128xf32>
    %cst_171 = arith.constant dense<0.000000e+00> : vector<32x128xf32>
    %542 = tpu.matmul %5, %541, %cst_171 {dimension_numbers = #tpu.dot_dimension_numbers<[1], [0], [0], [1], [0, 0, 1, 1], [], []>} : vector<32x48xf32>, vector<48x128xf32>, vector<32x128xf32> -> vector<32x128xf32>
    %543 = vector.extract_strided_slice %542 {offsets = [0, 0], sizes = [8, 128], strides = [1, 1]} : vector<32x128xf32> to vector<8x128xf32>
    %cst_172 = arith.constant 5.000000e-01 : f32
    %544 = vector.broadcast %cst_172 : f32 to vector<8x128xf32>
    %545 = arith.mulf %544, %543 : vector<8x128xf32>
    %546 = math.tanh %545 : vector<8x128xf32>
    %cst_173 = arith.constant 5.000000e-01 : f32
    %547 = vector.broadcast %cst_173 : f32 to vector<8x128xf32>
    %548 = arith.mulf %547, %546 : vector<8x128xf32>
    %cst_174 = arith.constant 5.000000e-01 : f32
    %549 = vector.broadcast %cst_174 : f32 to vector<8x128xf32>
    %550 = arith.addf %548, %549 : vector<8x128xf32>
    %551 = vector.extract_strided_slice %542 {offsets = [8, 0], sizes = [8, 128], strides = [1, 1]} : vector<32x128xf32> to vector<8x128xf32>
    %cst_175 = arith.constant 5.000000e-01 : f32
    %552 = vector.broadcast %cst_175 : f32 to vector<8x128xf32>
    %553 = arith.mulf %552, %551 : vector<8x128xf32>
    %554 = math.tanh %553 : vector<8x128xf32>
    %cst_176 = arith.constant 5.000000e-01 : f32
    %555 = vector.broadcast %cst_176 : f32 to vector<8x128xf32>
    %556 = arith.mulf %555, %554 : vector<8x128xf32>
    %cst_177 = arith.constant 5.000000e-01 : f32
    %557 = vector.broadcast %cst_177 : f32 to vector<8x128xf32>
    %558 = arith.addf %556, %557 : vector<8x128xf32>
    %559 = vector.extract_strided_slice %542 {offsets = [16, 0], sizes = [8, 128], strides = [1, 1]} : vector<32x128xf32> to vector<8x128xf32>
    %cst_178 = arith.constant 5.000000e-01 : f32
    %560 = vector.broadcast %cst_178 : f32 to vector<8x128xf32>
    %561 = arith.mulf %560, %559 : vector<8x128xf32>
    %562 = math.tanh %561 : vector<8x128xf32>
    %cst_179 = arith.constant 5.000000e-01 : f32
    %563 = vector.broadcast %cst_179 : f32 to vector<8x128xf32>
    %564 = arith.mulf %563, %562 : vector<8x128xf32>
    %cst_180 = arith.constant 5.000000e-01 : f32
    %565 = vector.broadcast %cst_180 : f32 to vector<8x128xf32>
    %566 = arith.addf %564, %565 : vector<8x128xf32>
    %567 = vector.extract_strided_slice %542 {offsets = [24, 0], sizes = [8, 128], strides = [1, 1]} : vector<32x128xf32> to vector<8x128xf32>
    %568 = math.tanh %567 : vector<8x128xf32>
    %569 = arith.mulf %558, %490 : vector<8x128xf32>
    %570 = arith.mulf %550, %568 : vector<8x128xf32>
    %571 = arith.addf %569, %570 : vector<8x128xf32>
    %572 = math.tanh %571 : vector<8x128xf32>
    %573 = arith.mulf %566, %572 : vector<8x128xf32>
    %c0_181 = arith.constant 0 : index
    %c896 = arith.constant 896 : index
    %574 = vector.load %arg0[%c0_181, %c896] : memref<8x1024xf32, #tpu.memory_space<vmem>>, vector<8x128xf32>
    %575 = tpu.concatenate %574, %533 in 0 : vector<8x128xf32>, vector<8x128xf32> -> vector<16x128xf32>
    %c1_i32_182 = arith.constant 1 : i32
    %576 = tpu.dynamic_rotate %575 by %c1_i32_182 dim 1 : vector<16x128xf32>, i32 -> vector<16x128xf32>
    %577 = vector.broadcast %2 : vector<1x128xf32> to vector<16x128xf32>
    %578 = arith.mulf %576, %577 : vector<16x128xf32>
    %c127_i32_183 = arith.constant 127 : i32
    %579 = tpu.dynamic_rotate %575 by %c127_i32_183 dim 1 : vector<16x128xf32>, i32 -> vector<16x128xf32>
    %580 = vector.broadcast %3 : vector<1x128xf32> to vector<16x128xf32>
    %581 = arith.mulf %579, %580 : vector<16x128xf32>
    %582 = tpu.concatenate %578, %575, %581 in 0 : vector<16x128xf32>, vector<16x128xf32>, vector<16x128xf32> -> vector<48x128xf32>
    %cst_184 = arith.constant dense<0.000000e+00> : vector<32x128xf32>
    %583 = tpu.matmul %4, %582, %cst_184 {dimension_numbers = #tpu.dot_dimension_numbers<[1], [0], [0], [1], [0, 0, 1, 1], [], []>} : vector<32x48xf32>, vector<48x128xf32>, vector<32x128xf32> -> vector<32x128xf32>
    %584 = vector.extract_strided_slice %583 {offsets = [0, 0], sizes = [8, 128], strides = [1, 1]} : vector<32x128xf32> to vector<8x128xf32>
    %cst_185 = arith.constant 5.000000e-01 : f32
    %585 = vector.broadcast %cst_185 : f32 to vector<8x128xf32>
    %586 = arith.mulf %585, %584 : vector<8x128xf32>
    %587 = math.tanh %586 : vector<8x128xf32>
    %cst_186 = arith.constant 5.000000e-01 : f32
    %588 = vector.broadcast %cst_186 : f32 to vector<8x128xf32>
    %589 = arith.mulf %588, %587 : vector<8x128xf32>
    %cst_187 = arith.constant 5.000000e-01 : f32
    %590 = vector.broadcast %cst_187 : f32 to vector<8x128xf32>
    %591 = arith.addf %589, %590 : vector<8x128xf32>
    %592 = vector.extract_strided_slice %583 {offsets = [8, 0], sizes = [8, 128], strides = [1, 1]} : vector<32x128xf32> to vector<8x128xf32>
    %cst_188 = arith.constant 5.000000e-01 : f32
    %593 = vector.broadcast %cst_188 : f32 to vector<8x128xf32>
    %594 = arith.mulf %593, %592 : vector<8x128xf32>
    %595 = math.tanh %594 : vector<8x128xf32>
    %cst_189 = arith.constant 5.000000e-01 : f32
    %596 = vector.broadcast %cst_189 : f32 to vector<8x128xf32>
    %597 = arith.mulf %596, %595 : vector<8x128xf32>
    %cst_190 = arith.constant 5.000000e-01 : f32
    %598 = vector.broadcast %cst_190 : f32 to vector<8x128xf32>
    %599 = arith.addf %597, %598 : vector<8x128xf32>
    %600 = vector.extract_strided_slice %583 {offsets = [16, 0], sizes = [8, 128], strides = [1, 1]} : vector<32x128xf32> to vector<8x128xf32>
    %cst_191 = arith.constant 5.000000e-01 : f32
    %601 = vector.broadcast %cst_191 : f32 to vector<8x128xf32>
    %602 = arith.mulf %601, %600 : vector<8x128xf32>
    %603 = math.tanh %602 : vector<8x128xf32>
    %cst_192 = arith.constant 5.000000e-01 : f32
    %604 = vector.broadcast %cst_192 : f32 to vector<8x128xf32>
    %605 = arith.mulf %604, %603 : vector<8x128xf32>
    %cst_193 = arith.constant 5.000000e-01 : f32
    %606 = vector.broadcast %cst_193 : f32 to vector<8x128xf32>
    %607 = arith.addf %605, %606 : vector<8x128xf32>
    %608 = vector.extract_strided_slice %583 {offsets = [24, 0], sizes = [8, 128], strides = [1, 1]} : vector<32x128xf32> to vector<8x128xf32>
    %609 = math.tanh %608 : vector<8x128xf32>
    %610 = arith.mulf %599, %531 : vector<8x128xf32>
    %611 = arith.mulf %591, %609 : vector<8x128xf32>
    %612 = arith.addf %610, %611 : vector<8x128xf32>
    %613 = math.tanh %612 : vector<8x128xf32>
    %614 = arith.mulf %607, %613 : vector<8x128xf32>
    %615 = tpu.concatenate %614, %573 in 0 : vector<8x128xf32>, vector<8x128xf32> -> vector<16x128xf32>
    %c1_i32_194 = arith.constant 1 : i32
    %616 = tpu.dynamic_rotate %615 by %c1_i32_194 dim 1 : vector<16x128xf32>, i32 -> vector<16x128xf32>
    %617 = vector.broadcast %2 : vector<1x128xf32> to vector<16x128xf32>
    %618 = arith.mulf %616, %617 : vector<16x128xf32>
    %c127_i32_195 = arith.constant 127 : i32
    %619 = tpu.dynamic_rotate %615 by %c127_i32_195 dim 1 : vector<16x128xf32>, i32 -> vector<16x128xf32>
    %620 = vector.broadcast %3 : vector<1x128xf32> to vector<16x128xf32>
    %621 = arith.mulf %619, %620 : vector<16x128xf32>
    %622 = tpu.concatenate %618, %615, %621 in 0 : vector<16x128xf32>, vector<16x128xf32>, vector<16x128xf32> -> vector<48x128xf32>
    %cst_196 = arith.constant dense<0.000000e+00> : vector<32x128xf32>
    %623 = tpu.matmul %5, %622, %cst_196 {dimension_numbers = #tpu.dot_dimension_numbers<[1], [0], [0], [1], [0, 0, 1, 1], [], []>} : vector<32x48xf32>, vector<48x128xf32>, vector<32x128xf32> -> vector<32x128xf32>
    %624 = vector.extract_strided_slice %623 {offsets = [0, 0], sizes = [8, 128], strides = [1, 1]} : vector<32x128xf32> to vector<8x128xf32>
    %cst_197 = arith.constant 5.000000e-01 : f32
    %625 = vector.broadcast %cst_197 : f32 to vector<8x128xf32>
    %626 = arith.mulf %625, %624 : vector<8x128xf32>
    %627 = math.tanh %626 : vector<8x128xf32>
    %cst_198 = arith.constant 5.000000e-01 : f32
    %628 = vector.broadcast %cst_198 : f32 to vector<8x128xf32>
    %629 = arith.mulf %628, %627 : vector<8x128xf32>
    %cst_199 = arith.constant 5.000000e-01 : f32
    %630 = vector.broadcast %cst_199 : f32 to vector<8x128xf32>
    %631 = arith.addf %629, %630 : vector<8x128xf32>
    %632 = vector.extract_strided_slice %623 {offsets = [8, 0], sizes = [8, 128], strides = [1, 1]} : vector<32x128xf32> to vector<8x128xf32>
    %cst_200 = arith.constant 5.000000e-01 : f32
    %633 = vector.broadcast %cst_200 : f32 to vector<8x128xf32>
    %634 = arith.mulf %633, %632 : vector<8x128xf32>
    %635 = math.tanh %634 : vector<8x128xf32>
    %cst_201 = arith.constant 5.000000e-01 : f32
    %636 = vector.broadcast %cst_201 : f32 to vector<8x128xf32>
    %637 = arith.mulf %636, %635 : vector<8x128xf32>
    %cst_202 = arith.constant 5.000000e-01 : f32
    %638 = vector.broadcast %cst_202 : f32 to vector<8x128xf32>
    %639 = arith.addf %637, %638 : vector<8x128xf32>
    %640 = vector.extract_strided_slice %623 {offsets = [16, 0], sizes = [8, 128], strides = [1, 1]} : vector<32x128xf32> to vector<8x128xf32>
    %cst_203 = arith.constant 5.000000e-01 : f32
    %641 = vector.broadcast %cst_203 : f32 to vector<8x128xf32>
    %642 = arith.mulf %641, %640 : vector<8x128xf32>
    %643 = math.tanh %642 : vector<8x128xf32>
    %cst_204 = arith.constant 5.000000e-01 : f32
    %644 = vector.broadcast %cst_204 : f32 to vector<8x128xf32>
    %645 = arith.mulf %644, %643 : vector<8x128xf32>
    %cst_205 = arith.constant 5.000000e-01 : f32
    %646 = vector.broadcast %cst_205 : f32 to vector<8x128xf32>
    %647 = arith.addf %645, %646 : vector<8x128xf32>
    %648 = vector.extract_strided_slice %623 {offsets = [24, 0], sizes = [8, 128], strides = [1, 1]} : vector<32x128xf32> to vector<8x128xf32>
    %649 = math.tanh %648 : vector<8x128xf32>
    %650 = arith.mulf %639, %571 : vector<8x128xf32>
    %651 = arith.mulf %631, %649 : vector<8x128xf32>
    %652 = arith.addf %650, %651 : vector<8x128xf32>
    %653 = math.tanh %652 : vector<8x128xf32>
    %654 = arith.mulf %647, %653 : vector<8x128xf32>
    %655 = tpu.concatenate %87, %168, %249, %330, %411, %492, %573, %654 in 1 : vector<8x128xf32>, vector<8x128xf32>, vector<8x128xf32>, vector<8x128xf32>, vector<8x128xf32>, vector<8x128xf32>, vector<8x128xf32>, vector<8x128xf32> -> vector<8x1024xf32>
    %c0_206 = arith.constant 0 : index
    %c0_207 = arith.constant 0 : index
    %656 = vector.load %arg5[%c0_206, %c0_207] : memref<8x24xf32, #tpu.memory_space<vmem>>, vector<8x24xf32>
    %c1_i32_208 = arith.constant 1 : i32
    %657 = tpu.dynamic_rotate %655 by %c1_i32_208 dim 1 : vector<8x1024xf32>, i32 -> vector<8x1024xf32>
    %658 = vector.broadcast %0 : vector<1x1024xf32> to vector<8x1024xf32>
    %659 = arith.mulf %657, %658 : vector<8x1024xf32>
    %c1023_i32 = arith.constant 1023 : i32
    %660 = tpu.dynamic_rotate %655 by %c1023_i32 dim 1 : vector<8x1024xf32>, i32 -> vector<8x1024xf32>
    %661 = vector.broadcast %1 : vector<1x1024xf32> to vector<8x1024xf32>
    %662 = arith.mulf %660, %661 : vector<8x1024xf32>
    %663 = tpu.concatenate %659, %655, %662 in 0 : vector<8x1024xf32>, vector<8x1024xf32>, vector<8x1024xf32> -> vector<24x1024xf32>
    %cst_209 = arith.constant dense<0.000000e+00> : vector<8x1024xf32>
    %664 = tpu.matmul %656, %663, %cst_209 {dimension_numbers = #tpu.dot_dimension_numbers<[1], [0], [0], [1], [0, 0, 1, 1], [], []>} : vector<8x24xf32>, vector<24x1024xf32>, vector<8x1024xf32> -> vector<8x1024xf32>
    %c0_210 = arith.constant 0 : index
    %c0_211 = arith.constant 0 : index
    %665 = vector.load %arg6[%c0_210, %c0_211] : memref<8x1xf32, #tpu.memory_space<vmem>>, vector<8x1xf32>
    %666 = vector.broadcast %665 : vector<8x1xf32> to vector<8x1024xf32>
    %667 = arith.addf %664, %666 : vector<8x1024xf32>
    %cst_212 = arith.constant 5.000000e-01 : f32
    %668 = vector.broadcast %cst_212 : f32 to vector<8x1024xf32>
    %669 = arith.mulf %668, %667 : vector<8x1024xf32>
    %670 = math.tanh %669 : vector<8x1024xf32>
    %cst_213 = arith.constant 5.000000e-01 : f32
    %671 = vector.broadcast %cst_213 : f32 to vector<8x1024xf32>
    %672 = arith.mulf %671, %670 : vector<8x1024xf32>
    %cst_214 = arith.constant 5.000000e-01 : f32
    %673 = vector.broadcast %cst_214 : f32 to vector<8x1024xf32>
    %674 = arith.addf %672, %673 : vector<8x1024xf32>
    %c0_215 = arith.constant 0 : index
    %c0_216 = arith.constant 0 : index
    %675 = vector.load %arg7[%c0_215, %c0_216] : memref<8x24xf32, #tpu.memory_space<vmem>>, vector<8x24xf32>
    %c1_i32_217 = arith.constant 1 : i32
    %676 = tpu.dynamic_rotate %674 by %c1_i32_217 dim 1 : vector<8x1024xf32>, i32 -> vector<8x1024xf32>
    %677 = vector.broadcast %0 : vector<1x1024xf32> to vector<8x1024xf32>
    %678 = arith.mulf %676, %677 : vector<8x1024xf32>
    %c1023_i32_218 = arith.constant 1023 : i32
    %679 = tpu.dynamic_rotate %674 by %c1023_i32_218 dim 1 : vector<8x1024xf32>, i32 -> vector<8x1024xf32>
    %680 = vector.broadcast %1 : vector<1x1024xf32> to vector<8x1024xf32>
    %681 = arith.mulf %679, %680 : vector<8x1024xf32>
    %682 = tpu.concatenate %678, %674, %681 in 0 : vector<8x1024xf32>, vector<8x1024xf32>, vector<8x1024xf32> -> vector<24x1024xf32>
    %cst_219 = arith.constant dense<0.000000e+00> : vector<8x1024xf32>
    %683 = tpu.matmul %675, %682, %cst_219 {dimension_numbers = #tpu.dot_dimension_numbers<[1], [0], [0], [1], [0, 0, 1, 1], [], []>} : vector<8x24xf32>, vector<24x1024xf32>, vector<8x1024xf32> -> vector<8x1024xf32>
    %c0_220 = arith.constant 0 : index
    %c0_221 = arith.constant 0 : index
    %684 = vector.load %arg8[%c0_220, %c0_221] : memref<8x1xf32, #tpu.memory_space<vmem>>, vector<8x1xf32>
    %685 = vector.broadcast %684 : vector<8x1xf32> to vector<8x1024xf32>
    %686 = arith.addf %683, %685 : vector<8x1024xf32>
    %cst_222 = arith.constant 5.000000e-01 : f32
    %687 = vector.broadcast %cst_222 : f32 to vector<8x1024xf32>
    %688 = arith.mulf %687, %686 : vector<8x1024xf32>
    %689 = math.tanh %688 : vector<8x1024xf32>
    %cst_223 = arith.constant 5.000000e-01 : f32
    %690 = vector.broadcast %cst_223 : f32 to vector<8x1024xf32>
    %691 = arith.mulf %690, %689 : vector<8x1024xf32>
    %cst_224 = arith.constant 5.000000e-01 : f32
    %692 = vector.broadcast %cst_224 : f32 to vector<8x1024xf32>
    %693 = arith.addf %691, %692 : vector<8x1024xf32>
    %c0_225 = arith.constant 0 : index
    %c0_226 = arith.constant 0 : index
    %694 = vector.load %arg9[%c0_225, %c0_226] : memref<8x1024xf32, #tpu.memory_space<vmem>>, vector<8x1024xf32>
    tpu.vector_store %arg9[%c0_225, %c0_226], %693 {strides = array<i32>} : memref<8x1024xf32, #tpu.memory_space<vmem>>, vector<8x1024xf32>,
    return
  }
}

</mosaic_0001>

<llo_original>
// kernel: tpu_custom_call.1
$region0: #{tpu_custom_call.1}
  #allocation0 [shape = 'u32[]', space=smem, size = 0x4, offset = 0x4, fixed_abs, tag = 'smem constant byte address 0x4 - core index']
  #allocation1 [shape = 'u32[144,128]{1,0:T(1,128)}', space=vmem, size = 0x12000, scoped, tag = 'internal scratch']
  %s0 = inlined_call_operand.hbm [shape: f32[8,1024], index: 0, kind: input, shape index: {}]
  %s1 = inlined_call_operand.vmem [shape: f32[1,1024], index: 1, kind: input, shape index: {}]
  %s2 = inlined_call_operand.vmem [shape: f32[1,1024], index: 2, kind: input, shape index: {}]
  %s3 = inlined_call_operand.hbm [shape: f32[32,48], index: 3, kind: input, shape index: {}]
  %s4 = inlined_call_operand.hbm [shape: f32[32,48], index: 4, kind: input, shape index: {}]
  %s5 = inlined_call_operand.vmem [shape: f32[8,24], index: 5, kind: input, shape index: {}]
  %s6 = inlined_call_operand.vmem [shape: f32[8,1], index: 6, kind: input, shape index: {}]
  %s7 = inlined_call_operand.vmem [shape: f32[8,24], index: 7, kind: input, shape index: {}]
  %s8 = inlined_call_operand.vmem [shape: f32[8,1], index: 8, kind: input, shape index: {}]
  %s9 = inlined_call_operand.hbm [shape: f32[8,1024], index: 9, kind: output, shape index: {}]
  %s10 = sld [smem:[#allocation0]]
  $region58: #{tpu_custom_call.1} parent=0
    _
  %s12 = ssub.s32 1, %s10
  %s13 = scalar_select 0, %s12, %s10
  $region1: #{tpu_custom_call.1} parent=0
    #allocation2 [shape = 'u8[32768]{0}', space=vmem, size = 0x8000, scoped, tag = 'input window, operand 0, single buffered']
    #allocation3 [shape = 's32[1]{0}', space=sflag, size = 0x4, scoped, tag = 'scoped memory for tpu_custom_call.1']
    #allocation4 [shape = 's32[1]{0}', space=sflag, size = 0x4, scoped, tag = 'scoped memory for tpu_custom_call.1']
    #allocation5 [shape = 'u8[16384]{0}', space=vmem, size = 0x4000, scoped, tag = 'input window, operand 3, single buffered']
    #allocation6 [shape = 's32[1]{0}', space=sflag, size = 0x4, scoped, tag = 'scoped memory for tpu_custom_call.1']
    #allocation7 [shape = 'u8[16384]{0}', space=vmem, size = 0x4000, scoped, tag = 'input window, operand 4, single buffered']
    #allocation8 [shape = 'u8[32768]{0}', space=vmem, size = 0x8000, scoped, tag = 'output window, operand 0, single buffered']
    %14 = vsyncpa [#allocation3], 0
    %15 = vsyncpa [#allocation6], 0
    %16 = vsyncpa [#allocation4], 0
    // Predicated region
    $region2: #{tpu_custom_call.1} parent=1 // pred_check
      _
    $region3: #{tpu_custom_call.1} parent=1 // pred_check_branch
      %18 = sbr.rel (0) target = $region5
    $region4: #{tpu_custom_call.1} parent=1 // pred_region
      %s20 = ssub.s32 1024, 1024
      %21 = vsyncadd [#allocation3], %s20
      %s23 = sshll.u32 [#allocation2], 4
      %s24 = int_to_ptr.vmem [resolvable:$true] %s23
      %26 = dma.hbm_to_vmem [thread:$0]  %s0, 1024, %s24, [#allocation3]
    $region5: #{tpu_custom_call.1} parent=1 // pred_fallthru
      _
    // Predicated region
    $region6: #{tpu_custom_call.1} parent=1 // pred_check
      _
    $region7: #{tpu_custom_call.1} parent=1 // pred_check_branch
      %28 = sbr.rel (0) target = $region9
    $region8: #{tpu_custom_call.1} parent=1 // pred_region
      _
    $region9: #{tpu_custom_call.1} parent=1 // pred_fallthru
      _
    // Predicated region
    $region10: #{tpu_custom_call.1} parent=1 // pred_check
      _
    $region11: #{tpu_custom_call.1} parent=1 // pred_check_branch
      %30 = sbr.rel (0) target = $region13
    $region12: #{tpu_custom_call.1} parent=1 // pred_region
      _
    $region13: #{tpu_custom_call.1} parent=1 // pred_fallthru
      _
    // Predicated region
    $region14: #{tpu_custom_call.1} parent=1 // pred_check
      _
    $region15: #{tpu_custom_call.1} parent=1 // pred_check_branch
      %32 = sbr.rel (0) target = $region17
    $region16: #{tpu_custom_call.1} parent=1 // pred_region
      %s34 = ssub.s32 512, 512
      %35 = vsyncadd [#allocation6], %s34
      %s36 = sshll.u32 [#allocation5], 4
      %s37 = int_to_ptr.vmem [resolvable:$true] %s36
      %42 = dma.hbm_to_vmem [thread:$0]  %s3, 512, %s37, [#allocation6], 128, 128, 8
    $region17: #{tpu_custom_call.1} parent=1 // pred_fallthru
      _
    // Predicated region
    $region18: #{tpu_custom_call.1} parent=1 // pred_check
      _
    $region19: #{tpu_custom_call.1} parent=1 // pred_check_branch
      %44 = sbr.rel (0) target = $region21
    $region20: #{tpu_custom_call.1} parent=1 // pred_region
      %s46 = ssub.s32 512, 512
      %47 = vsyncadd [#allocation6], %s46
      %s48 = sshll.u32 [#allocation7], 4
      %s49 = int_to_ptr.vmem [resolvable:$true] %s48
      %54 = dma.hbm_to_vmem [thread:$0]  %s4, 512, %s49, [#allocation6], 128, 128, 8
    $region21: #{tpu_custom_call.1} parent=1 // pred_fallthru
      _
    // Predicated region
    $region22: #{tpu_custom_call.1} parent=1 // pred_check
      _
    $region23: #{tpu_custom_call.1} parent=1 // pred_check_branch
      %56 = sbr.rel (0) target = $region25
    $region24: #{tpu_custom_call.1} parent=1 // pred_region
      _
    $region25: #{tpu_custom_call.1} parent=1 // pred_fallthru
      _
    // Predicated region
    $region26: #{tpu_custom_call.1} parent=1 // pred_check
      _
    $region27: #{tpu_custom_call.1} parent=1 // pred_check_branch
      %58 = sbr.rel (0) target = $region29
    $region28: #{tpu_custom_call.1} parent=1 // pred_region
      _
    $region29: #{tpu_custom_call.1} parent=1 // pred_fallthru
      _
    // Predicated region
    $region30: #{tpu_custom_call.1} parent=1 // pred_check
      _
    $region31: #{tpu_custom_call.1} parent=1 // pred_check_branch
      %60 = sbr.rel (0) target = $region33
    $region32: #{tpu_custom_call.1} parent=1 // pred_region
      _
    $region33: #{tpu_custom_call.1} parent=1 // pred_fallthru
      _
    // Predicated region
    $region34: #{tpu_custom_call.1} parent=1 // pred_check
      _
    $region35: #{tpu_custom_call.1} parent=1 // pred_check_branch
      %62 = sbr.rel (0) target = $region37
    $region36: #{tpu_custom_call.1} parent=1 // pred_region
      _
    $region37: #{tpu_custom_call.1} parent=1 // pred_fallthru
      _
    // Predicated region
    $region38: #{tpu_custom_call.1} parent=1 // pred_check
      _
    $region39: #{tpu_custom_call.1} parent=1 // pred_check_branch
      %64 = sbr.rel (0) target = $region41
    $region40: #{tpu_custom_call.1} parent=1 // pred_region
      %65 = dma.done [#allocation3], 1024
    $region41: #{tpu_custom_call.1} parent=1 // pred_fallthru
      _
    // Predicated region
    $region42: #{tpu_custom_call.1} parent=1 // pred_check
      _
    $region43: #{tpu_custom_call.1} parent=1 // pred_check_branch
      %67 = sbr.rel (0) target = $region45
    $region44: #{tpu_custom_call.1} parent=1 // pred_region
      %68 = dma.done [#allocation6], 512
    $region45: #{tpu_custom_call.1} parent=1 // pred_fallthru
      _
    // Predicated region
    $region46: #{tpu_custom_call.1} parent=1 // pred_check
      _
    $region47: #{tpu_custom_call.1} parent=1 // pred_check_branch
      %70 = sbr.rel (0) target = $region49
    $region48: #{tpu_custom_call.1} parent=1 // pred_region
      %71 = dma.done [#allocation6], 512
    $region49: #{tpu_custom_call.1} parent=1 // pred_fallthru
      _
    %v72 = vld [vmem:[%s1] sm:$0xff]
    %v73 = vld [vmem:[%s2] sm:$0xff]
    %v74 = vld [vmem:[#allocation5] sm:$0xff]
    %v75 = vld [vmem:[#allocation5 + $0x8] sm:$0xff]
    %v76 = vld [vmem:[#allocation5 + $0x10] sm:$0xff]
    %v77 = vld [vmem:[#allocation5 + $0x18] sm:$0xff]
    %v78 = vld [vmem:[#allocation7] sm:$0xff]
    %v79 = vld [vmem:[#allocation7 + $0x8] sm:$0xff]
    %v80 = vld [vmem:[#allocation7 + $0x10] sm:$0xff]
    %v81 = vld [vmem:[#allocation7 + $0x18] sm:$0xff]
    %v82 = vld [vmem:[#allocation2] sm:$0xff]
    %83 = vrot.lane.b32.xlu0 %v82, 1
    %v84 = vpop.permute.xlu0 %83
    %85 = vrot.lane.b32.xlu0 0.0, 1
    %v86 = vpop.permute.xlu0 %85
    %v88 = vlaneseq
    %v89 = vshrl.u32 %v88, 7
    %v90 = vsub.s32 0, %v89
    %v91 = vrot.slane %v72, %v90
    %v93 = vmul.f32 %v84, %v91
    %v94 = vmul.f32 %v86, %v91
    %95 = vrot.lane.b32.xlu0 %v82, 127
    %v96 = vpop.permute.xlu0 %95
    %97 = vrot.lane.b32.xlu0 0.0, 127
    %v98 = vpop.permute.xlu0 %97
    %v100 = vlaneseq
    %v101 = vshrl.u32 %v100, 7
    %v102 = vsub.s32 0, %v101
    %v103 = vrot.slane %v73, %v102
    %v105 = vmul.f32 %v96, %v103
    %v106 = vmul.f32 %v98, %v103
    %vm107 = vcmask 392192
    %v109 = vsel %vm107, %v74, 0
    %v112 = vsel %vm107, %v75, 0
    %v115 = vsel %vm107, %v76, 0
    %v118 = vsel %vm107, %v77, 0
    %120 = vmatprep.subr.mxu0 0.0
    %121 = vmatpush1.msra.mxu0 %v93
    %122 = vmatprep.subr.mxu0 0.0
    %123 = vmatpush1.msra.mxu0 %v94
    %124 = vmatprep.subr.mxu0 0.0
    %125 = vmatpush1.msra.mxu0 %v82
    %126 = vmatprep.subr.mxu0 0.0
    %127 = vmatpush1.msra.mxu0 0.0
    %128 = vmatprep.subr.mxu0 0.0
    %129 = vmatpush1.msra.mxu0 %v105
    %130 = vmatprep.subr.mxu0 0.0
    %131 = vmatpush1.msra.mxu0 %v106
    %132 = vmatprep.subr.mxu0 0.0
    %133 = vmatpush1.msra.mxu0 0.0
    %134 = vmatprep.subr.mxu0 0.0
    %135 = vmatpush1.msra.mxu0 0.0
    %136 = vmatprep.subr.mxu0 0.0
    %137 = vmatpush1.msra.mxu0 0.0
    %138 = vmatprep.subr.mxu0 0.0
    %139 = vmatpush1.msra.mxu0 0.0
    %140 = vmatprep.subr.mxu0 0.0
    %141 = vmatpush1.msra.mxu0 0.0
    %142 = vmatprep.subr.mxu0 0.0
    %143 = vmatpush1.msra.mxu0 0.0
    %144 = vmatprep.subr.mxu0 0.0
    %145 = vmatpush1.msra.mxu0 0.0
    %146 = vmatprep.subr.mxu0 0.0
    %147 = vmatpush1.msra.mxu0 0.0
    %148 = vmatprep.subr.mxu0 0.0
    %149 = vmatpush1.msra.mxu0 0.0
    %150 = vmatprep.subr.mxu0 0.0
    %151 = vmatpush1.msra.mxu0 0.0
    %152 = vmatprep.subr.mxu0 0.0
    %153 = vmatpush1.msra.mxu0 0.0
    %154 = vmatprep.subr.mxu0 0.0
    %155 = vmatpush1.msra.mxu0 0.0
    %156 = vmatprep.subr.mxu0 0.0
    %157 = vmatpush1.msra.mxu0 0.0
    %158 = vmatprep.subr.mxu0 0.0
    %159 = vmatpush1.msra.mxu0 0.0
    %160 = vmatprep.subr.mxu0 0.0
    %161 = vmatpush1.msra.mxu0 0.0
    %162 = vmatprep.subr.mxu0 0.0
    %163 = vmatpush1.msra.mxu0 0.0
    %164 = vmatprep.subr.mxu0 0.0
    %165 = vmatpush1.msra.mxu0 0.0
    %166 = vmatprep.subr.mxu0 0.0
    %167 = vmatpush1.msra.mxu0 0.0
    %168 = vmatprep.subr.mxu0 0.0
    %169 = vmatpush1.msra.mxu0 0.0
    %170 = vmatprep.subr.mxu0 0.0
    %171 = vmatpush1.msra.mxu0 0.0
    %172 = vmatprep.subr.mxu0 0.0
    %173 = vmatpush1.msra.mxu0 0.0
    %174 = vmatprep.subr.mxu0 0.0
    %175 = vmatpush1.msra.mxu0 0.0
    %176 = vmatprep.subr.mxu0 0.0
    %177 = vmatpush1.msra.mxu0 0.0
    %178 = vmatprep.subr.mxu0 0.0
    %179 = vmatpush1.msra.mxu0 0.0
    %180 = vmatprep.subr.mxu0 0.0
    %181 = vmatpush1.msra.mxu0 0.0
    %182 = vmatprep.subr.mxu0 0.0
    %183 = vmatpush1.msra.mxu0 0.0
    %184 = vmatprep.mubr.f32.mxu0 0.0
    %185 = vmatmul.mubr.f32.gmra.mrb[0].mxu0 %v109
    %v186 = vpop.f32.mrb[0].mxu0
    %v187 = vadd.f32 0.0, %v186
    %v188 = vpop.f32.mrb[0].mxu0
    %189 = vmatprep.mubr.f32.mxu0 0.0
    %190 = vmatmul.mubr.f32.gmra.mrb[0].mxu0 %v112
    %v191 = vpop.f32.mrb[0].mxu0
    %v192 = vadd.f32 0.0, %v191
    %v193 = vpop.f32.mrb[0].mxu0
    %194 = vmatprep.mubr.f32.mxu0 0.0
    %195 = vmatmul.mubr.f32.gmra.mrb[0].mxu0 %v115
    %v196 = vpop.f32.mrb[0].mxu0
    %v197 = vadd.f32 0.0, %v196
    %v198 = vpop.f32.mrb[0].mxu0
    %199 = vmatprep.mubr.f32.mxu0 0.0
    %200 = vmatmul.mubr.f32.gmra.mrb[0].mxu0 %v118
    %v201 = vpop.f32.mrb[0].mxu0
    %v202 = vadd.f32 0.0, %v201
    %v203 = vpop.f32.mrb[0].mxu0
    %204 = vdwg.mxu0
    %v205 = vmul.f32 %v187, 0.5
    %v206 = vtanh.pop %v205
    %v207 = vmul.f32 %v206, 0.5
    %v208 = vadd.f32 %v207, 0.5
    %v209 = vmul.f32 %v192, 0.5
    %v210 = vtanh.pop %v209
    %v211 = vmul.f32 %v210, 0.5
    %v212 = vadd.f32 %v211, 0.5
    %v213 = vmul.f32 %v197, 0.5
    %v214 = vtanh.pop %v213
    %v215 = vmul.f32 %v214, 0.5
    %v216 = vadd.f32 %v215, 0.5
    %v217 = vtanh.pop %v202
    %v218 = vmul.f32 %v212, 0.0
    %v219 = vmul.f32 %v208, %v217
    %v220 = vadd.f32 %v218, %v219
    %v221 = vtanh.pop %v220
    %v222 = vmul.f32 %v216, %v221
    %223 = vrot.lane.b32.xlu0 %v222, 1
    %v224 = vpop.permute.xlu0 %223
    %v225 = vmul.f32 %v224, %v91
    %226 = vrot.lane.b32.xlu0 %v222, 127
    %v227 = vpop.permute.xlu0 %226
    %v228 = vmul.f32 %v227, %v103
    %v230 = vsel %vm107, %v78, 0
    %v233 = vsel %vm107, %v79, 0
    %v236 = vsel %vm107, %v80, 0
    %v239 = vsel %vm107, %v81, 0
    %241 = vmatprep.subr.mxu0 0.0
    %242 = vmatpush1.msra.mxu0 %v225
    %243 = vmatprep.subr.mxu0 0.0
    %244 = vmatpush1.msra.mxu0 %v94
    %245 = vmatprep.subr.mxu0 0.0
    %246 = vmatpush1.msra.mxu0 %v222
    %247 = vmatprep.subr.mxu0 0.0
    %248 = vmatpush1.msra.mxu0 0.0
    %249 = vmatprep.subr.mxu0 0.0
    %250 = vmatpush1.msra.mxu0 %v228
    %251 = vmatprep.subr.mxu0 0.0
    %252 = vmatpush1.msra.mxu0 %v106
    %253 = vmatprep.subr.mxu0 0.0
    %254 = vmatpush1.msra.mxu0 0.0
    %255 = vmatprep.subr.mxu0 0.0
    %256 = vmatpush1.msra.mxu0 0.0
    %257 = vmatprep.subr.mxu0 0.0
    %258 = vmatpush1.msra.mxu0 0.0
    %259 = vmatprep.subr.mxu0 0.0
    %260 = vmatpush1.msra.mxu0 0.0
    %261 = vmatprep.subr.mxu0 0.0
    %262 = vmatpush1.msra.mxu0 0.0
    %263 = vmatprep.subr.mxu0 0.0
    %264 = vmatpush1.msra.mxu0 0.0
    %265 = vmatprep.subr.mxu0 0.0
    %266 = vmatpush1.msra.mxu0 0.0
    %267 = vmatprep.subr.mxu0 0.0
    %268 = vmatpush1.msra.mxu0 0.0
    %269 = vmatprep.subr.mxu0 0.0
    %270 = vmatpush1.msra.mxu0 0.0
    %271 = vmatprep.subr.mxu0 0.0
    %272 = vmatpush1.msra.mxu0 0.0
    %273 = vmatprep.subr.mxu0 0.0
    %274 = vmatpush1.msra.mxu0 0.0
    %275 = vmatprep.subr.mxu0 0.0
    %276 = vmatpush1.msra.mxu0 0.0
    %277 = vmatprep.subr.mxu0 0.0
    %278 = vmatpush1.msra.mxu0 0.0
    %279 = vmatprep.subr.mxu0 0.0
    %280 = vmatpush1.msra.mxu0 0.0
    %281 = vmatprep.subr.mxu0 0.0
    %282 = vmatpush1.msra.mxu0 0.0
    %283 = vmatprep.subr.mxu0 0.0
    %284 = vmatpush1.msra.mxu0 0.0
    %285 = vmatprep.subr.mxu0 0.0
    %286 = vmatpush1.msra.mxu0 0.0
    %287 = vmatprep.subr.mxu0 0.0
    %288 = vmatpush1.msra.mxu0 0.0
    %289 = vmatprep.subr.mxu0 0.0
    %290 = vmatpush1.msra.mxu0 0.0
    %291 = vmatprep.subr.mxu0 0.0
    %292 = vmatpush1.msra.mxu0 0.0
    %293 = vmatprep.subr.mxu0 0.0
    %294 = vmatpush1.msra.mxu0 0.0
    %295 = vmatprep.subr.mxu0 0.0
    %296 = vmatpush1.msra.mxu0 0.0
    %297 = vmatprep.subr.mxu0 0.0
    %298 = vmatpush1.msra.mxu0 0.0
    %299 = vmatprep.subr.mxu0 0.0
    %300 = vmatpush1.msra.mxu0 0.0
    %301 = vmatprep.subr.mxu0 0.0
    %302 = vmatpush1.msra.mxu0 0.0
    %303 = vmatprep.subr.mxu0 0.0
    %304 = vmatpush1.msra.mxu0 0.0
    %305 = vmatprep.mubr.f32.mxu0 0.0
    %306 = vmatmul.mubr.f32.gmra.mrb[0].mxu0 %v230
    %v307 = vpop.f32.mrb[0].mxu0
    %v308 = vadd.f32 0.0, %v307
    %v309 = vpop.f32.mrb[0].mxu0
    %310 = vmatprep.mubr.f32.mxu0 0.0
    %311 = vmatmul.mubr.f32.gmra.mrb[0].mxu0 %v233
    %v312 = vpop.f32.mrb[0].mxu0
    %v313 = vadd.f32 0.0, %v312
    %v314 = vpop.f32.mrb[0].mxu0
    %315 = vmatprep.mubr.f32.mxu0 0.0
    %316 = vmatmul.mubr.f32.gmra.mrb[0].mxu0 %v236
    %v317 = vpop.f32.mrb[0].mxu0
    %v318 = vadd.f32 0.0, %v317
    %v319 = vpop.f32.mrb[0].mxu0
    %320 = vmatprep.mubr.f32.mxu0 0.0
    %321 = vmatmul.mubr.f32.gmra.mrb[0].mxu0 %v239
    %v322 = vpop.f32.mrb[0].mxu0
    %v323 = vadd.f32 0.0, %v322
    %v324 = vpop.f32.mrb[0].mxu0
    %325 = vdwg.mxu0
    %v326 = vmul.f32 %v308, 0.5
    %v327 = vtanh.pop %v326
    %v328 = vmul.f32 %v327, 0.5
    %v329 = vadd.f32 %v328, 0.5
    %v330 = vmul.f32 %v313, 0.5
    %v331 = vtanh.pop %v330
    %v332 = vmul.f32 %v331, 0.5
    %v333 = vadd.f32 %v332, 0.5
    %v334 = vmul.f32 %v318, 0.5
    %v335 = vtanh.pop %v334
    %v336 = vmul.f32 %v335, 0.5
    %v337 = vadd.f32 %v336, 0.5
    %v338 = vtanh.pop %v323
    %v339 = vmul.f32 %v333, 0.0
    %v340 = vmul.f32 %v329, %v338
    %v341 = vadd.f32 %v339, %v340
    %v342 = vtanh.pop %v341
    %v343 = vmul.f32 %v337, %v342
    %v344 = vld [vmem:[#allocation2 + $0x8] sm:$0xff]
    %345 = vrot.lane.b32.xlu0 %v344, 1
    %v346 = vpop.permute.xlu0 %345
    %v347 = vmul.f32 %v346, %v91
    %348 = vrot.lane.b32.xlu0 %v344, 127
    %v349 = vpop.permute.xlu0 %348
    %v350 = vmul.f32 %v349, %v103
    %351 = vmatprep.subr.mxu0 0.0
    %352 = vmatpush1.msra.mxu0 %v347
    %353 = vmatprep.subr.mxu0 0.0
    %354 = vmatpush1.msra.mxu0 %v225
    %355 = vmatprep.subr.mxu0 0.0
    %356 = vmatpush1.msra.mxu0 %v344
    %357 = vmatprep.subr.mxu0 0.0
    %358 = vmatpush1.msra.mxu0 %v222
    %359 = vmatprep.subr.mxu0 0.0
    %360 = vmatpush1.msra.mxu0 %v350
    %361 = vmatprep.subr.mxu0 0.0
    %362 = vmatpush1.msra.mxu0 %v228
    %363 = vmatprep.subr.mxu0 0.0
    %364 = vmatpush1.msra.mxu0 0.0
    %365 = vmatprep.subr.mxu0 0.0
    %366 = vmatpush1.msra.mxu0 0.0
    %367 = vmatprep.subr.mxu0 0.0
    %368 = vmatpush1.msra.mxu0 0.0
    %369 = vmatprep.subr.mxu0 0.0
    %370 = vmatpush1.msra.mxu0 0.0
    %371 = vmatprep.subr.mxu0 0.0
    %372 = vmatpush1.msra.mxu0 0.0
    %373 = vmatprep.subr.mxu0 0.0
    %374 = vmatpush1.msra.mxu0 0.0
    %375 = vmatprep.subr.mxu0 0.0
    %376 = vmatpush1.msra.mxu0 0.0
    %377 = vmatprep.subr.mxu0 0.0
    %378 = vmatpush1.msra.mxu0 0.0
    %379 = vmatprep.subr.mxu0 0.0
    %380 = vmatpush1.msra.mxu0 0.0
    %381 = vmatprep.subr.mxu0 0.0
    %382 = vmatpush1.msra.mxu0 0.0
    %383 = vmatprep.subr.mxu0 0.0
    %384 = vmatpush1.msra.mxu0 0.0
    %385 = vmatprep.subr.mxu0 0.0
    %386 = vmatpush1.msra.mxu0 0.0
    %387 = vmatprep.subr.mxu0 0.0
    %388 = vmatpush1.msra.mxu0 0.0
    %389 = vmatprep.subr.mxu0 0.0
    %390 = vmatpush1.msra.mxu0 0.0
    %391 = vmatprep.subr.mxu0 0.0
    %392 = vmatpush1.msra.mxu0 0.0
    %393 = vmatprep.subr.mxu0 0.0
    %394 = vmatpush1.msra.mxu0 0.0
    %395 = vmatprep.subr.mxu0 0.0
    %396 = vmatpush1.msra.mxu0 0.0
    %397 = vmatprep.subr.mxu0 0.0
    %398 = vmatpush1.msra.mxu0 0.0
    %399 = vmatprep.subr.mxu0 0.0
    %400 = vmatpush1.msra.mxu0 0.0
    %401 = vmatprep.subr.mxu0 0.0
    %402 = vmatpush1.msra.mxu0 0.0
    %403 = vmatprep.subr.mxu0 0.0
    %404 = vmatpush1.msra.mxu0 0.0
    %405 = vmatprep.subr.mxu0 0.0
    %406 = vmatpush1.msra.mxu0 0.0
    %407 = vmatprep.subr.mxu0 0.0
    %408 = vmatpush1.msra.mxu0 0.0
    %409 = vmatprep.subr.mxu0 0.0
    %410 = vmatpush1.msra.mxu0 0.0
    %411 = vmatprep.subr.mxu0 0.0
    %412 = vmatpush1.msra.mxu0 0.0
    %413 = vmatprep.subr.mxu0 0.0
    %414 = vmatpush1.msra.mxu0 0.0
    %415 = vmatprep.mubr.f32.mxu0 0.0
    %416 = vmatmul.mubr.f32.gmra.mrb[0].mxu0 %v109
    %v417 = vpop.f32.mrb[0].mxu0
    %v418 = vadd.f32 0.0, %v417
    %v419 = vpop.f32.mrb[0].mxu0
    %420 = vmatprep.mubr.f32.mxu0 0.0
    %421 = vmatmul.mubr.f32.gmra.mrb[0].mxu0 %v112
    %v422 = vpop.f32.mrb[0].mxu0
    %v423 = vadd.f32 0.0, %v422
    %v424 = vpop.f32.mrb[0].mxu0
    %425 = vmatprep.mubr.f32.mxu0 0.0
    %426 = vmatmul.mubr.f32.gmra.mrb[0].mxu0 %v115
    %v427 = vpop.f32.mrb[0].mxu0
    %v428 = vadd.f32 0.0, %v427
    %v429 = vpop.f32.mrb[0].mxu0
    %430 = vmatprep.mubr.f32.mxu0 0.0
    %431 = vmatmul.mubr.f32.gmra.mrb[0].mxu0 %v118
    %v432 = vpop.f32.mrb[0].mxu0
    %v433 = vadd.f32 0.0, %v432
    %v434 = vpop.f32.mrb[0].mxu0
    %435 = vdwg.mxu0
    %v436 = vmul.f32 %v418, 0.5
    %v437 = vtanh.pop %v436
    %v438 = vmul.f32 %v437, 0.5
    %v439 = vadd.f32 %v438, 0.5
    %v440 = vmul.f32 %v423, 0.5
    %v441 = vtanh.pop %v440
    %v442 = vmul.f32 %v441, 0.5
    %v443 = vadd.f32 %v442, 0.5
    %v444 = vmul.f32 %v428, 0.5
    %v445 = vtanh.pop %v444
    %v446 = vmul.f32 %v445, 0.5
    %v447 = vadd.f32 %v446, 0.5
    %v448 = vtanh.pop %v433
    %v449 = vmul.f32 %v443, %v220
    %v450 = vmul.f32 %v439, %v448
    %v451 = vadd.f32 %v449, %v450
    %v452 = vtanh.pop %v451
    %v453 = vmul.f32 %v447, %v452
    %454 = vrot.lane.b32.xlu0 %v453, 1
    %v455 = vpop.permute.xlu0 %454
    %456 = vrot.lane.b32.xlu0 %v343, 1
    %v457 = vpop.permute.xlu0 %456
    %v458 = vmul.f32 %v455, %v91
    %v459 = vmul.f32 %v457, %v91
    %460 = vrot.lane.b32.xlu0 %v453, 127
    %v461 = vpop.permute.xlu0 %460
    %462 = vrot.lane.b32.xlu0 %v343, 127
    %v463 = vpop.permute.xlu0 %462
    %v464 = vmul.f32 %v461, %v103
    %v465 = vmul.f32 %v463, %v103
    %466 = vmatprep.subr.mxu0 0.0
    %467 = vmatpush1.msra.mxu0 %v458
    %468 = vmatprep.subr.mxu0 0.0
    %469 = vmatpush1.msra.mxu0 %v459
    %470 = vmatprep.subr.mxu0 0.0
    %471 = vmatpush1.msra.mxu0 %v453
    %472 = vmatprep.subr.mxu0 0.0
    %473 = vmatpush1.msra.mxu0 %v343
    %474 = vmatprep.subr.mxu0 0.0
    %475 = vmatpush1.msra.mxu0 %v464
    %476 = vmatprep.subr.mxu0 0.0
    %477 = vmatpush1.msra.mxu0 %v465
    %478 = vmatprep.subr.mxu0 0.0
    %479 = vmatpush1.msra.mxu0 0.0
    %480 = vmatprep.subr.mxu0 0.0
    %481 = vmatpush1.msra.mxu0 0.0
    %482 = vmatprep.subr.mxu0 0.0
    %483 = vmatpush1.msra.mxu0 0.0
    %484 = vmatprep.subr.mxu0 0.0
    %485 = vmatpush1.msra.mxu0 0.0
    %486 = vmatprep.subr.mxu0 0.0
    %487 = vmatpush1.msra.mxu0 0.0
    %488 = vmatprep.subr.mxu0 0.0
    %489 = vmatpush1.msra.mxu0 0.0
    %490 = vmatprep.subr.mxu0 0.0
    %491 = vmatpush1.msra.mxu0 0.0
    %492 = vmatprep.subr.mxu0 0.0
    %493 = vmatpush1.msra.mxu0 0.0
    %494 = vmatprep.subr.mxu0 0.0
    %495 = vmatpush1.msra.mxu0 0.0
    %496 = vmatprep.subr.mxu0 0.0
    %497 = vmatpush1.msra.mxu0 0.0
    %498 = vmatprep.subr.mxu0 0.0
    %499 = vmatpush1.msra.mxu0 0.0
    %500 = vmatprep.subr.mxu0 0.0
    %501 = vmatpush1.msra.mxu0 0.0
    %502 = vmatprep.subr.mxu0 0.0
    %503 = vmatpush1.msra.mxu0 0.0
    %504 = vmatprep.subr.mxu0 0.0
    %505 = vmatpush1.msra.mxu0 0.0
    %506 = vmatprep.subr.mxu0 0.0
    %507 = vmatpush1.msra.mxu0 0.0
    %508 = vmatprep.subr.mxu0 0.0
    %509 = vmatpush1.msra.mxu0 0.0
    %510 = vmatprep.subr.mxu0 0.0
    %511 = vmatpush1.msra.mxu0 0.0
    %512 = vmatprep.subr.mxu0 0.0
    %513 = vmatpush1.msra.mxu0 0.0
    %514 = vmatprep.subr.mxu0 0.0
    %515 = vmatpush1.msra.mxu0 0.0
    %516 = vmatprep.subr.mxu0 0.0
    %517 = vmatpush1.msra.mxu0 0.0
    %518 = vmatprep.subr.mxu0 0.0
    %519 = vmatpush1.msra.mxu0 0.0
    %520 = vmatprep.subr.mxu0 0.0
    %521 = vmatpush1.msra.mxu0 0.0
    %522 = vmatprep.subr.mxu0 0.0
    %523 = vmatpush1.msra.mxu0 0.0
    %524 = vmatprep.subr.mxu0 0.0
    %525 = vmatpush1.msra.mxu0 0.0
    %526 = vmatprep.subr.mxu0 0.0
    %527 = vmatpush1.msra.mxu0 0.0
    %528 = vmatprep.subr.mxu0 0.0
    %529 = vmatpush1.msra.mxu0 0.0
    %530 = vmatprep.mubr.f32.mxu0 0.0
    %531 = vmatmul.mubr.f32.gmra.mrb[0].mxu0 %v230
    %v532 = vpop.f32.mrb[0].mxu0
    %v533 = vadd.f32 0.0, %v532
    %v534 = vpop.f32.mrb[0].mxu0
    %535 = vmatprep.mubr.f32.mxu0 0.0
    %536 = vmatmul.mubr.f32.gmra.mrb[0].mxu0 %v233
    %v537 = vpop.f32.mrb[0].mxu0
    %v538 = vadd.f32 0.0, %v537
    %v539 = vpop.f32.mrb[0].mxu0
    %540 = vmatprep.mubr.f32.mxu0 0.0
    %541 = vmatmul.mubr.f32.gmra.mrb[0].mxu0 %v236
    %v542 = vpop.f32.mrb[0].mxu0
    %v543 = vadd.f32 0.0, %v542
    %v544 = vpop.f32.mrb[0].mxu0
    %545 = vmatprep.mubr.f32.mxu0 0.0
    %546 = vmatmul.mubr.f32.gmra.mrb[0].mxu0 %v239
    %v547 = vpop.f32.mrb[0].mxu0
    %v548 = vadd.f32 0.0, %v547
    %v549 = vpop.f32.mrb[0].mxu0
    %550 = vdwg.mxu0
    %v551 = vmul.f32 %v533, 0.5
    %v552 = vtanh.pop %v551
    %v553 = vmul.f32 %v552, 0.5
    %v554 = vadd.f32 %v553, 0.5
    %v555 = vmul.f32 %v538, 0.5
    %v556 = vtanh.pop %v555
    %v557 = vmul.f32 %v556, 0.5
    %v558 = vadd.f32 %v557, 0.5
    %v559 = vmul.f32 %v543, 0.5
    %v560 = vtanh.pop %v559
    %v561 = vmul.f32 %v560, 0.5
    %v562 = vadd.f32 %v561, 0.5
    %v563 = vtanh.pop %v548
    %v564 = vmul.f32 %v558, %v341
    %v565 = vmul.f32 %v554, %v563
    %v566 = vadd.f32 %v564, %v565
    %v567 = vtanh.pop %v566
    %v568 = vmul.f32 %v562, %v567
    %v569 = vld [vmem:[#allocation2 + $0x10] sm:$0xff]
    %570 = vrot.lane.b32.xlu0 %v569, 1
    %v571 = vpop.permute.xlu0 %570
    %v572 = vmul.f32 %v571, %v91
    %573 = vrot.lane.b32.xlu0 %v569, 127
    %v574 = vpop.permute.xlu0 %573
    %v575 = vmul.f32 %v574, %v103
    %576 = vmatprep.subr.mxu0 0.0
    %577 = vmatpush1.msra.mxu0 %v572
    %578 = vmatprep.subr.mxu0 0.0
    %579 = vmatpush1.msra.mxu0 %v458
    %580 = vmatprep.subr.mxu0 0.0
    %581 = vmatpush1.msra.mxu0 %v569
    %582 = vmatprep.subr.mxu0 0.0
    %583 = vmatpush1.msra.mxu0 %v453
    %584 = vmatprep.subr.mxu0 0.0
    %585 = vmatpush1.msra.mxu0 %v575
    %586 = vmatprep.subr.mxu0 0.0
    %587 = vmatpush1.msra.mxu0 %v464
    %588 = vmatprep.subr.mxu0 0.0
    %589 = vmatpush1.msra.mxu0 0.0
    %590 = vmatprep.subr.mxu0 0.0
    %591 = vmatpush1.msra.mxu0 0.0
    %592 = vmatprep.subr.mxu0 0.0
    %593 = vmatpush1.msra.mxu0 0.0
    %594 = vmatprep.subr.mxu0 0.0
    %595 = vmatpush1.msra.mxu0 0.0
    %596 = vmatprep.subr.mxu0 0.0
    %597 = vmatpush1.msra.mxu0 0.0
    %598 = vmatprep.subr.mxu0 0.0
    %599 = vmatpush1.msra.mxu0 0.0
    %600 = vmatprep.subr.mxu0 0.0
    %601 = vmatpush1.msra.mxu0 0.0
    %602 = vmatprep.subr.mxu0 0.0
    %603 = vmatpush1.msra.mxu0 0.0
    %604 = vmatprep.subr.mxu0 0.0
    %605 = vmatpush1.msra.mxu0 0.0
    %606 = vmatprep.subr.mxu0 0.0
    %607 = vmatpush1.msra.mxu0 0.0
    %608 = vmatprep.subr.mxu0 0.0
    %609 = vmatpush1.msra.mxu0 0.0
    %610 = vmatprep.subr.mxu0 0.0
    %611 = vmatpush1.msra.mxu0 0.0
    %612 = vmatprep.subr.mxu0 0.0
    %613 = vmatpush1.msra.mxu0 0.0
    %614 = vmatprep.subr.mxu0 0.0
    %615 = vmatpush1.msra.mxu0 0.0
    %616 = vmatprep.subr.mxu0 0.0
    %617 = vmatpush1.msra.mxu0 0.0
    %618 = vmatprep.subr.mxu0 0.0
    %619 = vmatpush1.msra.mxu0 0.0
    %620 = vmatprep.subr.mxu0 0.0
    %621 = vmatpush1.msra.mxu0 0.0
    %622 = vmatprep.subr.mxu0 0.0
    %623 = vmatpush1.msra.mxu0 0.0
    %624 = vmatprep.subr.mxu0 0.0
    %625 = vmatpush1.msra.mxu0 0.0
    %626 = vmatprep.subr.mxu0 0.0
    %627 = vmatpush1.msra.mxu0 0.0
    %628 = vmatprep.subr.mxu0 0.0
    %629 = vmatpush1.msra.mxu0 0.0
    %630 = vmatprep.subr.mxu0 0.0
    %631 = vmatpush1.msra.mxu0 0.0
    %632 = vmatprep.subr.mxu0 0.0
    %633 = vmatpush1.msra.mxu0 0.0
    %634 = vmatprep.subr.mxu0 0.0
    %635 = vmatpush1.msra.mxu0 0.0
    %636 = vmatprep.subr.mxu0 0.0
    %637 = vmatpush1.msra.mxu0 0.0
    %638 = vmatprep.subr.mxu0 0.0
    %639 = vmatpush1.msra.mxu0 0.0
    %640 = vmatprep.mubr.f32.mxu0 0.0
    %641 = vmatmul.mubr.f32.gmra.mrb[0].mxu0 %v109
    %v642 = vpop.f32.mrb[0].mxu0
    %v643 = vadd.f32 0.0, %v642
    %v644 = vpop.f32.mrb[0].mxu0
    %645 = vmatprep.mubr.f32.mxu0 0.0
    %646 = vmatmul.mubr.f32.gmra.mrb[0].mxu0 %v112
    %v647 = vpop.f32.mrb[0].mxu0
    %v648 = vadd.f32 0.0, %v647
    %v649 = vpop.f32.mrb[0].mxu0
    %650 = vmatprep.mubr.f32.mxu0 0.0
    %651 = vmatmul.mubr.f32.gmra.mrb[0].mxu0 %v115
    %v652 = vpop.f32.mrb[0].mxu0
    %v653 = vadd.f32 0.0, %v652
    %v654 = vpop.f32.mrb[0].mxu0
    %655 = vmatprep.mubr.f32.mxu0 0.0
    %656 = vmatmul.mubr.f32.gmra.mrb[0].mxu0 %v118
    %v657 = vpop.f32.mrb[0].mxu0
    %v658 = vadd.f32 0.0, %v657
    %v659 = vpop.f32.mrb[0].mxu0
    %660 = vdwg.mxu0
    %v661 = vmul.f32 %v643, 0.5
    %v662 = vtanh.pop %v661
    %v663 = vmul.f32 %v662, 0.5
    %v664 = vadd.f32 %v663, 0.5
    %v665 = vmul.f32 %v648, 0.5
    %v666 = vtanh.pop %v665
    %v667 = vmul.f32 %v666, 0.5
    %v668 = vadd.f32 %v667, 0.5
    %v669 = vmul.f32 %v653, 0.5
    %v670 = vtanh.pop %v669
    %v671 = vmul.f32 %v670, 0.5
    %v672 = vadd.f32 %v671, 0.5
    %v673 = vtanh.pop %v658
    %v674 = vmul.f32 %v668, %v451
    %v675 = vmul.f32 %v664, %v673
    %v676 = vadd.f32 %v674, %v675
    %v677 = vtanh.pop %v676
    %v678 = vmul.f32 %v672, %v677
    %679 = vrot.lane.b32.xlu0 %v678, 1
    %v680 = vpop.permute.xlu0 %679
    %681 = vrot.lane.b32.xlu0 %v568, 1
    %v682 = vpop.permute.xlu0 %681
    %v683 = vmul.f32 %v680, %v91
    %v684 = vmul.f32 %v682, %v91
    %685 = vrot.lane.b32.xlu0 %v678, 127
    %v686 = vpop.permute.xlu0 %685
    %687 = vrot.lane.b32.xlu0 %v568, 127
    %v688 = vpop.permute.xlu0 %687
    %v689 = vmul.f32 %v686, %v103
    %v690 = vmul.f32 %v688, %v103
    %691 = vmatprep.subr.mxu0 0.0
    %692 = vmatpush1.msra.mxu0 %v683
    %693 = vmatprep.subr.mxu0 0.0
    %694 = vmatpush1.msra.mxu0 %v684
    %695 = vmatprep.subr.mxu0 0.0
    %696 = vmatpush1.msra.mxu0 %v678
    %697 = vmatprep.subr.mxu0 0.0
    %698 = vmatpush1.msra.mxu0 %v568
    %699 = vmatprep.subr.mxu0 0.0
    %700 = vmatpush1.msra.mxu0 %v689
    %701 = vmatprep.subr.mxu0 0.0
    %702 = vmatpush1.msra.mxu0 %v690
    %703 = vmatprep.subr.mxu0 0.0
    %704 = vmatpush1.msra.mxu0 0.0
    %705 = vmatprep.subr.mxu0 0.0
    %706 = vmatpush1.msra.mxu0 0.0
    %707 = vmatprep.subr.mxu0 0.0
    %708 = vmatpush1.msra.mxu0 0.0
    %709 = vmatprep.subr.mxu0 0.0
    %710 = vmatpush1.msra.mxu0 0.0
    %711 = vmatprep.subr.mxu0 0.0
    %712 = vmatpush1.msra.mxu0 0.0
    %713 = vmatprep.subr.mxu0 0.0
    %714 = vmatpush1.msra.mxu0 0.0
    %715 = vmatprep.subr.mxu0 0.0
    %716 = vmatpush1.msra.mxu0 0.0
    %717 = vmatprep.subr.mxu0 0.0
    %718 = vmatpush1.msra.mxu0 0.0
    %719 = vmatprep.subr.mxu0 0.0
    %720 = vmatpush1.msra.mxu0 0.0
    %721 = vmatprep.subr.mxu0 0.0
    %722 = vmatpush1.msra.mxu0 0.0
    %723 = vmatprep.subr.mxu0 0.0
    %724 = vmatpush1.msra.mxu0 0.0
    %725 = vmatprep.subr.mxu0 0.0
    %726 = vmatpush1.msra.mxu0 0.0
    %727 = vmatprep.subr.mxu0 0.0
    %728 = vmatpush1.msra.mxu0 0.0
    %729 = vmatprep.subr.mxu0 0.0
    %730 = vmatpush1.msra.mxu0 0.0
    %731 = vmatprep.subr.mxu0 0.0
    %732 = vmatpush1.msra.mxu0 0.0
    %733 = vmatprep.subr.mxu0 0.0
    %734 = vmatpush1.msra.mxu0 0.0
    %735 = vmatprep.subr.mxu0 0.0
    %736 = vmatpush1.msra.mxu0 0.0
    %737 = vmatprep.subr.mxu0 0.0
    %738 = vmatpush1.msra.mxu0 0.0
    %739 = vmatprep.subr.mxu0 0.0
    %740 = vmatpush1.msra.mxu0 0.0
    %741 = vmatprep.subr.mxu0 0.0
    %742 = vmatpush1.msra.mxu0 0.0
    %743 = vmatprep.subr.mxu0 0.0
    %744 = vmatpush1.msra.mxu0 0.0
    %745 = vmatprep.subr.mxu0 0.0
    %746 = vmatpush1.msra.mxu0 0.0
    %747 = vmatprep.subr.mxu0 0.0
    %748 = vmatpush1.msra.mxu0 0.0
    %749 = vmatprep.subr.mxu0 0.0
    %750 = vmatpush1.msra.mxu0 0.0
    %751 = vmatprep.subr.mxu0 0.0
    %752 = vmatpush1.msra.mxu0 0.0
    %753 = vmatprep.subr.mxu0 0.0
    %754 = vmatpush1.msra.mxu0 0.0
    %755 = vmatprep.mubr.f32.mxu0 0.0
    %756 = vmatmul.mubr.f32.gmra.mrb[0].mxu0 %v230
    %v757 = vpop.f32.mrb[0].mxu0
    %v758 = vadd.f32 0.0, %v757
    %v759 = vpop.f32.mrb[0].mxu0
    %760 = vmatprep.mubr.f32.mxu0 0.0
    %761 = vmatmul.mubr.f32.gmra.mrb[0].mxu0 %v233
    %v762 = vpop.f32.mrb[0].mxu0
    %v763 = vadd.f32 0.0, %v762
    %v764 = vpop.f32.mrb[0].mxu0
    %765 = vmatprep.mubr.f32.mxu0 0.0
    %766 = vmatmul.mubr.f32.gmra.mrb[0].mxu0 %v236
    %v767 = vpop.f32.mrb[0].mxu0
    %v768 = vadd.f32 0.0, %v767
    %v769 = vpop.f32.mrb[0].mxu0
    %770 = vmatprep.mubr.f32.mxu0 0.0
    %771 = vmatmul.mubr.f32.gmra.mrb[0].mxu0 %v239
    %v772 = vpop.f32.mrb[0].mxu0
    %v773 = vadd.f32 0.0, %v772
    %v774 = vpop.f32.mrb[0].mxu0
    %775 = vdwg.mxu0
    %v776 = vmul.f32 %v758, 0.5
    %v777 = vtanh.pop %v776
    %v778 = vmul.f32 %v777, 0.5
    %v779 = vadd.f32 %v778, 0.5
    %v780 = vmul.f32 %v763, 0.5
    %v781 = vtanh.pop %v780
    %v782 = vmul.f32 %v781, 0.5
    %v783 = vadd.f32 %v782, 0.5
    %v784 = vmul.f32 %v768, 0.5
    %v785 = vtanh.pop %v784
    %v786 = vmul.f32 %v785, 0.5
    %v787 = vadd.f32 %v786, 0.5
    %v788 = vtanh.pop %v773
    %v789 = vmul.f32 %v783, %v566
    %v790 = vmul.f32 %v779, %v788
    %v791 = vadd.f32 %v789, %v790
    %v792 = vtanh.pop %v791
    %v793 = vmul.f32 %v787, %v792
    %v794 = vld [vmem:[#allocation2 + $0x18] sm:$0xff]
    %795 = vrot.lane.b32.xlu0 %v794, 1
    %v796 = vpop.permute.xlu0 %795
    %v797 = vmul.f32 %v796, %v91
    %798 = vrot.lane.b32.xlu0 %v794, 127
    %v799 = vpop.permute.xlu0 %798
    %v800 = vmul.f32 %v799, %v103
    %801 = vmatprep.subr.mxu0 0.0
    %802 = vmatpush1.msra.mxu0 %v797
    %803 = vmatprep.subr.mxu0 0.0
    %804 = vmatpush1.msra.mxu0 %v683
    %805 = vmatprep.subr.mxu0 0.0
    %806 = vmatpush1.msra.mxu0 %v794
    %807 = vmatprep.subr.mxu0 0.0
    %808 = vmatpush1.msra.mxu0 %v678
    %809 = vmatprep.subr.mxu0 0.0
    %810 = vmatpush1.msra.mxu0 %v800
    %811 = vmatprep.subr.mxu0 0.0
    %812 = vmatpush1.msra.mxu0 %v689
    %813 = vmatprep.subr.mxu0 0.0
    %814 = vmatpush1.msra.mxu0 0.0
    %815 = vmatprep.subr.mxu0 0.0
    %816 = vmatpush1.msra.mxu0 0.0
    %817 = vmatprep.subr.mxu0 0.0
    %818 = vmatpush1.msra.mxu0 0.0
    %819 = vmatprep.subr.mxu0 0.0
    %820 = vmatpush1.msra.mxu0 0.0
    %821 = vmatprep.subr.mxu0 0.0
    %822 = vmatpush1.msra.mxu0 0.0
    %823 = vmatprep.subr.mxu0 0.0
    %824 = vmatpush1.msra.mxu0 0.0
    %825 = vmatprep.subr.mxu0 0.0
    %826 = vmatpush1.msra.mxu0 0.0
    %827 = vmatprep.subr.mxu0 0.0
    %828 = vmatpush1.msra.mxu0 0.0
    %829 = vmatprep.subr.mxu0 0.0
    %830 = vmatpush1.msra.mxu0 0.0
    %831 = vmatprep.subr.mxu0 0.0
    %832 = vmatpush1.msra.mxu0 0.0
    %833 = vmatprep.subr.mxu0 0.0
    %834 = vmatpush1.msra.mxu0 0.0
    %835 = vmatprep.subr.mxu0 0.0
    %836 = vmatpush1.msra.mxu0 0.0
    %837 = vmatprep.subr.mxu0 0.0
    %838 = vmatpush1.msra.mxu0 0.0
    %839 = vmatprep.subr.mxu0 0.0
    %840 = vmatpush1.msra.mxu0 0.0
    %841 = vmatprep.subr.mxu0 0.0
    %842 = vmatpush1.msra.mxu0 0.0
    %843 = vmatprep.subr.mxu0 0.0
    %844 = vmatpush1.msra.mxu0 0.0
    %845 = vmatprep.subr.mxu0 0.0
    %846 = vmatpush1.msra.mxu0 0.0
    %847 = vmatprep.subr.mxu0 0.0
    %848 = vmatpush1.msra.mxu0 0.0
    %849 = vmatprep.subr.mxu0 0.0
    %850 = vmatpush1.msra.mxu0 0.0
    %851 = vmatprep.subr.mxu0 0.0
    %852 = vmatpush1.msra.mxu0 0.0
    %853 = vmatprep.subr.mxu0 0.0
    %854 = vmatpush1.msra.mxu0 0.0
    %855 = vmatprep.subr.mxu0 0.0
    %856 = vmatpush1.msra.mxu0 0.0
    %857 = vmatprep.subr.mxu0 0.0
    %858 = vmatpush1.msra.mxu0 0.0
    %859 = vmatprep.subr.mxu0 0.0
    %860 = vmatpush1.msra.mxu0 0.0
    %861 = vmatprep.subr.mxu0 0.0
    %862 = vmatpush1.msra.mxu0 0.0
    %863 = vmatprep.subr.mxu0 0.0
    %864 = vmatpush1.msra.mxu0 0.0
    %865 = vmatprep.mubr.f32.mxu0 0.0
    %866 = vmatmul.mubr.f32.gmra.mrb[0].mxu0 %v109
    %v867 = vpop.f32.mrb[0].mxu0
    %v868 = vadd.f32 0.0, %v867
    %v869 = vpop.f32.mrb[0].mxu0
    %870 = vmatprep.mubr.f32.mxu0 0.0
    %871 = vmatmul.mubr.f32.gmra.mrb[0].mxu0 %v112
    %v872 = vpop.f32.mrb[0].mxu0
    %v873 = vadd.f32 0.0, %v872
    %v874 = vpop.f32.mrb[0].mxu0
    %875 = vmatprep.mubr.f32.mxu0 0.0
    %876 = vmatmul.mubr.f32.gmra.mrb[0].mxu0 %v115
    %v877 = vpop.f32.mrb[0].mxu0
    %v878 = vadd.f32 0.0, %v877
    %v879 = vpop.f32.mrb[0].mxu0
    %880 = vmatprep.mubr.f32.mxu0 0.0
    %881 = vmatmul.mubr.f32.gmra.mrb[0].mxu0 %v118
    %v882 = vpop.f32.mrb[0].mxu0
    %v883 = vadd.f32 0.0, %v882
    %v884 = vpop.f32.mrb[0].mxu0
    %885 = vdwg.mxu0
    %v886 = vmul.f32 %v868, 0.5
    %v887 = vtanh.pop %v886
    %v888 = vmul.f32 %v887, 0.5
    %v889 = vadd.f32 %v888, 0.5
    %v890 = vmul.f32 %v873, 0.5
    %v891 = vtanh.pop %v890
    %v892 = vmul.f32 %v891, 0.5
    %v893 = vadd.f32 %v892, 0.5
    %v894 = vmul.f32 %v878, 0.5
    %v895 = vtanh.pop %v894
    %v896 = vmul.f32 %v895, 0.5
    %v897 = vadd.f32 %v896, 0.5
    %v898 = vtanh.pop %v883
    %v899 = vmul.f32 %v893, %v676
    %v900 = vmul.f32 %v889, %v898
    %v901 = vadd.f32 %v899, %v900
    %v902 = vtanh.pop %v901
    %v903 = vmul.f32 %v897, %v902
    %904 = vrot.lane.b32.xlu0 %v903, 1
    %v905 = vpop.permute.xlu0 %904
    %906 = vrot.lane.b32.xlu0 %v793, 1
    %v907 = vpop.permute.xlu0 %906
    %v908 = vmul.f32 %v905, %v91
    %v909 = vmul.f32 %v907, %v91
    %910 = vrot.lane.b32.xlu0 %v903, 127
    %v911 = vpop.permute.xlu0 %910
    %912 = vrot.lane.b32.xlu0 %v793, 127
    %v913 = vpop.permute.xlu0 %912
    %v914 = vmul.f32 %v911, %v103
    %v915 = vmul.f32 %v913, %v103
    %916 = vmatprep.subr.mxu0 0.0
    %917 = vmatpush1.msra.mxu0 %v908
    %918 = vmatprep.subr.mxu0 0.0
    %919 = vmatpush1.msra.mxu0 %v909
    %920 = vmatprep.subr.mxu0 0.0
    %921 = vmatpush1.msra.mxu0 %v903
    %922 = vmatprep.subr.mxu0 0.0
    %923 = vmatpush1.msra.mxu0 %v793
    %924 = vmatprep.subr.mxu0 0.0
    %925 = vmatpush1.msra.mxu0 %v914
    %926 = vmatprep.subr.mxu0 0.0
    %927 = vmatpush1.msra.mxu0 %v915
    %928 = vmatprep.subr.mxu0 0.0
    %929 = vmatpush1.msra.mxu0 0.0
    %930 = vmatprep.subr.mxu0 0.0
    %931 = vmatpush1.msra.mxu0 0.0
    %932 = vmatprep.subr.mxu0 0.0
    %933 = vmatpush1.msra.mxu0 0.0
    %934 = vmatprep.subr.mxu0 0.0
    %935 = vmatpush1.msra.mxu0 0.0
    %936 = vmatprep.subr.mxu0 0.0
    %937 = vmatpush1.msra.mxu0 0.0
    %938 = vmatprep.subr.mxu0 0.0
    %939 = vmatpush1.msra.mxu0 0.0
    %940 = vmatprep.subr.mxu0 0.0
    %941 = vmatpush1.msra.mxu0 0.0
    %942 = vmatprep.subr.mxu0 0.0
    %943 = vmatpush1.msra.mxu0 0.0
    %944 = vmatprep.subr.mxu0 0.0
    %945 = vmatpush1.msra.mxu0 0.0
    %946 = vmatprep.subr.mxu0 0.0
    %947 = vmatpush1.msra.mxu0 0.0
    %948 = vmatprep.subr.mxu0 0.0
    %949 = vmatpush1.msra.mxu0 0.0
    %950 = vmatprep.subr.mxu0 0.0
    %951 = vmatpush1.msra.mxu0 0.0
    %952 = vmatprep.subr.mxu0 0.0
    %953 = vmatpush1.msra.mxu0 0.0
    %954 = vmatprep.subr.mxu0 0.0
    %955 = vmatpush1.msra.mxu0 0.0
    %956 = vmatprep.subr.mxu0 0.0
    %957 = vmatpush1.msra.mxu0 0.0
    %958 = vmatprep.subr.mxu0 0.0
    %959 = vmatpush1.msra.mxu0 0.0
    %960 = vmatprep.subr.mxu0 0.0
    %961 = vmatpush1.msra.mxu0 0.0
    %962 = vmatprep.subr.mxu0 0.0
    %963 = vmatpush1.msra.mxu0 0.0
    %964 = vmatprep.subr.mxu0 0.0
    %965 = vmatpush1.msra.mxu0 0.0
    %966 = vmatprep.subr.mxu0 0.0
    %967 = vmatpush1.msra.mxu0 0.0
    %968 = vmatprep.subr.mxu0 0.0
    %969 = vmatpush1.msra.mxu0 0.0
    %970 = vmatprep.subr.mxu0 0.0
    %971 = vmatpush1.msra.mxu0 0.0
    %972 = vmatprep.subr.mxu0 0.0
    %973 = vmatpush1.msra.mxu0 0.0
    %974 = vmatprep.subr.mxu0 0.0
    %975 = vmatpush1.msra.mxu0 0.0
    %976 = vmatprep.subr.mxu0 0.0
    %977 = vmatpush1.msra.mxu0 0.0
    %978 = vmatprep.subr.mxu0 0.0
    %979 = vmatpush1.msra.mxu0 0.0
    %980 = vmatprep.mubr.f32.mxu0 0.0
    %981 = vmatmul.mubr.f32.gmra.mrb[0].mxu0 %v230
    %v982 = vpop.f32.mrb[0].mxu0
    %v983 = vadd.f32 0.0, %v982
    %v984 = vpop.f32.mrb[0].mxu0
    %985 = vmatprep.mubr.f32.mxu0 0.0
    %986 = vmatmul.mubr.f32.gmra.mrb[0].mxu0 %v233
    %v987 = vpop.f32.mrb[0].mxu0
    %v988 = vadd.f32 0.0, %v987
    %v989 = vpop.f32.mrb[0].mxu0
    %990 = vmatprep.mubr.f32.mxu0 0.0
    %991 = vmatmul.mubr.f32.gmra.mrb[0].mxu0 %v236
    %v992 = vpop.f32.mrb[0].mxu0
    %v993 = vadd.f32 0.0, %v992
    %v994 = vpop.f32.mrb[0].mxu0
    %995 = vmatprep.mubr.f32.mxu0 0.0
    %996 = vmatmul.mubr.f32.gmra.mrb[0].mxu0 %v239
    %v997 = vpop.f32.mrb[0].mxu0
    %v998 = vadd.f32 0.0, %v997
    %v999 = vpop.f32.mrb[0].mxu0
    %1000 = vdwg.mxu0
    %v1001 = vmul.f32 %v983, 0.5
    %v1002 = vtanh.pop %v1001
    %v1003 = vmul.f32 %v1002, 0.5
    %v1004 = vadd.f32 %v1003, 0.5
    %v1005 = vmul.f32 %v988, 0.5
    %v1006 = vtanh.pop %v1005
    %v1007 = vmul.f32 %v1006, 0.5
    %v1008 = vadd.f32 %v1007, 0.5
    %v1009 = vmul.f32 %v993, 0.5
    %v1010 = vtanh.pop %v1009
    %v1011 = vmul.f32 %v1010, 0.5
    %v1012 = vadd.f32 %v1011, 0.5
    %v1013 = vtanh.pop %v998
    %v1014 = vmul.f32 %v1008, %v791
    %v1015 = vmul.f32 %v1004, %v1013
    %v1016 = vadd.f32 %v1014, %v1015
    %v1017 = vtanh.pop %v1016
    %v1018 = vmul.f32 %v1012, %v1017
    %v1019 = vld [vmem:[#allocation2 + $0x20] sm:$0xff]
    %1020 = vrot.lane.b32.xlu0 %v1019, 1
    %v1021 = vpop.permute.xlu0 %1020
    %v1022 = vmul.f32 %v1021, %v91
    %1023 = vrot.lane.b32.xlu0 %v1019, 127
    %v1024 = vpop.permute.xlu0 %1023
    %v1025 = vmul.f32 %v1024, %v103
    %1026 = vmatprep.subr.mxu0 0.0
    %1027 = vmatpush1.msra.mxu0 %v1022
    %1028 = vmatprep.subr.mxu0 0.0
    %1029 = vmatpush1.msra.mxu0 %v908
    %1030 = vmatprep.subr.mxu0 0.0
    %1031 = vmatpush1.msra.mxu0 %v1019
    %1032 = vmatprep.subr.mxu0 0.0
    %1033 = vmatpush1.msra.mxu0 %v903
    %1034 = vmatprep.subr.mxu0 0.0
    %1035 = vmatpush1.msra.mxu0 %v1025
    %1036 = vmatprep.subr.mxu0 0.0
    %1037 = vmatpush1.msra.mxu0 %v914
    %1038 = vmatprep.subr.mxu0 0.0
    %1039 = vmatpush1.msra.mxu0 0.0
    %1040 = vmatprep.subr.mxu0 0.0
    %1041 = vmatpush1.msra.mxu0 0.0
    %1042 = vmatprep.subr.mxu0 0.0
    %1043 = vmatpush1.msra.mxu0 0.0
    %1044 = vmatprep.subr.mxu0 0.0
    %1045 = vmatpush1.msra.mxu0 0.0
    %1046 = vmatprep.subr.mxu0 0.0
    %1047 = vmatpush1.msra.mxu0 0.0
    %1048 = vmatprep.subr.mxu0 0.0
    %1049 = vmatpush1.msra.mxu0 0.0
    %1050 = vmatprep.subr.mxu0 0.0
    %1051 = vmatpush1.msra.mxu0 0.0
    %1052 = vmatprep.subr.mxu0 0.0
    %1053 = vmatpush1.msra.mxu0 0.0
    %1054 = vmatprep.subr.mxu0 0.0
    %1055 = vmatpush1.msra.mxu0 0.0
    %1056 = vmatprep.subr.mxu0 0.0
    %1057 = vmatpush1.msra.mxu0 0.0
    %1058 = vmatprep.subr.mxu0 0.0
    %1059 = vmatpush1.msra.mxu0 0.0
    %1060 = vmatprep.subr.mxu0 0.0
    %1061 = vmatpush1.msra.mxu0 0.0
    %1062 = vmatprep.subr.mxu0 0.0
    %1063 = vmatpush1.msra.mxu0 0.0
    %1064 = vmatprep.subr.mxu0 0.0
    %1065 = vmatpush1.msra.mxu0 0.0
    %1066 = vmatprep.subr.mxu0 0.0
    %1067 = vmatpush1.msra.mxu0 0.0
    %1068 = vmatprep.subr.mxu0 0.0
    %1069 = vmatpush1.msra.mxu0 0.0
    %1070 = vmatprep.subr.mxu0 0.0
    %1071 = vmatpush1.msra.mxu0 0.0
    %1072 = vmatprep.subr.mxu0 0.0
    %1073 = vmatpush1.msra.mxu0 0.0
    %1074 = vmatprep.subr.mxu0 0.0
    %1075 = vmatpush1.msra.mxu0 0.0
    %1076 = vmatprep.subr.mxu0 0.0
    %1077 = vmatpush1.msra.mxu0 0.0
    %1078 = vmatprep.subr.mxu0 0.0
    %1079 = vmatpush1.msra.mxu0 0.0
    %1080 = vmatprep.subr.mxu0 0.0
    %1081 = vmatpush1.msra.mxu0 0.0
    %1082 = vmatprep.subr.mxu0 0.0
    %1083 = vmatpush1.msra.mxu0 0.0
    %1084 = vmatprep.subr.mxu0 0.0
    %1085 = vmatpush1.msra.mxu0 0.0
    %1086 = vmatprep.subr.mxu0 0.0
    %1087 = vmatpush1.msra.mxu0 0.0
    %1088 = vmatprep.subr.mxu0 0.0
    %1089 = vmatpush1.msra.mxu0 0.0
    %1090 = vmatprep.mubr.f32.mxu0 0.0
    %1091 = vmatmul.mubr.f32.gmra.mrb[0].mxu0 %v109
    %v1092 = vpop.f32.mrb[0].mxu0
    %v1093 = vadd.f32 0.0, %v1092
    %v1094 = vpop.f32.mrb[0].mxu0
    %1095 = vmatprep.mubr.f32.mxu0 0.0
    %1096 = vmatmul.mubr.f32.gmra.mrb[0].mxu0 %v112
    %v1097 = vpop.f32.mrb[0].mxu0
    %v1098 = vadd.f32 0.0, %v1097
    %v1099 = vpop.f32.mrb[0].mxu0
    %1100 = vmatprep.mubr.f32.mxu0 0.0
    %1101 = vmatmul.mubr.f32.gmra.mrb[0].mxu0 %v115
    %v1102 = vpop.f32.mrb[0].mxu0
    %v1103 = vadd.f32 0.0, %v1102
    %v1104 = vpop.f32.mrb[0].mxu0
    %1105 = vmatprep.mubr.f32.mxu0 0.0
    %1106 = vmatmul.mubr.f32.gmra.mrb[0].mxu0 %v118
    %v1107 = vpop.f32.mrb[0].mxu0
    %v1108 = vadd.f32 0.0, %v1107
    %v1109 = vpop.f32.mrb[0].mxu0
    %1110 = vdwg.mxu0
    %v1111 = vmul.f32 %v1093, 0.5
    %v1112 = vtanh.pop %v1111
    %v1113 = vmul.f32 %v1112, 0.5
    %v1114 = vadd.f32 %v1113, 0.5
    %v1115 = vmul.f32 %v1098, 0.5
    %v1116 = vtanh.pop %v1115
    %v1117 = vmul.f32 %v1116, 0.5
    %v1118 = vadd.f32 %v1117, 0.5
    %v1119 = vmul.f32 %v1103, 0.5
    %v1120 = vtanh.pop %v1119
    %v1121 = vmul.f32 %v1120, 0.5
    %v1122 = vadd.f32 %v1121, 0.5
    %v1123 = vtanh.pop %v1108
    %v1124 = vmul.f32 %v1118, %v901
    %v1125 = vmul.f32 %v1114, %v1123
    %v1126 = vadd.f32 %v1124, %v1125
    %v1127 = vtanh.pop %v1126
    %v1128 = vmul.f32 %v1122, %v1127
    %1129 = vrot.lane.b32.xlu0 %v1128, 1
    %v1130 = vpop.permute.xlu0 %1129
    %1131 = vrot.lane.b32.xlu0 %v1018, 1
    %v1132 = vpop.permute.xlu0 %1131
    %v1133 = vmul.f32 %v1130, %v91
    %v1134 = vmul.f32 %v1132, %v91
    %1135 = vrot.lane.b32.xlu0 %v1128, 127
    %v1136 = vpop.permute.xlu0 %1135
    %1137 = vrot.lane.b32.xlu0 %v1018, 127
    %v1138 = vpop.permute.xlu0 %1137
    %v1139 = vmul.f32 %v1136, %v103
    %v1140 = vmul.f32 %v1138, %v103
    %1141 = vmatprep.subr.mxu0 0.0
    %1142 = vmatpush1.msra.mxu0 %v1133
    %1143 = vmatprep.subr.mxu0 0.0
    %1144 = vmatpush1.msra.mxu0 %v1134
    %1145 = vmatprep.subr.mxu0 0.0
    %1146 = vmatpush1.msra.mxu0 %v1128
    %1147 = vmatprep.subr.mxu0 0.0
    %1148 = vmatpush1.msra.mxu0 %v1018
    %1149 = vmatprep.subr.mxu0 0.0
    %1150 = vmatpush1.msra.mxu0 %v1139
    %1151 = vmatprep.subr.mxu0 0.0
    %1152 = vmatpush1.msra.mxu0 %v1140
    %1153 = vmatprep.subr.mxu0 0.0
    %1154 = vmatpush1.msra.mxu0 0.0
    %1155 = vmatprep.subr.mxu0 0.0
    %1156 = vmatpush1.msra.mxu0 0.0
    %1157 = vmatprep.subr.mxu0 0.0
    %1158 = vmatpush1.msra.mxu0 0.0
    %1159 = vmatprep.subr.mxu0 0.0
    %1160 = vmatpush1.msra.mxu0 0.0
    %1161 = vmatprep.subr.mxu0 0.0
    %1162 = vmatpush1.msra.mxu0 0.0
    %1163 = vmatprep.subr.mxu0 0.0
    %1164 = vmatpush1.msra.mxu0 0.0
    %1165 = vmatprep.subr.mxu0 0.0
    %1166 = vmatpush1.msra.mxu0 0.0
    %1167 = vmatprep.subr.mxu0 0.0
    %1168 = vmatpush1.msra.mxu0 0.0
    %1169 = vmatprep.subr.mxu0 0.0
    %1170 = vmatpush1.msra.mxu0 0.0
    %1171 = vmatprep.subr.mxu0 0.0
    %1172 = vmatpush1.msra.mxu0 0.0
    %1173 = vmatprep.subr.mxu0 0.0
    %1174 = vmatpush1.msra.mxu0 0.0
    %1175 = vmatprep.subr.mxu0 0.0
    %1176 = vmatpush1.msra.mxu0 0.0
    %1177 = vmatprep.subr.mxu0 0.0
    %1178 = vmatpush1.msra.mxu0 0.0
    %1179 = vmatprep.subr.mxu0 0.0
    %1180 = vmatpush1.msra.mxu0 0.0
    %1181 = vmatprep.subr.mxu0 0.0
    %1182 = vmatpush1.msra.mxu0 0.0
    %1183 = vmatprep.subr.mxu0 0.0
    %1184 = vmatpush1.msra.mxu0 0.0
    %1185 = vmatprep.subr.mxu0 0.0
    %1186 = vmatpush1.msra.mxu0 0.0
    %1187 = vmatprep.subr.mxu0 0.0
    %1188 = vmatpush1.msra.mxu0 0.0
    %1189 = vmatprep.subr.mxu0 0.0
    %1190 = vmatpush1.msra.mxu0 0.0
    %1191 = vmatprep.subr.mxu0 0.0
    %1192 = vmatpush1.msra.mxu0 0.0
    %1193 = vmatprep.subr.mxu0 0.0
    %1194 = vmatpush1.msra.mxu0 0.0
    %1195 = vmatprep.subr.mxu0 0.0
    %1196 = vmatpush1.msra.mxu0 0.0
    %1197 = vmatprep.subr.mxu0 0.0
    %1198 = vmatpush1.msra.mxu0 0.0
    %1199 = vmatprep.subr.mxu0 0.0
    %1200 = vmatpush1.msra.mxu0 0.0
    %1201 = vmatprep.subr.mxu0 0.0
    %1202 = vmatpush1.msra.mxu0 0.0
    %1203 = vmatprep.subr.mxu0 0.0
    %1204 = vmatpush1.msra.mxu0 0.0
    %1205 = vmatprep.mubr.f32.mxu0 0.0
    %1206 = vmatmul.mubr.f32.gmra.mrb[0].mxu0 %v230
    %v1207 = vpop.f32.mrb[0].mxu0
    %v1208 = vadd.f32 0.0, %v1207
    %v1209 = vpop.f32.mrb[0].mxu0
    %1210 = vmatprep.mubr.f32.mxu0 0.0
    %1211 = vmatmul.mubr.f32.gmra.mrb[0].mxu0 %v233
    %v1212 = vpop.f32.mrb[0].mxu0
    %v1213 = vadd.f32 0.0, %v1212
    %v1214 = vpop.f32.mrb[0].mxu0
    %1215 = vmatprep.mubr.f32.mxu0 0.0
    %1216 = vmatmul.mubr.f32.gmra.mrb[0].mxu0 %v236
    %v1217 = vpop.f32.mrb[0].mxu0
    %v1218 = vadd.f32 0.0, %v1217
    %v1219 = vpop.f32.mrb[0].mxu0
    %1220 = vmatprep.mubr.f32.mxu0 0.0
    %1221 = vmatmul.mubr.f32.gmra.mrb[0].mxu0 %v239
    %v1222 = vpop.f32.mrb[0].mxu0
    %v1223 = vadd.f32 0.0, %v1222
    %v1224 = vpop.f32.mrb[0].mxu0
    %1225 = vdwg.mxu0
    %v1226 = vmul.f32 %v1208, 0.5
    %v1227 = vtanh.pop %v1226
    %v1228 = vmul.f32 %v1227, 0.5
    %v1229 = vadd.f32 %v1228, 0.5
    %v1230 = vmul.f32 %v1213, 0.5
    %v1231 = vtanh.pop %v1230
    %v1232 = vmul.f32 %v1231, 0.5
    %v1233 = vadd.f32 %v1232, 0.5
    %v1234 = vmul.f32 %v1218, 0.5
    %v1235 = vtanh.pop %v1234
    %v1236 = vmul.f32 %v1235, 0.5
    %v1237 = vadd.f32 %v1236, 0.5
    %v1238 = vtanh.pop %v1223
    %v1239 = vmul.f32 %v1233, %v1016
    %v1240 = vmul.f32 %v1229, %v1238
    %v1241 = vadd.f32 %v1239, %v1240
    %v1242 = vtanh.pop %v1241
    %v1243 = vmul.f32 %v1237, %v1242
    %v1244 = vld [vmem:[#allocation2 + $0x28] sm:$0xff]
    %1245 = vrot.lane.b32.xlu0 %v1244, 1
    %v1246 = vpop.permute.xlu0 %1245
    %v1247 = vmul.f32 %v1246, %v91
    %1248 = vrot.lane.b32.xlu0 %v1244, 127
    %v1249 = vpop.permute.xlu0 %1248
    %v1250 = vmul.f32 %v1249, %v103
    %1251 = vmatprep.subr.mxu0 0.0
    %1252 = vmatpush1.msra.mxu0 %v1247
    %1253 = vmatprep.subr.mxu0 0.0
    %1254 = vmatpush1.msra.mxu0 %v1133
    %1255 = vmatprep.subr.mxu0 0.0
    %1256 = vmatpush1.msra.mxu0 %v1244
    %1257 = vmatprep.subr.mxu0 0.0
    %1258 = vmatpush1.msra.mxu0 %v1128
    %1259 = vmatprep.subr.mxu0 0.0
    %1260 = vmatpush1.msra.mxu0 %v1250
    %1261 = vmatprep.subr.mxu0 0.0
    %1262 = vmatpush1.msra.mxu0 %v1139
    %1263 = vmatprep.subr.mxu0 0.0
    %1264 = vmatpush1.msra.mxu0 0.0
    %1265 = vmatprep.subr.mxu0 0.0
    %1266 = vmatpush1.msra.mxu0 0.0
    %1267 = vmatprep.subr.mxu0 0.0
    %1268 = vmatpush1.msra.mxu0 0.0
    %1269 = vmatprep.subr.mxu0 0.0
    %1270 = vmatpush1.msra.mxu0 0.0
    %1271 = vmatprep.subr.mxu0 0.0
    %1272 = vmatpush1.msra.mxu0 0.0
    %1273 = vmatprep.subr.mxu0 0.0
    %1274 = vmatpush1.msra.mxu0 0.0
    %1275 = vmatprep.subr.mxu0 0.0
    %1276 = vmatpush1.msra.mxu0 0.0
    %1277 = vmatprep.subr.mxu0 0.0
    %1278 = vmatpush1.msra.mxu0 0.0
    %1279 = vmatprep.subr.mxu0 0.0
    %1280 = vmatpush1.msra.mxu0 0.0
    %1281 = vmatprep.subr.mxu0 0.0
    %1282 = vmatpush1.msra.mxu0 0.0
    %1283 = vmatprep.subr.mxu0 0.0
    %1284 = vmatpush1.msra.mxu0 0.0
    %1285 = vmatprep.subr.mxu0 0.0
    %1286 = vmatpush1.msra.mxu0 0.0
    %1287 = vmatprep.subr.mxu0 0.0
    %1288 = vmatpush1.msra.mxu0 0.0
    %1289 = vmatprep.subr.mxu0 0.0
    %1290 = vmatpush1.msra.mxu0 0.0
    %1291 = vmatprep.subr.mxu0 0.0
    %1292 = vmatpush1.msra.mxu0 0.0
    %1293 = vmatprep.subr.mxu0 0.0
    %1294 = vmatpush1.msra.mxu0 0.0
    %1295 = vmatprep.subr.mxu0 0.0
    %1296 = vmatpush1.msra.mxu0 0.0
    %1297 = vmatprep.subr.mxu0 0.0
    %1298 = vmatpush1.msra.mxu0 0.0
    %1299 = vmatprep.subr.mxu0 0.0
    %1300 = vmatpush1.msra.mxu0 0.0
    %1301 = vmatprep.subr.mxu0 0.0
    %1302 = vmatpush1.msra.mxu0 0.0
    %1303 = vmatprep.subr.mxu0 0.0
    %1304 = vmatpush1.msra.mxu0 0.0
    %1305 = vmatprep.subr.mxu0 0.0
    %1306 = vmatpush1.msra.mxu0 0.0
    %1307 = vmatprep.subr.mxu0 0.0
    %1308 = vmatpush1.msra.mxu0 0.0
    %1309 = vmatprep.subr.mxu0 0.0
    %1310 = vmatpush1.msra.mxu0 0.0
    %1311 = vmatprep.subr.mxu0 0.0
    %1312 = vmatpush1.msra.mxu0 0.0
    %1313 = vmatprep.subr.mxu0 0.0
    %1314 = vmatpush1.msra.mxu0 0.0
    %1315 = vmatprep.mubr.f32.mxu0 0.0
    %1316 = vmatmul.mubr.f32.gmra.mrb[0].mxu0 %v109
    %v1317 = vpop.f32.mrb[0].mxu0
    %v1318 = vadd.f32 0.0, %v1317
    %v1319 = vpop.f32.mrb[0].mxu0
    %1320 = vmatprep.mubr.f32.mxu0 0.0
    %1321 = vmatmul.mubr.f32.gmra.mrb[0].mxu0 %v112
    %v1322 = vpop.f32.mrb[0].mxu0
    %v1323 = vadd.f32 0.0, %v1322
    %v1324 = vpop.f32.mrb[0].mxu0
    %1325 = vmatprep.mubr.f32.mxu0 0.0
    %1326 = vmatmul.mubr.f32.gmra.mrb[0].mxu0 %v115
    %v1327 = vpop.f32.mrb[0].mxu0
    %v1328 = vadd.f32 0.0, %v1327
    %v1329 = vpop.f32.mrb[0].mxu0
    %1330 = vmatprep.mubr.f32.mxu0 0.0
    %1331 = vmatmul.mubr.f32.gmra.mrb[0].mxu0 %v118
    %v1332 = vpop.f32.mrb[0].mxu0
    %v1333 = vadd.f32 0.0, %v1332
    %v1334 = vpop.f32.mrb[0].mxu0
    %1335 = vdwg.mxu0
    %v1336 = vmul.f32 %v1318, 0.5
    %v1337 = vtanh.pop %v1336
    %v1338 = vmul.f32 %v1337, 0.5
    %v1339 = vadd.f32 %v1338, 0.5
    %v1340 = vmul.f32 %v1323, 0.5
    %v1341 = vtanh.pop %v1340
    %v1342 = vmul.f32 %v1341, 0.5
    %v1343 = vadd.f32 %v1342, 0.5
    %v1344 = vmul.f32 %v1328, 0.5
    %v1345 = vtanh.pop %v1344
    %v1346 = vmul.f32 %v1345, 0.5
    %v1347 = vadd.f32 %v1346, 0.5
    %v1348 = vtanh.pop %v1333
    %v1349 = vmul.f32 %v1343, %v1126
    %v1350 = vmul.f32 %v1339, %v1348
    %v1351 = vadd.f32 %v1349, %v1350
    %v1352 = vtanh.pop %v1351
    %v1353 = vmul.f32 %v1347, %v1352
    %1354 = vrot.lane.b32.xlu0 %v1353, 1
    %v1355 = vpop.permute.xlu0 %1354
    %1356 = vrot.lane.b32.xlu0 %v1243, 1
    %v1357 = vpop.permute.xlu0 %1356
    %v1358 = vmul.f32 %v1355, %v91
    %v1359 = vmul.f32 %v1357, %v91
    %1360 = vrot.lane.b32.xlu0 %v1353, 127
    %v1361 = vpop.permute.xlu0 %1360
    %1362 = vrot.lane.b32.xlu0 %v1243, 127
    %v1363 = vpop.permute.xlu0 %1362
    %v1364 = vmul.f32 %v1361, %v103
    %v1365 = vmul.f32 %v1363, %v103
    %1366 = vmatprep.subr.mxu0 0.0
    %1367 = vmatpush1.msra.mxu0 %v1358
    %1368 = vmatprep.subr.mxu0 0.0
    %1369 = vmatpush1.msra.mxu0 %v1359
    %1370 = vmatprep.subr.mxu0 0.0
    %1371 = vmatpush1.msra.mxu0 %v1353
    %1372 = vmatprep.subr.mxu0 0.0
    %1373 = vmatpush1.msra.mxu0 %v1243
    %1374 = vmatprep.subr.mxu0 0.0
    %1375 = vmatpush1.msra.mxu0 %v1364
    %1376 = vmatprep.subr.mxu0 0.0
    %1377 = vmatpush1.msra.mxu0 %v1365
    %1378 = vmatprep.subr.mxu0 0.0
    %1379 = vmatpush1.msra.mxu0 0.0
    %1380 = vmatprep.subr.mxu0 0.0
    %1381 = vmatpush1.msra.mxu0 0.0
    %1382 = vmatprep.subr.mxu0 0.0
    %1383 = vmatpush1.msra.mxu0 0.0
    %1384 = vmatprep.subr.mxu0 0.0
    %1385 = vmatpush1.msra.mxu0 0.0
    %1386 = vmatprep.subr.mxu0 0.0
    %1387 = vmatpush1.msra.mxu0 0.0
    %1388 = vmatprep.subr.mxu0 0.0
    %1389 = vmatpush1.msra.mxu0 0.0
    %1390 = vmatprep.subr.mxu0 0.0
    %1391 = vmatpush1.msra.mxu0 0.0
    %1392 = vmatprep.subr.mxu0 0.0
    %1393 = vmatpush1.msra.mxu0 0.0
    %1394 = vmatprep.subr.mxu0 0.0
    %1395 = vmatpush1.msra.mxu0 0.0
    %1396 = vmatprep.subr.mxu0 0.0
    %1397 = vmatpush1.msra.mxu0 0.0
    %1398 = vmatprep.subr.mxu0 0.0
    %1399 = vmatpush1.msra.mxu0 0.0
    %1400 = vmatprep.subr.mxu0 0.0
    %1401 = vmatpush1.msra.mxu0 0.0
    %1402 = vmatprep.subr.mxu0 0.0
    %1403 = vmatpush1.msra.mxu0 0.0
    %1404 = vmatprep.subr.mxu0 0.0
    %1405 = vmatpush1.msra.mxu0 0.0
    %1406 = vmatprep.subr.mxu0 0.0
    %1407 = vmatpush1.msra.mxu0 0.0
    %1408 = vmatprep.subr.mxu0 0.0
    %1409 = vmatpush1.msra.mxu0 0.0
    %1410 = vmatprep.subr.mxu0 0.0
    %1411 = vmatpush1.msra.mxu0 0.0
    %1412 = vmatprep.subr.mxu0 0.0
    %1413 = vmatpush1.msra.mxu0 0.0
    %1414 = vmatprep.subr.mxu0 0.0
    %1415 = vmatpush1.msra.mxu0 0.0
    %1416 = vmatprep.subr.mxu0 0.0
    %1417 = vmatpush1.msra.mxu0 0.0
    %1418 = vmatprep.subr.mxu0 0.0
    %1419 = vmatpush1.msra.mxu0 0.0
    %1420 = vmatprep.subr.mxu0 0.0
    %1421 = vmatpush1.msra.mxu0 0.0
    %1422 = vmatprep.subr.mxu0 0.0
    %1423 = vmatpush1.msra.mxu0 0.0
    %1424 = vmatprep.subr.mxu0 0.0
    %1425 = vmatpush1.msra.mxu0 0.0
    %1426 = vmatprep.subr.mxu0 0.0
    %1427 = vmatpush1.msra.mxu0 0.0
    %1428 = vmatprep.subr.mxu0 0.0
    %1429 = vmatpush1.msra.mxu0 0.0
    %1430 = vmatprep.mubr.f32.mxu0 0.0
    %1431 = vmatmul.mubr.f32.gmra.mrb[0].mxu0 %v230
    %v1432 = vpop.f32.mrb[0].mxu0
    %v1433 = vadd.f32 0.0, %v1432
    %v1434 = vpop.f32.mrb[0].mxu0
    %1435 = vmatprep.mubr.f32.mxu0 0.0
    %1436 = vmatmul.mubr.f32.gmra.mrb[0].mxu0 %v233
    %v1437 = vpop.f32.mrb[0].mxu0
    %v1438 = vadd.f32 0.0, %v1437
    %v1439 = vpop.f32.mrb[0].mxu0
    %1440 = vmatprep.mubr.f32.mxu0 0.0
    %1441 = vmatmul.mubr.f32.gmra.mrb[0].mxu0 %v236
    %v1442 = vpop.f32.mrb[0].mxu0
    %v1443 = vadd.f32 0.0, %v1442
    %v1444 = vpop.f32.mrb[0].mxu0
    %1445 = vmatprep.mubr.f32.mxu0 0.0
    %1446 = vmatmul.mubr.f32.gmra.mrb[0].mxu0 %v239
    %v1447 = vpop.f32.mrb[0].mxu0
    %v1448 = vadd.f32 0.0, %v1447
    %v1449 = vpop.f32.mrb[0].mxu0
    %1450 = vdwg.mxu0
    %v1451 = vmul.f32 %v1433, 0.5
    %v1452 = vtanh.pop %v1451
    %v1453 = vmul.f32 %v1452, 0.5
    %v1454 = vadd.f32 %v1453, 0.5
    %v1455 = vmul.f32 %v1438, 0.5
    %v1456 = vtanh.pop %v1455
    %v1457 = vmul.f32 %v1456, 0.5
    %v1458 = vadd.f32 %v1457, 0.5
    %v1459 = vmul.f32 %v1443, 0.5
    %v1460 = vtanh.pop %v1459
    %v1461 = vmul.f32 %v1460, 0.5
    %v1462 = vadd.f32 %v1461, 0.5
    %v1463 = vtanh.pop %v1448
    %v1464 = vmul.f32 %v1458, %v1241
    %v1465 = vmul.f32 %v1454, %v1463
    %v1466 = vadd.f32 %v1464, %v1465
    %v1467 = vtanh.pop %v1466
    %v1468 = vmul.f32 %v1462, %v1467
    %v1469 = vld [vmem:[#allocation2 + $0x30] sm:$0xff]
    %1470 = vrot.lane.b32.xlu0 %v1469, 1
    %v1471 = vpop.permute.xlu0 %1470
    %v1472 = vmul.f32 %v1471, %v91
    %1473 = vrot.lane.b32.xlu0 %v1469, 127
    %v1474 = vpop.permute.xlu0 %1473
    %v1475 = vmul.f32 %v1474, %v103
    %1476 = vmatprep.subr.mxu0 0.0
    %1477 = vmatpush1.msra.mxu0 %v1472
    %1478 = vmatprep.subr.mxu0 0.0
    %1479 = vmatpush1.msra.mxu0 %v1358
    %1480 = vmatprep.subr.mxu0 0.0
    %1481 = vmatpush1.msra.mxu0 %v1469
    %1482 = vmatprep.subr.mxu0 0.0
    %1483 = vmatpush1.msra.mxu0 %v1353
    %1484 = vmatprep.subr.mxu0 0.0
    %1485 = vmatpush1.msra.mxu0 %v1475
    %1486 = vmatprep.subr.mxu0 0.0
    %1487 = vmatpush1.msra.mxu0 %v1364
    %1488 = vmatprep.subr.mxu0 0.0
    %1489 = vmatpush1.msra.mxu0 0.0
    %1490 = vmatprep.subr.mxu0 0.0
    %1491 = vmatpush1.msra.mxu0 0.0
    %1492 = vmatprep.subr.mxu0 0.0
    %1493 = vmatpush1.msra.mxu0 0.0
    %1494 = vmatprep.subr.mxu0 0.0
    %1495 = vmatpush1.msra.mxu0 0.0
    %1496 = vmatprep.subr.mxu0 0.0
    %1497 = vmatpush1.msra.mxu0 0.0
    %1498 = vmatprep.subr.mxu0 0.0
    %1499 = vmatpush1.msra.mxu0 0.0
    %1500 = vmatprep.subr.mxu0 0.0
    %1501 = vmatpush1.msra.mxu0 0.0
    %1502 = vmatprep.subr.mxu0 0.0
    %1503 = vmatpush1.msra.mxu0 0.0
    %1504 = vmatprep.subr.mxu0 0.0
    %1505 = vmatpush1.msra.mxu0 0.0
    %1506 = vmatprep.subr.mxu0 0.0
    %1507 = vmatpush1.msra.mxu0 0.0
    %1508 = vmatprep.subr.mxu0 0.0
    %1509 = vmatpush1.msra.mxu0 0.0
    %1510 = vmatprep.subr.mxu0 0.0
    %1511 = vmatpush1.msra.mxu0 0.0
    %1512 = vmatprep.subr.mxu0 0.0
    %1513 = vmatpush1.msra.mxu0 0.0
    %1514 = vmatprep.subr.mxu0 0.0
    %1515 = vmatpush1.msra.mxu0 0.0
    %1516 = vmatprep.subr.mxu0 0.0
    %1517 = vmatpush1.msra.mxu0 0.0
    %1518 = vmatprep.subr.mxu0 0.0
    %1519 = vmatpush1.msra.mxu0 0.0
    %1520 = vmatprep.subr.mxu0 0.0
    %1521 = vmatpush1.msra.mxu0 0.0
    %1522 = vmatprep.subr.mxu0 0.0
    %1523 = vmatpush1.msra.mxu0 0.0
    %1524 = vmatprep.subr.mxu0 0.0
    %1525 = vmatpush1.msra.mxu0 0.0
    %1526 = vmatprep.subr.mxu0 0.0
    %1527 = vmatpush1.msra.mxu0 0.0
    %1528 = vmatprep.subr.mxu0 0.0
    %1529 = vmatpush1.msra.mxu0 0.0
    %1530 = vmatprep.subr.mxu0 0.0
    %1531 = vmatpush1.msra.mxu0 0.0
    %1532 = vmatprep.subr.mxu0 0.0
    %1533 = vmatpush1.msra.mxu0 0.0
    %1534 = vmatprep.subr.mxu0 0.0
    %1535 = vmatpush1.msra.mxu0 0.0
    %1536 = vmatprep.subr.mxu0 0.0
    %1537 = vmatpush1.msra.mxu0 0.0
    %1538 = vmatprep.subr.mxu0 0.0
    %1539 = vmatpush1.msra.mxu0 0.0
    %1540 = vmatprep.mubr.f32.mxu0 0.0
    %1541 = vmatmul.mubr.f32.gmra.mrb[0].mxu0 %v109
    %v1542 = vpop.f32.mrb[0].mxu0
    %v1543 = vadd.f32 0.0, %v1542
    %v1544 = vpop.f32.mrb[0].mxu0
    %1545 = vmatprep.mubr.f32.mxu0 0.0
    %1546 = vmatmul.mubr.f32.gmra.mrb[0].mxu0 %v112
    %v1547 = vpop.f32.mrb[0].mxu0
    %v1548 = vadd.f32 0.0, %v1547
    %v1549 = vpop.f32.mrb[0].mxu0
    %1550 = vmatprep.mubr.f32.mxu0 0.0
    %1551 = vmatmul.mubr.f32.gmra.mrb[0].mxu0 %v115
    %v1552 = vpop.f32.mrb[0].mxu0
    %v1553 = vadd.f32 0.0, %v1552
    %v1554 = vpop.f32.mrb[0].mxu0
    %1555 = vmatprep.mubr.f32.mxu0 0.0
    %1556 = vmatmul.mubr.f32.gmra.mrb[0].mxu0 %v118
    %v1557 = vpop.f32.mrb[0].mxu0
    %v1558 = vadd.f32 0.0, %v1557
    %v1559 = vpop.f32.mrb[0].mxu0
    %1560 = vdwg.mxu0
    %v1561 = vmul.f32 %v1543, 0.5
    %v1562 = vtanh.pop %v1561
    %v1563 = vmul.f32 %v1562, 0.5
    %v1564 = vadd.f32 %v1563, 0.5
    %v1565 = vmul.f32 %v1548, 0.5
    %v1566 = vtanh.pop %v1565
    %v1567 = vmul.f32 %v1566, 0.5
    %v1568 = vadd.f32 %v1567, 0.5
    %v1569 = vmul.f32 %v1553, 0.5
    %v1570 = vtanh.pop %v1569
    %v1571 = vmul.f32 %v1570, 0.5
    %v1572 = vadd.f32 %v1571, 0.5
    %v1573 = vtanh.pop %v1558
    %v1574 = vmul.f32 %v1568, %v1351
    %v1575 = vmul.f32 %v1564, %v1573
    %v1576 = vadd.f32 %v1574, %v1575
    %v1577 = vtanh.pop %v1576
    %v1578 = vmul.f32 %v1572, %v1577
    %1579 = vrot.lane.b32.xlu0 %v1578, 1
    %v1580 = vpop.permute.xlu0 %1579
    %1581 = vrot.lane.b32.xlu0 %v1468, 1
    %v1582 = vpop.permute.xlu0 %1581
    %v1583 = vmul.f32 %v1580, %v91
    %v1584 = vmul.f32 %v1582, %v91
    %1585 = vrot.lane.b32.xlu0 %v1578, 127
    %v1586 = vpop.permute.xlu0 %1585
    %1587 = vrot.lane.b32.xlu0 %v1468, 127
    %v1588 = vpop.permute.xlu0 %1587
    %v1589 = vmul.f32 %v1586, %v103
    %v1590 = vmul.f32 %v1588, %v103
    %1591 = vmatprep.subr.mxu0 0.0
    %1592 = vmatpush1.msra.mxu0 %v1583
    %1593 = vmatprep.subr.mxu0 0.0
    %1594 = vmatpush1.msra.mxu0 %v1584
    %1595 = vmatprep.subr.mxu0 0.0
    %1596 = vmatpush1.msra.mxu0 %v1578
    %1597 = vmatprep.subr.mxu0 0.0
    %1598 = vmatpush1.msra.mxu0 %v1468
    %1599 = vmatprep.subr.mxu0 0.0
    %1600 = vmatpush1.msra.mxu0 %v1589
    %1601 = vmatprep.subr.mxu0 0.0
    %1602 = vmatpush1.msra.mxu0 %v1590
    %1603 = vmatprep.subr.mxu0 0.0
    %1604 = vmatpush1.msra.mxu0 0.0
    %1605 = vmatprep.subr.mxu0 0.0
    %1606 = vmatpush1.msra.mxu0 0.0
    %1607 = vmatprep.subr.mxu0 0.0
    %1608 = vmatpush1.msra.mxu0 0.0
    %1609 = vmatprep.subr.mxu0 0.0
    %1610 = vmatpush1.msra.mxu0 0.0
    %1611 = vmatprep.subr.mxu0 0.0
    %1612 = vmatpush1.msra.mxu0 0.0
    %1613 = vmatprep.subr.mxu0 0.0
    %1614 = vmatpush1.msra.mxu0 0.0
    %1615 = vmatprep.subr.mxu0 0.0
    %1616 = vmatpush1.msra.mxu0 0.0
    %1617 = vmatprep.subr.mxu0 0.0
    %1618 = vmatpush1.msra.mxu0 0.0
    %1619 = vmatprep.subr.mxu0 0.0
    %1620 = vmatpush1.msra.mxu0 0.0
    %1621 = vmatprep.subr.mxu0 0.0
    %1622 = vmatpush1.msra.mxu0 0.0
    %1623 = vmatprep.subr.mxu0 0.0
    %1624 = vmatpush1.msra.mxu0 0.0
    %1625 = vmatprep.subr.mxu0 0.0
    %1626 = vmatpush1.msra.mxu0 0.0
    %1627 = vmatprep.subr.mxu0 0.0
    %1628 = vmatpush1.msra.mxu0 0.0
    %1629 = vmatprep.subr.mxu0 0.0
    %1630 = vmatpush1.msra.mxu0 0.0
    %1631 = vmatprep.subr.mxu0 0.0
    %1632 = vmatpush1.msra.mxu0 0.0
    %1633 = vmatprep.subr.mxu0 0.0
    %1634 = vmatpush1.msra.mxu0 0.0
    %1635 = vmatprep.subr.mxu0 0.0
    %1636 = vmatpush1.msra.mxu0 0.0
    %1637 = vmatprep.subr.mxu0 0.0
    %1638 = vmatpush1.msra.mxu0 0.0
    %1639 = vmatprep.subr.mxu0 0.0
    %1640 = vmatpush1.msra.mxu0 0.0
    %1641 = vmatprep.subr.mxu0 0.0
    %1642 = vmatpush1.msra.mxu0 0.0
    %1643 = vmatprep.subr.mxu0 0.0
    %1644 = vmatpush1.msra.mxu0 0.0
    %1645 = vmatprep.subr.mxu0 0.0
    %1646 = vmatpush1.msra.mxu0 0.0
    %1647 = vmatprep.subr.mxu0 0.0
    %1648 = vmatpush1.msra.mxu0 0.0
    %1649 = vmatprep.subr.mxu0 0.0
    %1650 = vmatpush1.msra.mxu0 0.0
    %1651 = vmatprep.subr.mxu0 0.0
    %1652 = vmatpush1.msra.mxu0 0.0
    %1653 = vmatprep.subr.mxu0 0.0
    %1654 = vmatpush1.msra.mxu0 0.0
    %1655 = vmatprep.mubr.f32.mxu0 0.0
    %1656 = vmatmul.mubr.f32.gmra.mrb[0].mxu0 %v230
    %v1657 = vpop.f32.mrb[0].mxu0
    %v1658 = vadd.f32 0.0, %v1657
    %v1659 = vpop.f32.mrb[0].mxu0
    %1660 = vmatprep.mubr.f32.mxu0 0.0
    %1661 = vmatmul.mubr.f32.gmra.mrb[0].mxu0 %v233
    %v1662 = vpop.f32.mrb[0].mxu0
    %v1663 = vadd.f32 0.0, %v1662
    %v1664 = vpop.f32.mrb[0].mxu0
    %1665 = vmatprep.mubr.f32.mxu0 0.0
    %1666 = vmatmul.mubr.f32.gmra.mrb[0].mxu0 %v236
    %v1667 = vpop.f32.mrb[0].mxu0
    %v1668 = vadd.f32 0.0, %v1667
    %v1669 = vpop.f32.mrb[0].mxu0
    %1670 = vmatprep.mubr.f32.mxu0 0.0
    %1671 = vmatmul.mubr.f32.gmra.mrb[0].mxu0 %v239
    %v1672 = vpop.f32.mrb[0].mxu0
    %v1673 = vadd.f32 0.0, %v1672
    %v1674 = vpop.f32.mrb[0].mxu0
    %1675 = vdwg.mxu0
    %v1676 = vmul.f32 %v1658, 0.5
    %v1677 = vtanh.pop %v1676
    %v1678 = vmul.f32 %v1677, 0.5
    %v1679 = vadd.f32 %v1678, 0.5
    %v1680 = vmul.f32 %v1663, 0.5
    %v1681 = vtanh.pop %v1680
    %v1682 = vmul.f32 %v1681, 0.5
    %v1683 = vadd.f32 %v1682, 0.5
    %v1684 = vmul.f32 %v1668, 0.5
    %v1685 = vtanh.pop %v1684
    %v1686 = vmul.f32 %v1685, 0.5
    %v1687 = vadd.f32 %v1686, 0.5
    %v1688 = vtanh.pop %v1673
    %v1689 = vmul.f32 %v1683, %v1466
    %v1690 = vmul.f32 %v1679, %v1688
    %v1691 = vadd.f32 %v1689, %v1690
    %v1692 = vtanh.pop %v1691
    %v1693 = vmul.f32 %v1687, %v1692
    %v1694 = vld [vmem:[#allocation2 + $0x38] sm:$0xff]
    %1695 = vrot.lane.b32.xlu0 %v1694, 1
    %v1696 = vpop.permute.xlu0 %1695
    %v1697 = vmul.f32 %v1696, %v91
    %1698 = vrot.lane.b32.xlu0 %v1694, 127
    %v1699 = vpop.permute.xlu0 %1698
    %v1700 = vmul.f32 %v1699, %v103
    %1701 = vmatprep.subr.mxu0 0.0
    %1702 = vmatpush1.msra.mxu0 %v1697
    %1703 = vmatprep.subr.mxu0 0.0
    %1704 = vmatpush1.msra.mxu0 %v1583
    %1705 = vmatprep.subr.mxu0 0.0
    %1706 = vmatpush1.msra.mxu0 %v1694
    %1707 = vmatprep.subr.mxu0 0.0
    %1708 = vmatpush1.msra.mxu0 %v1578
    %1709 = vmatprep.subr.mxu0 0.0
    %1710 = vmatpush1.msra.mxu0 %v1700
    %1711 = vmatprep.subr.mxu0 0.0
    %1712 = vmatpush1.msra.mxu0 %v1589
    %1713 = vmatprep.subr.mxu0 0.0
    %1714 = vmatpush1.msra.mxu0 0.0
    %1715 = vmatprep.subr.mxu0 0.0
    %1716 = vmatpush1.msra.mxu0 0.0
    %1717 = vmatprep.subr.mxu0 0.0
    %1718 = vmatpush1.msra.mxu0 0.0
    %1719 = vmatprep.subr.mxu0 0.0
    %1720 = vmatpush1.msra.mxu0 0.0
    %1721 = vmatprep.subr.mxu0 0.0
    %1722 = vmatpush1.msra.mxu0 0.0
    %1723 = vmatprep.subr.mxu0 0.0
    %1724 = vmatpush1.msra.mxu0 0.0
    %1725 = vmatprep.subr.mxu0 0.0
    %1726 = vmatpush1.msra.mxu0 0.0
    %1727 = vmatprep.subr.mxu0 0.0
    %1728 = vmatpush1.msra.mxu0 0.0
    %1729 = vmatprep.subr.mxu0 0.0
    %1730 = vmatpush1.msra.mxu0 0.0
    %1731 = vmatprep.subr.mxu0 0.0
    %1732 = vmatpush1.msra.mxu0 0.0
    %1733 = vmatprep.subr.mxu0 0.0
    %1734 = vmatpush1.msra.mxu0 0.0
    %1735 = vmatprep.subr.mxu0 0.0
    %1736 = vmatpush1.msra.mxu0 0.0
    %1737 = vmatprep.subr.mxu0 0.0
    %1738 = vmatpush1.msra.mxu0 0.0
    %1739 = vmatprep.subr.mxu0 0.0
    %1740 = vmatpush1.msra.mxu0 0.0
    %1741 = vmatprep.subr.mxu0 0.0
    %1742 = vmatpush1.msra.mxu0 0.0
    %1743 = vmatprep.subr.mxu0 0.0
    %1744 = vmatpush1.msra.mxu0 0.0
    %1745 = vmatprep.subr.mxu0 0.0
    %1746 = vmatpush1.msra.mxu0 0.0
    %1747 = vmatprep.subr.mxu0 0.0
    %1748 = vmatpush1.msra.mxu0 0.0
    %1749 = vmatprep.subr.mxu0 0.0
    %1750 = vmatpush1.msra.mxu0 0.0
    %1751 = vmatprep.subr.mxu0 0.0
    %1752 = vmatpush1.msra.mxu0 0.0
    %1753 = vmatprep.subr.mxu0 0.0
    %1754 = vmatpush1.msra.mxu0 0.0
    %1755 = vmatprep.subr.mxu0 0.0
    %1756 = vmatpush1.msra.mxu0 0.0
    %1757 = vmatprep.subr.mxu0 0.0
    %1758 = vmatpush1.msra.mxu0 0.0
    %1759 = vmatprep.subr.mxu0 0.0
    %1760 = vmatpush1.msra.mxu0 0.0
    %1761 = vmatprep.subr.mxu0 0.0
    %1762 = vmatpush1.msra.mxu0 0.0
    %1763 = vmatprep.subr.mxu0 0.0
    %1764 = vmatpush1.msra.mxu0 0.0
    %1765 = vmatprep.mubr.f32.mxu0 0.0
    %1766 = vmatmul.mubr.f32.gmra.mrb[0].mxu0 %v109
    %v1767 = vpop.f32.mrb[0].mxu0
    %v1768 = vadd.f32 0.0, %v1767
    %v1769 = vpop.f32.mrb[0].mxu0
    %1770 = vmatprep.mubr.f32.mxu0 0.0
    %1771 = vmatmul.mubr.f32.gmra.mrb[0].mxu0 %v112
    %v1772 = vpop.f32.mrb[0].mxu0
    %v1773 = vadd.f32 0.0, %v1772
    %v1774 = vpop.f32.mrb[0].mxu0
    %1775 = vmatprep.mubr.f32.mxu0 0.0
    %1776 = vmatmul.mubr.f32.gmra.mrb[0].mxu0 %v115
    %v1777 = vpop.f32.mrb[0].mxu0
    %v1778 = vadd.f32 0.0, %v1777
    %v1779 = vpop.f32.mrb[0].mxu0
    %1780 = vmatprep.mubr.f32.mxu0 0.0
    %1781 = vmatmul.mubr.f32.gmra.mrb[0].mxu0 %v118
    %v1782 = vpop.f32.mrb[0].mxu0
    %v1783 = vadd.f32 0.0, %v1782
    %v1784 = vpop.f32.mrb[0].mxu0
    %1785 = vdwg.mxu0
    %v1786 = vmul.f32 %v1768, 0.5
    %v1787 = vtanh.pop %v1786
    %v1788 = vmul.f32 %v1787, 0.5
    %v1789 = vadd.f32 %v1788, 0.5
    %v1790 = vmul.f32 %v1773, 0.5
    %v1791 = vtanh.pop %v1790
    %v1792 = vmul.f32 %v1791, 0.5
    %v1793 = vadd.f32 %v1792, 0.5
    %v1794 = vmul.f32 %v1778, 0.5
    %v1795 = vtanh.pop %v1794
    %v1796 = vmul.f32 %v1795, 0.5
    %v1797 = vadd.f32 %v1796, 0.5
    %v1798 = vtanh.pop %v1783
    %v1799 = vmul.f32 %v1793, %v1576
    %v1800 = vmul.f32 %v1789, %v1798
    %v1801 = vadd.f32 %v1799, %v1800
    %v1802 = vtanh.pop %v1801
    %v1803 = vmul.f32 %v1797, %v1802
    %1804 = vrot.lane.b32.xlu0 %v1803, 1
    %v1805 = vpop.permute.xlu0 %1804
    %1806 = vrot.lane.b32.xlu0 %v1693, 1
    %v1807 = vpop.permute.xlu0 %1806
    %v1808 = vmul.f32 %v1805, %v91
    %v1809 = vmul.f32 %v1807, %v91
    %1810 = vrot.lane.b32.xlu0 %v1803, 127
    %v1811 = vpop.permute.xlu0 %1810
    %1812 = vrot.lane.b32.xlu0 %v1693, 127
    %v1813 = vpop.permute.xlu0 %1812
    %v1814 = vmul.f32 %v1811, %v103
    %v1815 = vmul.f32 %v1813, %v103
    %1816 = vmatprep.subr.mxu0 0.0
    %1817 = vmatpush1.msra.mxu0 %v1808
    %1818 = vmatprep.subr.mxu0 0.0
    %1819 = vmatpush1.msra.mxu0 %v1809
    %1820 = vmatprep.subr.mxu0 0.0
    %1821 = vmatpush1.msra.mxu0 %v1803
    %1822 = vmatprep.subr.mxu0 0.0
    %1823 = vmatpush1.msra.mxu0 %v1693
    %1824 = vmatprep.subr.mxu0 0.0
    %1825 = vmatpush1.msra.mxu0 %v1814
    %1826 = vmatprep.subr.mxu0 0.0
    %1827 = vmatpush1.msra.mxu0 %v1815
    %1828 = vmatprep.subr.mxu0 0.0
    %1829 = vmatpush1.msra.mxu0 0.0
    %1830 = vmatprep.subr.mxu0 0.0
    %1831 = vmatpush1.msra.mxu0 0.0
    %1832 = vmatprep.subr.mxu0 0.0
    %1833 = vmatpush1.msra.mxu0 0.0
    %1834 = vmatprep.subr.mxu0 0.0
    %1835 = vmatpush1.msra.mxu0 0.0
    %1836 = vmatprep.subr.mxu0 0.0
    %1837 = vmatpush1.msra.mxu0 0.0
    %1838 = vmatprep.subr.mxu0 0.0
    %1839 = vmatpush1.msra.mxu0 0.0
    %1840 = vmatprep.subr.mxu0 0.0
    %1841 = vmatpush1.msra.mxu0 0.0
    %1842 = vmatprep.subr.mxu0 0.0
    %1843 = vmatpush1.msra.mxu0 0.0
    %1844 = vmatprep.subr.mxu0 0.0
    %1845 = vmatpush1.msra.mxu0 0.0
    %1846 = vmatprep.subr.mxu0 0.0
    %1847 = vmatpush1.msra.mxu0 0.0
    %1848 = vmatprep.subr.mxu0 0.0
    %1849 = vmatpush1.msra.mxu0 0.0
    %1850 = vmatprep.subr.mxu0 0.0
    %1851 = vmatpush1.msra.mxu0 0.0
    %1852 = vmatprep.subr.mxu0 0.0
    %1853 = vmatpush1.msra.mxu0 0.0
    %1854 = vmatprep.subr.mxu0 0.0
    %1855 = vmatpush1.msra.mxu0 0.0
    %1856 = vmatprep.subr.mxu0 0.0
    %1857 = vmatpush1.msra.mxu0 0.0
    %1858 = vmatprep.subr.mxu0 0.0
    %1859 = vmatpush1.msra.mxu0 0.0
    %1860 = vmatprep.subr.mxu0 0.0
    %1861 = vmatpush1.msra.mxu0 0.0
    %1862 = vmatprep.subr.mxu0 0.0
    %1863 = vmatpush1.msra.mxu0 0.0
    %1864 = vmatprep.subr.mxu0 0.0
    %1865 = vmatpush1.msra.mxu0 0.0
    %1866 = vmatprep.subr.mxu0 0.0
    %1867 = vmatpush1.msra.mxu0 0.0
    %1868 = vmatprep.subr.mxu0 0.0
    %1869 = vmatpush1.msra.mxu0 0.0
    %1870 = vmatprep.subr.mxu0 0.0
    %1871 = vmatpush1.msra.mxu0 0.0
    %1872 = vmatprep.subr.mxu0 0.0
    %1873 = vmatpush1.msra.mxu0 0.0
    %1874 = vmatprep.subr.mxu0 0.0
    %1875 = vmatpush1.msra.mxu0 0.0
    %1876 = vmatprep.subr.mxu0 0.0
    %1877 = vmatpush1.msra.mxu0 0.0
    %1878 = vmatprep.subr.mxu0 0.0
    %1879 = vmatpush1.msra.mxu0 0.0
    %1880 = vmatprep.mubr.f32.mxu0 0.0
    %1881 = vmatmul.mubr.f32.gmra.mrb[0].mxu0 %v230
    %v1882 = vpop.f32.mrb[0].mxu0
    %v1883 = vadd.f32 0.0, %v1882
    %v1884 = vpop.f32.mrb[0].mxu0
    %1885 = vmatprep.mubr.f32.mxu0 0.0
    %1886 = vmatmul.mubr.f32.gmra.mrb[0].mxu0 %v233
    %v1887 = vpop.f32.mrb[0].mxu0
    %v1888 = vadd.f32 0.0, %v1887
    %v1889 = vpop.f32.mrb[0].mxu0
    %1890 = vmatprep.mubr.f32.mxu0 0.0
    %1891 = vmatmul.mubr.f32.gmra.mrb[0].mxu0 %v236
    %v1892 = vpop.f32.mrb[0].mxu0
    %v1893 = vadd.f32 0.0, %v1892
    %v1894 = vpop.f32.mrb[0].mxu0
    %1895 = vmatprep.mubr.f32.mxu0 0.0
    %1896 = vmatmul.mubr.f32.gmra.mrb[0].mxu0 %v239
    %v1897 = vpop.f32.mrb[0].mxu0
    %v1898 = vadd.f32 0.0, %v1897
    %v1899 = vpop.f32.mrb[0].mxu0
    %1900 = vdwg.mxu0
    %v1901 = vmul.f32 %v1883, 0.5
    %v1902 = vtanh.pop %v1901
    %v1903 = vmul.f32 %v1902, 0.5
    %v1904 = vadd.f32 %v1903, 0.5
    %v1905 = vmul.f32 %v1888, 0.5
    %v1906 = vtanh.pop %v1905
    %v1907 = vmul.f32 %v1906, 0.5
    %v1908 = vadd.f32 %v1907, 0.5
    %v1909 = vmul.f32 %v1893, 0.5
    %v1910 = vtanh.pop %v1909
    %v1911 = vmul.f32 %v1910, 0.5
    %v1912 = vadd.f32 %v1911, 0.5
    %v1913 = vtanh.pop %v1898
    %v1914 = vmul.f32 %v1908, %v1691
    %v1915 = vmul.f32 %v1904, %v1913
    %v1916 = vadd.f32 %v1914, %v1915
    %v1917 = vtanh.pop %v1916
    %v1918 = vmul.f32 %v1912, %v1917
    %v1919 = vld [vmem:[%s5] sm:$0xff]
    %1920 = vrot.lane.b32.xlu0 %v1918, 1
    %v1921 = vpop.permute.xlu0 %1920
    %v1922 = vlaneseq
    %v1923 = vand.u32 %v1922, 127
    %vm1924 = vcmp.lt.s32.totalorder %v1923, 1
    %v1925 = vsel %vm1924, %v1807, %v1921
    %v1926 = vsel %vm1924, %v1582, %v1807
    %v1927 = vsel %vm1924, %v1357, %v1582
    %v1928 = vsel %vm1924, %v1132, %v1357
    %v1929 = vsel %vm1924, %v907, %v1132
    %v1930 = vsel %vm1924, %v682, %v907
    %v1931 = vsel %vm1924, %v457, %v682
    %v1932 = vsel %vm1924, %v1921, %v457
    %v1933 = vlaneseq
    %v1934 = vshrl.u32 %v1933, 7
    %v1935 = vsub.s32 1, %v1934
    %v1936 = vrot.slane %v72, %v1935
    %v1937 = vlaneseq
    %v1938 = vshrl.u32 %v1937, 7
    %v1939 = vsub.s32 2, %v1938
    %v1940 = vrot.slane %v72, %v1939
    %v1941 = vlaneseq
    %v1942 = vshrl.u32 %v1941, 7
    %v1943 = vsub.s32 3, %v1942
    %v1944 = vrot.slane %v72, %v1943
    %v1945 = vlaneseq
    %v1946 = vshrl.u32 %v1945, 7
    %v1947 = vsub.s32 4, %v1946
    %v1948 = vrot.slane %v72, %v1947
    %v1949 = vlaneseq
    %v1950 = vshrl.u32 %v1949, 7
    %v1951 = vsub.s32 5, %v1950
    %v1952 = vrot.slane %v72, %v1951
    %v1953 = vlaneseq
    %v1954 = vshrl.u32 %v1953, 7
    %v1955 = vsub.s32 6, %v1954
    %v1956 = vrot.slane %v72, %v1955
    %v1957 = vlaneseq
    %v1958 = vshrl.u32 %v1957, 7
    %v1959 = vsub.s32 7, %v1958
    %v1960 = vrot.slane %v72, %v1959
    %v1968 = vmul.f32 %v1932, %v91
    %v1969 = vmul.f32 %v1931, %v1936
    %v1970 = vmul.f32 %v1930, %v1940
    %v1971 = vmul.f32 %v1929, %v1944
    %v1972 = vmul.f32 %v1928, %v1948
    %v1973 = vmul.f32 %v1927, %v1952
    %v1974 = vmul.f32 %v1926, %v1956
    %v1975 = vmul.f32 %v1925, %v1960
    %1976 = vrot.lane.b32.xlu0 %v1918, 127
    %v1977 = vpop.permute.xlu0 %1976
    %vm1978 = vcmp.lt.s32.totalorder %v1923, 127
    %v1979 = vsel %vm1978, %v1813, %v1977
    %v1980 = vsel %vm1978, %v1588, %v1813
    %v1981 = vsel %vm1978, %v1363, %v1588
    %v1982 = vsel %vm1978, %v1138, %v1363
    %v1983 = vsel %vm1978, %v913, %v1138
    %v1984 = vsel %vm1978, %v688, %v913
    %v1985 = vsel %vm1978, %v463, %v688
    %v1986 = vsel %vm1978, %v1977, %v463
    %v1987 = vlaneseq
    %v1988 = vshrl.u32 %v1987, 7
    %v1989 = vsub.s32 1, %v1988
    %v1990 = vrot.slane %v73, %v1989
    %v1991 = vlaneseq
    %v1992 = vshrl.u32 %v1991, 7
    %v1993 = vsub.s32 2, %v1992
    %v1994 = vrot.slane %v73, %v1993
    %v1995 = vlaneseq
    %v1996 = vshrl.u32 %v1995, 7
    %v1997 = vsub.s32 3, %v1996
    %v1998 = vrot.slane %v73, %v1997
    %v1999 = vlaneseq
    %v2000 = vshrl.u32 %v1999, 7
    %v2001 = vsub.s32 4, %v2000
    %v2002 = vrot.slane %v73, %v2001
    %v2003 = vlaneseq
    %v2004 = vshrl.u32 %v2003, 7
    %v2005 = vsub.s32 5, %v2004
    %v2006 = vrot.slane %v73, %v2005
    %v2007 = vlaneseq
    %v2008 = vshrl.u32 %v2007, 7
    %v2009 = vsub.s32 6, %v2008
    %v2010 = vrot.slane %v73, %v2009
    %v2011 = vlaneseq
    %v2012 = vshrl.u32 %v2011, 7
    %v2013 = vsub.s32 7, %v2012
    %v2014 = vrot.slane %v73, %v2013
    %v2022 = vmul.f32 %v1985, %v103
    %v2023 = vmul.f32 %v1984, %v1990
    %v2024 = vmul.f32 %v1983, %v1994
    %v2025 = vmul.f32 %v1982, %v1998
    %v2026 = vmul.f32 %v1981, %v2002
    %v2027 = vmul.f32 %v1980, %v2006
    %v2028 = vmul.f32 %v1979, %v2010
    %v2029 = vmul.f32 %v1986, %v2014
    %v2030 = vld [vmem:[%s6] sm:$0xff]
    %2032 = vset.pattern.permute.xlu0 0
    %2033 = vperm.xlu0 %2032, %v2030
    %v2034 = vpop.permute.xlu0 %2033
    %vm2036 = vcmask 195584
    %v2038 = vsel %vm2036, %v1919, 0
    %2040 = vmatprep.subr.mxu0 %v1969
    %2041 = vmatpush1.msra.mxu0 %v1968
    %2042 = vmatprep.subr.mxu0 %v568
    %2043 = vmatpush1.msra.mxu0 %v343
    %2044 = vmatprep.subr.mxu0 %v2023
    %2045 = vmatpush1.msra.mxu0 %v2022
    %2046 = vmatprep.subr.mxu0 0.0
    %2047 = vmatpush1.msra.mxu0 0.0
    %2048 = vmatprep.subr.mxu0 0.0
    %2049 = vmatpush1.msra.mxu0 0.0
    %2050 = vmatprep.subr.mxu0 0.0
    %2051 = vmatpush1.msra.mxu0 0.0
    %2052 = vmatprep.subr.mxu0 0.0
    %2053 = vmatpush1.msra.mxu0 0.0
    %2054 = vmatprep.subr.mxu0 0.0
    %2055 = vmatpush1.msra.mxu0 0.0
    %2056 = vmatprep.subr.mxu0 0.0
    %2057 = vmatpush1.msra.mxu0 0.0
    %2058 = vmatprep.subr.mxu0 0.0
    %2059 = vmatpush1.msra.mxu0 0.0
    %2060 = vmatprep.subr.mxu0 0.0
    %2061 = vmatpush1.msra.mxu0 0.0
    %2062 = vmatprep.subr.mxu0 0.0
    %2063 = vmatpush1.msra.mxu0 0.0
    %2064 = vmatprep.subr.mxu0 0.0
    %2065 = vmatpush1.msra.mxu0 0.0
    %2066 = vmatprep.subr.mxu0 0.0
    %2067 = vmatpush1.msra.mxu0 0.0
    %2068 = vmatprep.subr.mxu0 0.0
    %2069 = vmatpush1.msra.mxu0 0.0
    %2070 = vmatprep.subr.mxu0 0.0
    %2071 = vmatpush1.msra.mxu0 0.0
    %2072 = vmatprep.subr.mxu0 0.0
    %2073 = vmatpush1.msra.mxu0 0.0
    %2074 = vmatprep.subr.mxu0 0.0
    %2075 = vmatpush1.msra.mxu0 0.0
    %2076 = vmatprep.subr.mxu0 0.0
    %2077 = vmatpush1.msra.mxu0 0.0
    %2078 = vmatprep.subr.mxu0 0.0
    %2079 = vmatpush1.msra.mxu0 0.0
    %2080 = vmatprep.subr.mxu0 0.0
    %2081 = vmatpush1.msra.mxu0 0.0
    %2082 = vmatprep.subr.mxu0 0.0
    %2083 = vmatpush1.msra.mxu0 0.0
    %2084 = vmatprep.subr.mxu0 0.0
    %2085 = vmatpush1.msra.mxu0 0.0
    %2086 = vmatprep.subr.mxu0 0.0
    %2087 = vmatpush1.msra.mxu0 0.0
    %2088 = vmatprep.subr.mxu0 0.0
    %2089 = vmatpush1.msra.mxu0 0.0
    %2090 = vmatprep.subr.mxu0 0.0
    %2091 = vmatpush1.msra.mxu0 0.0
    %2092 = vmatprep.subr.mxu0 0.0
    %2093 = vmatpush1.msra.mxu0 0.0
    %2094 = vmatprep.subr.mxu0 0.0
    %2095 = vmatpush1.msra.mxu0 0.0
    %2096 = vmatprep.subr.mxu0 0.0
    %2097 = vmatpush1.msra.mxu0 0.0
    %2098 = vmatprep.subr.mxu0 0.0
    %2099 = vmatpush1.msra.mxu0 0.0
    %2100 = vmatprep.subr.mxu0 0.0
    %2101 = vmatpush1.msra.mxu0 0.0
    %2102 = vmatprep.subr.mxu0 0.0
    %2103 = vmatpush1.msra.mxu0 0.0
    %2104 = vmatprep.mubr.f32.mxu0 0.0
    %2105 = vmatmul.mubr.f32.gmra.mrb[0].mxu0 %v2038
    %v2106 = vpop.f32.mrb[0].mxu0
    %v2107 = vadd.f32 %v2034, %v2106
    %v2108 = vpop.f32.mrb[0].mxu0
    %v2109 = vadd.f32 %v2034, %v2108
    %2110 = vdwg.mxu0
    %2111 = vmatprep.subr.mxu0 %v1971
    %2112 = vmatpush1.msra.mxu0 %v1970
    %2113 = vmatprep.subr.mxu0 %v1018
    %2114 = vmatpush1.msra.mxu0 %v793
    %2115 = vmatprep.subr.mxu0 %v2025
    %2116 = vmatpush1.msra.mxu0 %v2024
    %2117 = vmatprep.subr.mxu0 0.0
    %2118 = vmatpush1.msra.mxu0 0.0
    %2119 = vmatprep.subr.mxu0 0.0
    %2120 = vmatpush1.msra.mxu0 0.0
    %2121 = vmatprep.subr.mxu0 0.0
    %2122 = vmatpush1.msra.mxu0 0.0
    %2123 = vmatprep.subr.mxu0 0.0
    %2124 = vmatpush1.msra.mxu0 0.0
    %2125 = vmatprep.subr.mxu0 0.0
    %2126 = vmatpush1.msra.mxu0 0.0
    %2127 = vmatprep.subr.mxu0 0.0
    %2128 = vmatpush1.msra.mxu0 0.0
    %2129 = vmatprep.subr.mxu0 0.0
    %2130 = vmatpush1.msra.mxu0 0.0
    %2131 = vmatprep.subr.mxu0 0.0
    %2132 = vmatpush1.msra.mxu0 0.0
    %2133 = vmatprep.subr.mxu0 0.0
    %2134 = vmatpush1.msra.mxu0 0.0
    %2135 = vmatprep.subr.mxu0 0.0
    %2136 = vmatpush1.msra.mxu0 0.0
    %2137 = vmatprep.subr.mxu0 0.0
    %2138 = vmatpush1.msra.mxu0 0.0
    %2139 = vmatprep.subr.mxu0 0.0
    %2140 = vmatpush1.msra.mxu0 0.0
    %2141 = vmatprep.subr.mxu0 0.0
    %2142 = vmatpush1.msra.mxu0 0.0
    %2143 = vmatprep.subr.mxu0 0.0
    %2144 = vmatpush1.msra.mxu0 0.0
    %2145 = vmatprep.subr.mxu0 0.0
    %2146 = vmatpush1.msra.mxu0 0.0
    %2147 = vmatprep.subr.mxu0 0.0
    %2148 = vmatpush1.msra.mxu0 0.0
    %2149 = vmatprep.subr.mxu0 0.0
    %2150 = vmatpush1.msra.mxu0 0.0
    %2151 = vmatprep.subr.mxu0 0.0
    %2152 = vmatpush1.msra.mxu0 0.0
    %2153 = vmatprep.subr.mxu0 0.0
    %2154 = vmatpush1.msra.mxu0 0.0
    %2155 = vmatprep.subr.mxu0 0.0
    %2156 = vmatpush1.msra.mxu0 0.0
    %2157 = vmatprep.subr.mxu0 0.0
    %2158 = vmatpush1.msra.mxu0 0.0
    %2159 = vmatprep.subr.mxu0 0.0
    %2160 = vmatpush1.msra.mxu0 0.0
    %2161 = vmatprep.subr.mxu0 0.0
    %2162 = vmatpush1.msra.mxu0 0.0
    %2163 = vmatprep.subr.mxu0 0.0
    %2164 = vmatpush1.msra.mxu0 0.0
    %2165 = vmatprep.subr.mxu0 0.0
    %2166 = vmatpush1.msra.mxu0 0.0
    %2167 = vmatprep.subr.mxu0 0.0
    %2168 = vmatpush1.msra.mxu0 0.0
    %2169 = vmatprep.subr.mxu0 0.0
    %2170 = vmatpush1.msra.mxu0 0.0
    %2171 = vmatprep.subr.mxu0 0.0
    %2172 = vmatpush1.msra.mxu0 0.0
    %2173 = vmatprep.subr.mxu0 0.0
    %2174 = vmatpush1.msra.mxu0 0.0
    %2175 = vmatprep.mubr.f32.mxu0 0.0
    %2176 = vmatmul.mubr.f32.gmra.mrb[0].mxu0 %v2038
    %v2177 = vpop.f32.mrb[0].mxu0
    %v2178 = vadd.f32 %v2034, %v2177
    %v2179 = vpop.f32.mrb[0].mxu0
    %v2180 = vadd.f32 %v2034, %v2179
    %2181 = vdwg.mxu0
    %2182 = vmatprep.subr.mxu0 %v1973
    %2183 = vmatpush1.msra.mxu0 %v1972
    %2184 = vmatprep.subr.mxu0 %v1468
    %2185 = vmatpush1.msra.mxu0 %v1243
    %2186 = vmatprep.subr.mxu0 %v2027
    %2187 = vmatpush1.msra.mxu0 %v2026
    %2188 = vmatprep.subr.mxu0 0.0
    %2189 = vmatpush1.msra.mxu0 0.0
    %2190 = vmatprep.subr.mxu0 0.0
    %2191 = vmatpush1.msra.mxu0 0.0
    %2192 = vmatprep.subr.mxu0 0.0
    %2193 = vmatpush1.msra.mxu0 0.0
    %2194 = vmatprep.subr.mxu0 0.0
    %2195 = vmatpush1.msra.mxu0 0.0
    %2196 = vmatprep.subr.mxu0 0.0
    %2197 = vmatpush1.msra.mxu0 0.0
    %2198 = vmatprep.subr.mxu0 0.0
    %2199 = vmatpush1.msra.mxu0 0.0
    %2200 = vmatprep.subr.mxu0 0.0
    %2201 = vmatpush1.msra.mxu0 0.0
    %2202 = vmatprep.subr.mxu0 0.0
    %2203 = vmatpush1.msra.mxu0 0.0
    %2204 = vmatprep.subr.mxu0 0.0
    %2205 = vmatpush1.msra.mxu0 0.0
    %2206 = vmatprep.subr.mxu0 0.0
    %2207 = vmatpush1.msra.mxu0 0.0
    %2208 = vmatprep.subr.mxu0 0.0
    %2209 = vmatpush1.msra.mxu0 0.0
    %2210 = vmatprep.subr.mxu0 0.0
    %2211 = vmatpush1.msra.mxu0 0.0
    %2212 = vmatprep.subr.mxu0 0.0
    %2213 = vmatpush1.msra.mxu0 0.0
    %2214 = vmatprep.subr.mxu0 0.0
    %2215 = vmatpush1.msra.mxu0 0.0
    %2216 = vmatprep.subr.mxu0 0.0
    %2217 = vmatpush1.msra.mxu0 0.0
    %2218 = vmatprep.subr.mxu0 0.0
    %2219 = vmatpush1.msra.mxu0 0.0
    %2220 = vmatprep.subr.mxu0 0.0
    %2221 = vmatpush1.msra.mxu0 0.0
    %2222 = vmatprep.subr.mxu0 0.0
    %2223 = vmatpush1.msra.mxu0 0.0
    %2224 = vmatprep.subr.mxu0 0.0
    %2225 = vmatpush1.msra.mxu0 0.0
    %2226 = vmatprep.subr.mxu0 0.0
    %2227 = vmatpush1.msra.mxu0 0.0
    %2228 = vmatprep.subr.mxu0 0.0
    %2229 = vmatpush1.msra.mxu0 0.0
    %2230 = vmatprep.subr.mxu0 0.0
    %2231 = vmatpush1.msra.mxu0 0.0
    %2232 = vmatprep.subr.mxu0 0.0
    %2233 = vmatpush1.msra.mxu0 0.0
    %2234 = vmatprep.subr.mxu0 0.0
    %2235 = vmatpush1.msra.mxu0 0.0
    %2236 = vmatprep.subr.mxu0 0.0
    %2237 = vmatpush1.msra.mxu0 0.0
    %2238 = vmatprep.subr.mxu0 0.0
    %2239 = vmatpush1.msra.mxu0 0.0
    %2240 = vmatprep.subr.mxu0 0.0
    %2241 = vmatpush1.msra.mxu0 0.0
    %2242 = vmatprep.subr.mxu0 0.0
    %2243 = vmatpush1.msra.mxu0 0.0
    %2244 = vmatprep.subr.mxu0 0.0
    %2245 = vmatpush1.msra.mxu0 0.0
    %2246 = vmatprep.mubr.f32.mxu0 0.0
    %2247 = vmatmul.mubr.f32.gmra.mrb[0].mxu0 %v2038
    %v2248 = vpop.f32.mrb[0].mxu0
    %v2249 = vadd.f32 %v2034, %v2248
    %v2250 = vpop.f32.mrb[0].mxu0
    %v2251 = vadd.f32 %v2034, %v2250
    %2252 = vdwg.mxu0
    %2253 = vmatprep.subr.mxu0 %v1975
    %2254 = vmatpush1.msra.mxu0 %v1974
    %2255 = vmatprep.subr.mxu0 %v1918
    %2256 = vmatpush1.msra.mxu0 %v1693
    %2257 = vmatprep.subr.mxu0 %v2029
    %2258 = vmatpush1.msra.mxu0 %v2028
    %2259 = vmatprep.subr.mxu0 0.0
    %2260 = vmatpush1.msra.mxu0 0.0
    %2261 = vmatprep.subr.mxu0 0.0
    %2262 = vmatpush1.msra.mxu0 0.0
    %2263 = vmatprep.subr.mxu0 0.0
    %2264 = vmatpush1.msra.mxu0 0.0
    %2265 = vmatprep.subr.mxu0 0.0
    %2266 = vmatpush1.msra.mxu0 0.0
    %2267 = vmatprep.subr.mxu0 0.0
    %2268 = vmatpush1.msra.mxu0 0.0
    %2269 = vmatprep.subr.mxu0 0.0
    %2270 = vmatpush1.msra.mxu0 0.0
    %2271 = vmatprep.subr.mxu0 0.0
    %2272 = vmatpush1.msra.mxu0 0.0
    %2273 = vmatprep.subr.mxu0 0.0
    %2274 = vmatpush1.msra.mxu0 0.0
    %2275 = vmatprep.subr.mxu0 0.0
    %2276 = vmatpush1.msra.mxu0 0.0
    %2277 = vmatprep.subr.mxu0 0.0
    %2278 = vmatpush1.msra.mxu0 0.0
    %2279 = vmatprep.subr.mxu0 0.0
    %2280 = vmatpush1.msra.mxu0 0.0
    %2281 = vmatprep.subr.mxu0 0.0
    %2282 = vmatpush1.msra.mxu0 0.0
    %2283 = vmatprep.subr.mxu0 0.0
    %2284 = vmatpush1.msra.mxu0 0.0
    %2285 = vmatprep.subr.mxu0 0.0
    %2286 = vmatpush1.msra.mxu0 0.0
    %2287 = vmatprep.subr.mxu0 0.0
    %2288 = vmatpush1.msra.mxu0 0.0
    %2289 = vmatprep.subr.mxu0 0.0
    %2290 = vmatpush1.msra.mxu0 0.0
    %2291 = vmatprep.subr.mxu0 0.0
    %2292 = vmatpush1.msra.mxu0 0.0
    %2293 = vmatprep.subr.mxu0 0.0
    %2294 = vmatpush1.msra.mxu0 0.0
    %2295 = vmatprep.subr.mxu0 0.0
    %2296 = vmatpush1.msra.mxu0 0.0
    %2297 = vmatprep.subr.mxu0 0.0
    %2298 = vmatpush1.msra.mxu0 0.0
    %2299 = vmatprep.subr.mxu0 0.0
    %2300 = vmatpush1.msra.mxu0 0.0
    %2301 = vmatprep.subr.mxu0 0.0
    %2302 = vmatpush1.msra.mxu0 0.0
    %2303 = vmatprep.subr.mxu0 0.0
    %2304 = vmatpush1.msra.mxu0 0.0
    %2305 = vmatprep.subr.mxu0 0.0
    %2306 = vmatpush1.msra.mxu0 0.0
    %2307 = vmatprep.subr.mxu0 0.0
    %2308 = vmatpush1.msra.mxu0 0.0
    %2309 = vmatprep.subr.mxu0 0.0
    %2310 = vmatpush1.msra.mxu0 0.0
    %2311 = vmatprep.subr.mxu0 0.0
    %2312 = vmatpush1.msra.mxu0 0.0
    %2313 = vmatprep.subr.mxu0 0.0
    %2314 = vmatpush1.msra.mxu0 0.0
    %2315 = vmatprep.subr.mxu0 0.0
    %2316 = vmatpush1.msra.mxu0 0.0
    %2317 = vmatprep.mubr.f32.mxu0 0.0
    %2318 = vmatmul.mubr.f32.gmra.mrb[0].mxu0 %v2038
    %v2319 = vpop.f32.mrb[0].mxu0
    %v2320 = vadd.f32 %v2034, %v2319
    %v2321 = vpop.f32.mrb[0].mxu0
    %v2322 = vadd.f32 %v2034, %v2321
    %2323 = vdwg.mxu0
    %v2324 = vmul.f32 %v2107, 0.5
    %v2325 = vmul.f32 %v2109, 0.5
    %v2326 = vmul.f32 %v2178, 0.5
    %v2327 = vmul.f32 %v2180, 0.5
    %v2328 = vmul.f32 %v2249, 0.5
    %v2329 = vmul.f32 %v2251, 0.5
    %v2330 = vmul.f32 %v2320, 0.5
    %v2331 = vmul.f32 %v2322, 0.5
    %v2332 = vtanh.pop %v2324
    %v2333 = vtanh.pop %v2325
    %v2334 = vtanh.pop %v2326
    %v2335 = vtanh.pop %v2327
    %v2336 = vtanh.pop %v2328
    %v2337 = vtanh.pop %v2329
    %v2338 = vtanh.pop %v2330
    %v2339 = vtanh.pop %v2331
    %v2340 = vmul.f32 %v2332, 0.5
    %v2341 = vmul.f32 %v2333, 0.5
    %v2342 = vmul.f32 %v2334, 0.5
    %v2343 = vmul.f32 %v2335, 0.5
    %v2344 = vmul.f32 %v2336, 0.5
    %v2345 = vmul.f32 %v2337, 0.5
    %v2346 = vmul.f32 %v2338, 0.5
    %v2347 = vmul.f32 %v2339, 0.5
    %v2348 = vadd.f32 %v2340, 0.5
    %v2349 = vadd.f32 %v2341, 0.5
    %v2350 = vadd.f32 %v2342, 0.5
    %v2351 = vadd.f32 %v2343, 0.5
    %v2352 = vadd.f32 %v2344, 0.5
    %v2353 = vadd.f32 %v2345, 0.5
    %v2354 = vadd.f32 %v2346, 0.5
    %v2355 = vadd.f32 %v2347, 0.5
    %v2356 = vld [vmem:[%s7] sm:$0xff]
    %2357 = vrot.lane.b32.xlu0 %v2348, 1
    %v2358 = vpop.permute.xlu0 %2357
    %2359 = vrot.lane.b32.xlu0 %v2349, 1
    %v2360 = vpop.permute.xlu0 %2359
    %2361 = vrot.lane.b32.xlu0 %v2350, 1
    %v2362 = vpop.permute.xlu0 %2361
    %2363 = vrot.lane.b32.xlu0 %v2351, 1
    %v2364 = vpop.permute.xlu0 %2363
    %2365 = vrot.lane.b32.xlu0 %v2352, 1
    %v2366 = vpop.permute.xlu0 %2365
    %2367 = vrot.lane.b32.xlu0 %v2353, 1
    %v2368 = vpop.permute.xlu0 %2367
    %2369 = vrot.lane.b32.xlu0 %v2354, 1
    %v2370 = vpop.permute.xlu0 %2369
    %2371 = vrot.lane.b32.xlu0 %v2355, 1
    %v2372 = vpop.permute.xlu0 %2371
    %v2373 = vsel %vm1924, %v2370, %v2372
    %v2374 = vsel %vm1924, %v2368, %v2370
    %v2375 = vsel %vm1924, %v2366, %v2368
    %v2376 = vsel %vm1924, %v2364, %v2366
    %v2377 = vsel %vm1924, %v2362, %v2364
    %v2378 = vsel %vm1924, %v2360, %v2362
    %v2379 = vsel %vm1924, %v2358, %v2360
    %v2380 = vsel %vm1924, %v2372, %v2358
    %v2381 = vmul.f32 %v2380, %v91
    %v2382 = vmul.f32 %v2379, %v1936
    %v2383 = vmul.f32 %v2378, %v1940
    %v2384 = vmul.f32 %v2377, %v1944
    %v2385 = vmul.f32 %v2376, %v1948
    %v2386 = vmul.f32 %v2375, %v1952
    %v2387 = vmul.f32 %v2374, %v1956
    %v2388 = vmul.f32 %v2373, %v1960
    %2389 = vrot.lane.b32.xlu0 %v2348, 127
    %v2390 = vpop.permute.xlu0 %2389
    %2391 = vrot.lane.b32.xlu0 %v2349, 127
    %v2392 = vpop.permute.xlu0 %2391
    %2393 = vrot.lane.b32.xlu0 %v2350, 127
    %v2394 = vpop.permute.xlu0 %2393
    %2395 = vrot.lane.b32.xlu0 %v2351, 127
    %v2396 = vpop.permute.xlu0 %2395
    %2397 = vrot.lane.b32.xlu0 %v2352, 127
    %v2398 = vpop.permute.xlu0 %2397
    %2399 = vrot.lane.b32.xlu0 %v2353, 127
    %v2400 = vpop.permute.xlu0 %2399
    %2401 = vrot.lane.b32.xlu0 %v2354, 127
    %v2402 = vpop.permute.xlu0 %2401
    %2403 = vrot.lane.b32.xlu0 %v2355, 127
    %v2404 = vpop.permute.xlu0 %2403
    %v2405 = vsel %vm1978, %v2402, %v2404
    %v2406 = vsel %vm1978, %v2400, %v2402
    %v2407 = vsel %vm1978, %v2398, %v2400
    %v2408 = vsel %vm1978, %v2396, %v2398
    %v2409 = vsel %vm1978, %v2394, %v2396
    %v2410 = vsel %vm1978, %v2392, %v2394
    %v2411 = vsel %vm1978, %v2390, %v2392
    %v2412 = vsel %vm1978, %v2404, %v2390
    %v2413 = vmul.f32 %v2411, %v103
    %v2414 = vmul.f32 %v2410, %v1990
    %v2415 = vmul.f32 %v2409, %v1994
    %v2416 = vmul.f32 %v2408, %v1998
    %v2417 = vmul.f32 %v2407, %v2002
    %v2418 = vmul.f32 %v2406, %v2006
    %v2419 = vmul.f32 %v2405, %v2010
    %v2420 = vmul.f32 %v2412, %v2014
    %v2421 = vld [vmem:[%s8] sm:$0xff]
    %2423 = vset.pattern.permute.xlu0 0
    %2424 = vperm.xlu0 %2423, %v2421
    %v2425 = vpop.permute.xlu0 %2424
    %v2428 = vsel %vm2036, %v2356, 0
    %2430 = vmatprep.subr.mxu0 %v2382
    %2431 = vmatpush1.msra.mxu0 %v2381
    %2432 = vmatprep.subr.mxu0 %v2349
    %2433 = vmatpush1.msra.mxu0 %v2348
    %2434 = vmatprep.subr.mxu0 %v2414
    %2435 = vmatpush1.msra.mxu0 %v2413
    %2436 = vmatprep.subr.mxu0 0.0
    %2437 = vmatpush1.msra.mxu0 0.0
    %2438 = vmatprep.subr.mxu0 0.0
    %2439 = vmatpush1.msra.mxu0 0.0
    %2440 = vmatprep.subr.mxu0 0.0
    %2441 = vmatpush1.msra.mxu0 0.0
    %2442 = vmatprep.subr.mxu0 0.0
    %2443 = vmatpush1.msra.mxu0 0.0
    %2444 = vmatprep.subr.mxu0 0.0
    %2445 = vmatpush1.msra.mxu0 0.0
    %2446 = vmatprep.subr.mxu0 0.0
    %2447 = vmatpush1.msra.mxu0 0.0
    %2448 = vmatprep.subr.mxu0 0.0
    %2449 = vmatpush1.msra.mxu0 0.0
    %2450 = vmatprep.subr.mxu0 0.0
    %2451 = vmatpush1.msra.mxu0 0.0
    %2452 = vmatprep.subr.mxu0 0.0
    %2453 = vmatpush1.msra.mxu0 0.0
    %2454 = vmatprep.subr.mxu0 0.0
    %2455 = vmatpush1.msra.mxu0 0.0
    %2456 = vmatprep.subr.mxu0 0.0
    %2457 = vmatpush1.msra.mxu0 0.0
    %2458 = vmatprep.subr.mxu0 0.0
    %2459 = vmatpush1.msra.mxu0 0.0
    %2460 = vmatprep.subr.mxu0 0.0
    %2461 = vmatpush1.msra.mxu0 0.0
    %2462 = vmatprep.subr.mxu0 0.0
    %2463 = vmatpush1.msra.mxu0 0.0
    %2464 = vmatprep.subr.mxu0 0.0
    %2465 = vmatpush1.msra.mxu0 0.0
    %2466 = vmatprep.subr.mxu0 0.0
    %2467 = vmatpush1.msra.mxu0 0.0
    %2468 = vmatprep.subr.mxu0 0.0
    %2469 = vmatpush1.msra.mxu0 0.0
    %2470 = vmatprep.subr.mxu0 0.0
    %2471 = vmatpush1.msra.mxu0 0.0
    %2472 = vmatprep.subr.mxu0 0.0
    %2473 = vmatpush1.msra.mxu0 0.0
    %2474 = vmatprep.subr.mxu0 0.0
    %2475 = vmatpush1.msra.mxu0 0.0
    %2476 = vmatprep.subr.mxu0 0.0
    %2477 = vmatpush1.msra.mxu0 0.0
    %2478 = vmatprep.subr.mxu0 0.0
    %2479 = vmatpush1.msra.mxu0 0.0
    %2480 = vmatprep.subr.mxu0 0.0
    %2481 = vmatpush1.msra.mxu0 0.0
    %2482 = vmatprep.subr.mxu0 0.0
    %2483 = vmatpush1.msra.mxu0 0.0
    %2484 = vmatprep.subr.mxu0 0.0
    %2485 = vmatpush1.msra.mxu0 0.0
    %2486 = vmatprep.subr.mxu0 0.0
    %2487 = vmatpush1.msra.mxu0 0.0
    %2488 = vmatprep.subr.mxu0 0.0
    %2489 = vmatpush1.msra.mxu0 0.0
    %2490 = vmatprep.subr.mxu0 0.0
    %2491 = vmatpush1.msra.mxu0 0.0
    %2492 = vmatprep.subr.mxu0 0.0
    %2493 = vmatpush1.msra.mxu0 0.0
    %2494 = vmatprep.mubr.f32.mxu0 0.0
    %2495 = vmatmul.mubr.f32.gmra.mrb[0].mxu0 %v2428
    %v2496 = vpop.f32.mrb[0].mxu0
    %v2497 = vadd.f32 %v2425, %v2496
    %v2498 = vpop.f32.mrb[0].mxu0
    %v2499 = vadd.f32 %v2425, %v2498
    %2500 = vdwg.mxu0
    %2501 = vmatprep.subr.mxu0 %v2384
    %2502 = vmatpush1.msra.mxu0 %v2383
    %2503 = vmatprep.subr.mxu0 %v2351
    %2504 = vmatpush1.msra.mxu0 %v2350
    %2505 = vmatprep.subr.mxu0 %v2416
    %2506 = vmatpush1.msra.mxu0 %v2415
    %2507 = vmatprep.subr.mxu0 0.0
    %2508 = vmatpush1.msra.mxu0 0.0
    %2509 = vmatprep.subr.mxu0 0.0
    %2510 = vmatpush1.msra.mxu0 0.0
    %2511 = vmatprep.subr.mxu0 0.0
    %2512 = vmatpush1.msra.mxu0 0.0
    %2513 = vmatprep.subr.mxu0 0.0
    %2514 = vmatpush1.msra.mxu0 0.0
    %2515 = vmatprep.subr.mxu0 0.0
    %2516 = vmatpush1.msra.mxu0 0.0
    %2517 = vmatprep.subr.mxu0 0.0
    %2518 = vmatpush1.msra.mxu0 0.0
    %2519 = vmatprep.subr.mxu0 0.0
    %2520 = vmatpush1.msra.mxu0 0.0
    %2521 = vmatprep.subr.mxu0 0.0
    %2522 = vmatpush1.msra.mxu0 0.0
    %2523 = vmatprep.subr.mxu0 0.0
    %2524 = vmatpush1.msra.mxu0 0.0
    %2525 = vmatprep.subr.mxu0 0.0
    %2526 = vmatpush1.msra.mxu0 0.0
    %2527 = vmatprep.subr.mxu0 0.0
    %2528 = vmatpush1.msra.mxu0 0.0
    %2529 = vmatprep.subr.mxu0 0.0
    %2530 = vmatpush1.msra.mxu0 0.0
    %2531 = vmatprep.subr.mxu0 0.0
    %2532 = vmatpush1.msra.mxu0 0.0
    %2533 = vmatprep.subr.mxu0 0.0
    %2534 = vmatpush1.msra.mxu0 0.0
    %2535 = vmatprep.subr.mxu0 0.0
    %2536 = vmatpush1.msra.mxu0 0.0
    %2537 = vmatprep.subr.mxu0 0.0
    %2538 = vmatpush1.msra.mxu0 0.0
    %2539 = vmatprep.subr.mxu0 0.0
    %2540 = vmatpush1.msra.mxu0 0.0
    %2541 = vmatprep.subr.mxu0 0.0
    %2542 = vmatpush1.msra.mxu0 0.0
    %2543 = vmatprep.subr.mxu0 0.0
    %2544 = vmatpush1.msra.mxu0 0.0
    %2545 = vmatprep.subr.mxu0 0.0
    %2546 = vmatpush1.msra.mxu0 0.0
    %2547 = vmatprep.subr.mxu0 0.0
    %2548 = vmatpush1.msra.mxu0 0.0
    %2549 = vmatprep.subr.mxu0 0.0
    %2550 = vmatpush1.msra.mxu0 0.0
    %2551 = vmatprep.subr.mxu0 0.0
    %2552 = vmatpush1.msra.mxu0 0.0
    %2553 = vmatprep.subr.mxu0 0.0
    %2554 = vmatpush1.msra.mxu0 0.0
    %2555 = vmatprep.subr.mxu0 0.0
    %2556 = vmatpush1.msra.mxu0 0.0
    %2557 = vmatprep.subr.mxu0 0.0
    %2558 = vmatpush1.msra.mxu0 0.0
    %2559 = vmatprep.subr.mxu0 0.0
    %2560 = vmatpush1.msra.mxu0 0.0
    %2561 = vmatprep.subr.mxu0 0.0
    %2562 = vmatpush1.msra.mxu0 0.0
    %2563 = vmatprep.subr.mxu0 0.0
    %2564 = vmatpush1.msra.mxu0 0.0
    %2565 = vmatprep.mubr.f32.mxu0 0.0
    %2566 = vmatmul.mubr.f32.gmra.mrb[0].mxu0 %v2428
    %v2567 = vpop.f32.mrb[0].mxu0
    %v2568 = vadd.f32 %v2425, %v2567
    %v2569 = vpop.f32.mrb[0].mxu0
    %v2570 = vadd.f32 %v2425, %v2569
    %2571 = vdwg.mxu0
    %2572 = vmatprep.subr.mxu0 %v2386
    %2573 = vmatpush1.msra.mxu0 %v2385
    %2574 = vmatprep.subr.mxu0 %v2353
    %2575 = vmatpush1.msra.mxu0 %v2352
    %2576 = vmatprep.subr.mxu0 %v2418
    %2577 = vmatpush1.msra.mxu0 %v2417
    %2578 = vmatprep.subr.mxu0 0.0
    %2579 = vmatpush1.msra.mxu0 0.0
    %2580 = vmatprep.subr.mxu0 0.0
    %2581 = vmatpush1.msra.mxu0 0.0
    %2582 = vmatprep.subr.mxu0 0.0
    %2583 = vmatpush1.msra.mxu0 0.0
    %2584 = vmatprep.subr.mxu0 0.0
    %2585 = vmatpush1.msra.mxu0 0.0
    %2586 = vmatprep.subr.mxu0 0.0
    %2587 = vmatpush1.msra.mxu0 0.0
    %2588 = vmatprep.subr.mxu0 0.0
    %2589 = vmatpush1.msra.mxu0 0.0
    %2590 = vmatprep.subr.mxu0 0.0
    %2591 = vmatpush1.msra.mxu0 0.0
    %2592 = vmatprep.subr.mxu0 0.0
    %2593 = vmatpush1.msra.mxu0 0.0
    %2594 = vmatprep.subr.mxu0 0.0
    %2595 = vmatpush1.msra.mxu0 0.0
    %2596 = vmatprep.subr.mxu0 0.0
    %2597 = vmatpush1.msra.mxu0 0.0
    %2598 = vmatprep.subr.mxu0 0.0
    %2599 = vmatpush1.msra.mxu0 0.0
    %2600 = vmatprep.subr.mxu0 0.0
    %2601 = vmatpush1.msra.mxu0 0.0
    %2602 = vmatprep.subr.mxu0 0.0
    %2603 = vmatpush1.msra.mxu0 0.0
    %2604 = vmatprep.subr.mxu0 0.0
    %2605 = vmatpush1.msra.mxu0 0.0
    %2606 = vmatprep.subr.mxu0 0.0
    %2607 = vmatpush1.msra.mxu0 0.0
    %2608 = vmatprep.subr.mxu0 0.0
    %2609 = vmatpush1.msra.mxu0 0.0
    %2610 = vmatprep.subr.mxu0 0.0
    %2611 = vmatpush1.msra.mxu0 0.0
    %2612 = vmatprep.subr.mxu0 0.0
    %2613 = vmatpush1.msra.mxu0 0.0
    %2614 = vmatprep.subr.mxu0 0.0
    %2615 = vmatpush1.msra.mxu0 0.0
    %2616 = vmatprep.subr.mxu0 0.0
    %2617 = vmatpush1.msra.mxu0 0.0
    %2618 = vmatprep.subr.mxu0 0.0
    %2619 = vmatpush1.msra.mxu0 0.0
    %2620 = vmatprep.subr.mxu0 0.0
    %2621 = vmatpush1.msra.mxu0 0.0
    %2622 = vmatprep.subr.mxu0 0.0
    %2623 = vmatpush1.msra.mxu0 0.0
    %2624 = vmatprep.subr.mxu0 0.0
    %2625 = vmatpush1.msra.mxu0 0.0
    %2626 = vmatprep.subr.mxu0 0.0
    %2627 = vmatpush1.msra.mxu0 0.0
    %2628 = vmatprep.subr.mxu0 0.0
    %2629 = vmatpush1.msra.mxu0 0.0
    %2630 = vmatprep.subr.mxu0 0.0
    %2631 = vmatpush1.msra.mxu0 0.0
    %2632 = vmatprep.subr.mxu0 0.0
    %2633 = vmatpush1.msra.mxu0 0.0
    %2634 = vmatprep.subr.mxu0 0.0
    %2635 = vmatpush1.msra.mxu0 0.0
    %2636 = vmatprep.mubr.f32.mxu0 0.0
    %2637 = vmatmul.mubr.f32.gmra.mrb[0].mxu0 %v2428
    %v2638 = vpop.f32.mrb[0].mxu0
    %v2639 = vadd.f32 %v2425, %v2638
    %v2640 = vpop.f32.mrb[0].mxu0
    %v2641 = vadd.f32 %v2425, %v2640
    %2642 = vdwg.mxu0
    %2643 = vmatprep.subr.mxu0 %v2388
    %2644 = vmatpush1.msra.mxu0 %v2387
    %2645 = vmatprep.subr.mxu0 %v2355
    %2646 = vmatpush1.msra.mxu0 %v2354
    %2647 = vmatprep.subr.mxu0 %v2420
    %2648 = vmatpush1.msra.mxu0 %v2419
    %2649 = vmatprep.subr.mxu0 0.0
    %2650 = vmatpush1.msra.mxu0 0.0
    %2651 = vmatprep.subr.mxu0 0.0
    %2652 = vmatpush1.msra.mxu0 0.0
    %2653 = vmatprep.subr.mxu0 0.0
    %2654 = vmatpush1.msra.mxu0 0.0
    %2655 = vmatprep.subr.mxu0 0.0
    %2656 = vmatpush1.msra.mxu0 0.0
    %2657 = vmatprep.subr.mxu0 0.0
    %2658 = vmatpush1.msra.mxu0 0.0
    %2659 = vmatprep.subr.mxu0 0.0
    %2660 = vmatpush1.msra.mxu0 0.0
    %2661 = vmatprep.subr.mxu0 0.0
    %2662 = vmatpush1.msra.mxu0 0.0
    %2663 = vmatprep.subr.mxu0 0.0
    %2664 = vmatpush1.msra.mxu0 0.0
    %2665 = vmatprep.subr.mxu0 0.0
    %2666 = vmatpush1.msra.mxu0 0.0
    %2667 = vmatprep.subr.mxu0 0.0
    %2668 = vmatpush1.msra.mxu0 0.0
    %2669 = vmatprep.subr.mxu0 0.0
    %2670 = vmatpush1.msra.mxu0 0.0
    %2671 = vmatprep.subr.mxu0 0.0
    %2672 = vmatpush1.msra.mxu0 0.0
    %2673 = vmatprep.subr.mxu0 0.0
    %2674 = vmatpush1.msra.mxu0 0.0
    %2675 = vmatprep.subr.mxu0 0.0
    %2676 = vmatpush1.msra.mxu0 0.0
    %2677 = vmatprep.subr.mxu0 0.0
    %2678 = vmatpush1.msra.mxu0 0.0
    %2679 = vmatprep.subr.mxu0 0.0
    %2680 = vmatpush1.msra.mxu0 0.0
    %2681 = vmatprep.subr.mxu0 0.0
    %2682 = vmatpush1.msra.mxu0 0.0
    %2683 = vmatprep.subr.mxu0 0.0
    %2684 = vmatpush1.msra.mxu0 0.0
    %2685 = vmatprep.subr.mxu0 0.0
    %2686 = vmatpush1.msra.mxu0 0.0
    %2687 = vmatprep.subr.mxu0 0.0
    %2688 = vmatpush1.msra.mxu0 0.0
    %2689 = vmatprep.subr.mxu0 0.0
    %2690 = vmatpush1.msra.mxu0 0.0
    %2691 = vmatprep.subr.mxu0 0.0
    %2692 = vmatpush1.msra.mxu0 0.0
    %2693 = vmatprep.subr.mxu0 0.0
    %2694 = vmatpush1.msra.mxu0 0.0
    %2695 = vmatprep.subr.mxu0 0.0
    %2696 = vmatpush1.msra.mxu0 0.0
    %2697 = vmatprep.subr.mxu0 0.0
    %2698 = vmatpush1.msra.mxu0 0.0
    %2699 = vmatprep.subr.mxu0 0.0
    %2700 = vmatpush1.msra.mxu0 0.0
    %2701 = vmatprep.subr.mxu0 0.0
    %2702 = vmatpush1.msra.mxu0 0.0
    %2703 = vmatprep.subr.mxu0 0.0
    %2704 = vmatpush1.msra.mxu0 0.0
    %2705 = vmatprep.subr.mxu0 0.0
    %2706 = vmatpush1.msra.mxu0 0.0
    %2707 = vmatprep.mubr.f32.mxu0 0.0
    %2708 = vmatmul.mubr.f32.gmra.mrb[0].mxu0 %v2428
    %v2709 = vpop.f32.mrb[0].mxu0
    %v2710 = vadd.f32 %v2425, %v2709
    %v2711 = vpop.f32.mrb[0].mxu0
    %v2712 = vadd.f32 %v2425, %v2711
    %2713 = vdwg.mxu0
    %v2714 = vmul.f32 %v2497, 0.5
    %v2715 = vmul.f32 %v2499, 0.5
    %v2716 = vmul.f32 %v2568, 0.5
    %v2717 = vmul.f32 %v2570, 0.5
    %v2718 = vmul.f32 %v2639, 0.5
    %v2719 = vmul.f32 %v2641, 0.5
    %v2720 = vmul.f32 %v2710, 0.5
    %v2721 = vmul.f32 %v2712, 0.5
    %v2722 = vtanh.pop %v2714
    %v2723 = vtanh.pop %v2715
    %v2724 = vtanh.pop %v2716
    %v2725 = vtanh.pop %v2717
    %v2726 = vtanh.pop %v2718
    %v2727 = vtanh.pop %v2719
    %v2728 = vtanh.pop %v2720
    %v2729 = vtanh.pop %v2721
    %v2730 = vmul.f32 %v2722, 0.5
    %v2731 = vmul.f32 %v2723, 0.5
    %v2732 = vmul.f32 %v2724, 0.5
    %v2733 = vmul.f32 %v2725, 0.5
    %v2734 = vmul.f32 %v2726, 0.5
    %v2735 = vmul.f32 %v2727, 0.5
    %v2736 = vmul.f32 %v2728, 0.5
    %v2737 = vmul.f32 %v2729, 0.5
    %v2738 = vadd.f32 %v2730, 0.5
    %v2739 = vadd.f32 %v2731, 0.5
    %v2740 = vadd.f32 %v2732, 0.5
    %v2741 = vadd.f32 %v2733, 0.5
    %v2742 = vadd.f32 %v2734, 0.5
    %v2743 = vadd.f32 %v2735, 0.5
    %v2744 = vadd.f32 %v2736, 0.5
    %v2745 = vadd.f32 %v2737, 0.5
    %2746 = vst [vmem:[#allocation8] sm:$0xff] %v2738
    %2747 = vst [vmem:[#allocation8 + $0x8] sm:$0xff] %v2739
    %2748 = vst [vmem:[#allocation8 + $0x10] sm:$0xff] %v2740
    %2749 = vst [vmem:[#allocation8 + $0x18] sm:$0xff] %v2741
    %2750 = vst [vmem:[#allocation8 + $0x20] sm:$0xff] %v2742
    %2751 = vst [vmem:[#allocation8 + $0x28] sm:$0xff] %v2743
    %2752 = vst [vmem:[#allocation8 + $0x30] sm:$0xff] %v2744
    %2753 = vst [vmem:[#allocation8 + $0x38] sm:$0xff] %v2745
    // Predicated region
    $region50: #{tpu_custom_call.1} parent=1 // pred_check
      _
    $region51: #{tpu_custom_call.1} parent=1 // pred_check_branch
      %2755 = sbr.rel (0) target = $region53
    $region52: #{tpu_custom_call.1} parent=1 // pred_region
      %s2757 = ssub.s32 1024, 1024
      %2758 = vsyncadd [#allocation4], %s2757
      %s2760 = sshll.u32 [#allocation8], 4
      %s2761 = int_to_ptr.vmem [resolvable:$true] %s2760
      %2763 = dma.vmem_to_hbm [thread:$0]  %s2761, 1024, %s9, [#allocation4]
    $region53: #{tpu_custom_call.1} parent=1 // pred_fallthru
      _
    // Predicated region
    $region54: #{tpu_custom_call.1} parent=1 // pred_check
      _
    $region55: #{tpu_custom_call.1} parent=1 // pred_check_branch
      %2765 = sbr.rel (0) target = $region57
    $region56: #{tpu_custom_call.1} parent=1 // pred_region
      %2766 = dma.done [#allocation4], 1024
    $region57: #{tpu_custom_call.1} parent=1 // pred_fallthru
      _
    %2767 = vsyncpa [#allocation3], 1
    %2768 = vsyncpa [#allocation6], 1
    %2769 = vsyncpa [#allocation4], 1

</llo_original>
